<compile_context>
chip_gen: v5e
topology: v5e:2x2
jax: 0.10.0
libtpu: 0.0.40
codegen_flags: <defaults>
</compile_context>

<pallas_src>
import functools

import numpy as np
import jax
import jax.numpy as jnp
from jax.experimental import pallas as pl
from jax.experimental.pallas import tpu as pltpu  # noqa: F401  (TPU backend)


# --------------------------- fused LSTM + fc kernel ---------------------------
def _make_fused_kernel(n_layers, T, B, H):
    """Wavefront LSTM stack + final fc, single invocation, fully VMEM resident.

    Ref order: xproj0, whh0, wcat[1..L), bias[1..L), h0, c0, fcw, fcb,
               out, hN, cN
    """
    n_rest = n_layers - 1

    def kernel(*refs):
        i = 0
        xproj0_ref = refs[i]; i += 1                  # (T, B, 4H) f32: emb@Wih0 + b0
        whh0_ref = refs[i]; i += 1                    # (H, 4H)   matmul dtype
        wcat = refs[i:i + n_rest]; i += n_rest        # (2H, 4H)  [W_ih; W_hh]
        bias = refs[i:i + n_rest]; i += n_rest        # (1, 4H)   f32
        h0_ref, c0_ref, fcw_ref, fcb_ref = refs[i:i + 4]; i += 4
        out_ref, hN_ref, cN_ref = refs[i:i + 3]

        md = whh0_ref.dtype                           # matmul operand dtype (bf16)

        def gate_update(gates, c_prev):
            # Gate column order [i, f, o, g]: one sigmoid over 3H + one tanh.
            sig = jax.nn.sigmoid(gates[:, :3 * H])
            g_g = jnp.tanh(gates[:, 3 * H:])
            c_new = sig[:, H:2 * H] * c_prev + sig[:, :H] * g_g
            h_new = sig[:, 2 * H:3 * H] * jnp.tanh(c_new)
            return h_new, c_new

        # h/c live in vregs (loop-carried values), never round-tripped via VMEM.
        h = [h0_ref[l] for l in range(n_layers)]
        c = [c0_ref[l] for l in range(n_layers)]

        # Wavefront: layer l consumes layer l-1's hidden from the previous
        # global step, so within a step all active layers are independent.
        for s in range(T + n_layers - 1):             # static unroll (small)
            h_prev = list(h)
            c_prev = list(c)
            for l in range(n_layers):
                t = s - l
                if t < 0 or t >= T:
                    continue                          # layer idle at this step
                if l == 0:
                    # Layer-0 input projection + bias precomputed (folded table).
                    gates = xproj0_ref[t] + jnp.dot(
                        h_prev[0].astype(md), whh0_ref[...],
                        preferred_element_type=jnp.float32)
                else:
                    # Input = previous layer's hidden from the previous step.
                    xh = jnp.concatenate([h_prev[l - 1], h_prev[l]], axis=1)
                    gates = (jnp.dot(xh.astype(md), wcat[l - 1][...],
                                     preferred_element_type=jnp.float32)
                             + bias[l - 1][...])
                h[l], c[l] = gate_update(gates, c_prev[l])
                # inter-layer dropout: identity in eval mode

        for l in range(n_layers):
            hN_ref[l] = h[l]
            cN_ref[l] = c[l]

        # fc only on the final hidden of the last layer (lane-dense padded slab).
        out_ref[...] = (
            jnp.dot(h[n_layers - 1].astype(md), fcw_ref[...],
                    preferred_element_type=jnp.float32)
            + fcb_ref[...]).astype(out_ref.dtype)

    return kernel


def _full_spec(a):
    nd = a.ndim
    return pl.BlockSpec(a.shape, lambda nd=nd: (0,) * nd)


def fused_lstm_fc(xproj0, whh0_t, wcat_t, bias_rest, h0, c0, fc_w_t, fc_b):
    """xproj0: (T, B, 4H) f32 time-major layer-0 projection (emb@Wih0 + b0).
    Returns (fc(h_T_lastlayer) padded to lane width, h_n (L,B,H), c_n (L,B,H))."""
    T, B, G = xproj0.shape
    H = whh0_t.shape[0]
    L = 1 + len(wcat_t)
    assert G == 4 * H
    O = fc_w_t.shape[-1]
    assert O >= 1
    O_pad = max(128, ((O + 127) // 128) * 128)        # lane-dense output slab

    fcw_pad = jnp.zeros((H, O_pad), fc_w_t.dtype).at[:, :O].set(fc_w_t)
    fcb_pad = jnp.zeros((1, O_pad), jnp.float32).at[:, :O].set(
        fc_b.astype(jnp.float32))

    operands = [xproj0.astype(jnp.float32), whh0_t, *wcat_t, *bias_rest,
                h0.astype(jnp.float32), c0.astype(jnp.float32),
                fcw_pad, fcb_pad]

    return pl.pallas_call(
        _make_fused_kernel(L, T, B, H),
        out_shape=(
            jax.ShapeDtypeStruct((B, O_pad), jnp.float32),
            jax.ShapeDtypeStruct((L, B, H), jnp.float32),
            jax.ShapeDtypeStruct((L, B, H), jnp.float32),
        ),
        in_specs=[_full_spec(a) for a in operands],
        out_specs=(
            pl.BlockSpec((B, O_pad), lambda: (0, 0)),
            pl.BlockSpec((L, B, H), lambda: (0, 0, 0)),
            pl.BlockSpec((L, B, H), lambda: (0, 0, 0)),
        ),
    )(*operands)


# ------------------------------ Model wrapper --------------------------------
class SentimentLSTMParams:
    """Random-init params packed in the kernel's layout.

    Gate column order is [i, f, o, g] (reorder from PyTorch's [i, f, g, o]
    when importing checkpoints).  Layer-0 embedding + W_ih + bias are folded
    into a single gather table (exact: gather and linear commute)."""

    def __init__(self, key, vocab_size, output_size, embedding_dim,
                 hidden_dim, n_layers, matmul_dtype=jnp.bfloat16):
        self.vocab_size = vocab_size
        self.output_size = output_size
        self.embedding_dim = embedding_dim
        self.hidden_dim = hidden_dim
        self.n_layers = n_layers
        self.matmul_dtype = matmul_dtype

        H = hidden_dim
        keys = iter(jax.random.split(key, 1 + 4 * n_layers + 2))

        # Embedding ~ N(0, 1) like nn.Embedding default (kept f32).
        self.embedding = jax.random.normal(
            next(keys), (vocab_size, embedding_dim), jnp.float32)

        bound = 1.0 / (H ** 0.5)      # PyTorch LSTM init U(-1/sqrt(H), 1/sqrt(H))

        # ---- layer 0: fold embedding @ W_ih0 + b0 into a (vocab, 4H) table ---
        w_ih0 = jax.random.uniform(next(keys), (4 * H, embedding_dim),
                                   jnp.float32, -bound, bound)
        w_hh0 = jax.random.uniform(next(keys), (4 * H, H),
                                   jnp.float32, -bound, bound)
        b0 = (jax.random.uniform(next(keys), (4 * H,), jnp.float32, -bound, bound)
              + jax.random.uniform(next(keys), (4 * H,), jnp.float32, -bound, bound))
        self.xproj_table = (
            jnp.dot(self.embedding.astype(matmul_dtype),
                    w_ih0.T.astype(matmul_dtype),
                    preferred_element_type=jnp.float32)
            + b0.astype(jnp.float32))                       # (vocab, 4H) f32
        self.whh0_t = w_hh0.T.astype(matmul_dtype)          # (H, 4H)

        # ---- layers >= 1: concatenated [W_ih; W_hh] (2H, 4H) + bias ----------
        self.w_cat_t, self.bias_rest = [], []
        for _ in range(1, n_layers):
            w_ih = jax.random.uniform(next(keys), (4 * H, H),
                                      jnp.float32, -bound, bound)
            w_hh = jax.random.uniform(next(keys), (4 * H, H),
                                      jnp.float32, -bound, bound)
            b_ih = jax.random.uniform(next(keys), (4 * H,),
                                      jnp.float32, -bound, bound)
            b_hh = jax.random.uniform(next(keys), (4 * H,),
                                      jnp.float32, -bound, bound)
            self.w_cat_t.append(
                jnp.concatenate([w_ih.T, w_hh.T], axis=0).astype(matmul_dtype))
            self.bias_rest.append((b_ih + b_hh).astype(jnp.float32)
                                  .reshape(1, 4 * H))

        fb = 1.0 / (H ** 0.5)
        self.fc_w_t = jax.random.uniform(next(keys), (output_size, H),
                                         jnp.float32, -fb, fb
                                         ).T.astype(matmul_dtype)   # (H, O)
        self.fc_b = jax.random.uniform(next(keys), (output_size,),
                                       jnp.float32, -fb, fb)


def sentiment_lstm_forward(params, x_tokens, hidden):
    """Forward matching SentimentLSTM.forward (eval mode, raw fc logits).

    x_tokens: (B, T) int32
    hidden:   (h0, c0) each (n_layers, B, H)
    returns:  (out (B,), (h_n, c_n))
    """
    B, T = x_tokens.shape
    O = params.output_size

    # Embedding + layer-0 input projection + bias as a single gather of the
    # folded table, in time-major order (only int32 ids are transposed).
    xproj0 = params.xproj_table[x_tokens.T]                 # (T, B, 4H) f32

    h0, c0 = hidden
    out_pad, h_n, c_n = fused_lstm_fc(
        xproj0, params.whh0_t, params.w_cat_t, params.bias_rest,
        h0, c0, params.fc_w_t, params.fc_b)

    # Reference does fc over all (B*T) rows then out.view(B, -1)[:, -1]; that
    # element equals fc(h_T of the last layer)[:, O-1] for batch_first,
    # full-length (unpadded) sequences.
    out = out_pad[:, O - 1]
    return out, (h_n, c_n)


# --------------------- pure-JAX reference (for self-check) --------------------
def _gate_update_ref(gates, c, H):
    # Gate order [i, f, o, g].
    i_g = jax.nn.sigmoid(gates[:, 0 * H:1 * H])
    f_g = jax.nn.sigmoid(gates[:, 1 * H:2 * H])
    o_g = jax.nn.sigmoid(gates[:, 2 * H:3 * H])
    g_g = jnp.tanh(gates[:, 3 * H:4 * H])
    c_new = f_g * c + i_g * g_g
    h_new = o_g * jnp.tanh(c_new)
    return h_new, c_new


def _reference_forward(params, x_tokens, hidden):
    """XLA reference mirroring the kernel's bf16 operand rounding."""
    B, T = x_tokens.shape
    H = params.hidden_dim
    md = params.matmul_dtype
    h0, c0 = hidden

    xproj0 = params.xproj_table[x_tokens.T]                 # (T, B, 4H) f32
    h_fin, c_fin = [], []

    # Layer 0
    whh0 = params.whh0_t.astype(jnp.float32)
    h, c = h0[0], c0[0]
    ys = []
    for t in range(T):
        gates = xproj0[t] + h.astype(md).astype(jnp.float32) @ whh0
        h, c = _gate_update_ref(gates, c, H)
        ys.append(h)
    h_fin.append(h); c_fin.append(c)
    x_seq = ys

    # Layers >= 1
    for l in range(1, params.n_layers):
        wcat = params.w_cat_t[l - 1].astype(jnp.float32)
        b = params.bias_rest[l - 1]
        h, c = h0[l], c0[l]
        ys = []
        for t in range(T):
            xh = jnp.concatenate([x_seq[t], h], axis=1)
            gates = xh.astype(md).astype(jnp.float32) @ wcat + b
            h, c = _gate_update_ref(gates, c, H)
            ys.append(h)
        h_fin.append(h); c_fin.append(c)
        x_seq = ys

    fcw = params.fc_w_t.astype(jnp.float32)
    out = h.astype(md).astype(jnp.float32) @ fcw + params.fc_b
    return out[:, -1], (jnp.stack(h_fin, 0), jnp.stack(c_fin, 0))


if __name__ == "__main__":
    # Small, TPU-tile-friendly shapes consistent with the module's forward.
    batch = 8
    seq_len = 8
    embedding_dim = 128
    hidden_dim = 128
    n_layers = 3
    vocab_size = 64
    output_size = 1   # original script has output_size=0 (degenerate); use 1

    key = jax.random.PRNGKey(0)
    pkey, xkey = jax.random.split(key)
    params = SentimentLSTMParams(pkey, vocab_size, output_size,
                                 embedding_dim, hidden_dim, n_layers)

    x_tokens = jax.random.randint(xkey, (batch, seq_len), 0, vocab_size,
                                  dtype=jnp.int32)
    h0 = jnp.zeros((n_layers, batch, hidden_dim), jnp.float32)
    c0 = jnp.zeros((n_layers, batch, hidden_dim), jnp.float32)

    fwd = jax.jit(functools.partial(sentiment_lstm_forward, params))
    out, (h_n, c_n) = fwd(x_tokens, (h0, c0))
    jax.block_until_ready((out, h_n, c_n))

    assert out.shape == (batch,)
    assert h_n.shape == (n_layers, batch, hidden_dim)
    assert c_n.shape == (n_layers, batch, hidden_dim)

    # Numerical self-check against a pure-JAX reference (same weight rounding;
    # bf16 matmul operands -> 2e-2 tolerance, fine for inference).
    ref_out, (ref_h, ref_c) = _reference_forward(params, x_tokens, (h0, c0))
    np.testing.assert_allclose(np.asarray(out), np.asarray(ref_out),
                               rtol=2e-2, atol=2e-2)
    np.testing.assert_allclose(np.asarray(h_n), np.asarray(ref_h),
                               rtol=2e-2, atol=2e-2)
    np.testing.assert_allclose(np.asarray(c_n), np.asarray(ref_c),
                               rtol=2e-2, atol=2e-2)

    print("KERNEL_OK")
</pallas_src>

<mosaic_0001>
module attributes {stable_mosaic.version = 11 : i64} {
  func.func @kernel(%arg0: memref<8x8x512xf32, #tpu.memory_space<vmem>>, %arg1: memref<128x512xbf16, #tpu.memory_space<vmem>>, %arg2: memref<256x512xbf16, #tpu.memory_space<vmem>>, %arg3: memref<256x512xbf16, #tpu.memory_space<vmem>>, %arg4: memref<1x512xf32, #tpu.memory_space<vmem>>, %arg5: memref<1x512xf32, #tpu.memory_space<vmem>>, %arg6: memref<3x8x128xf32, #tpu.memory_space<vmem>>, %arg7: memref<3x8x128xf32, #tpu.memory_space<vmem>>, %arg8: memref<128x128xbf16, #tpu.memory_space<vmem>>, %arg9: memref<1x128xf32, #tpu.memory_space<vmem>>, %arg10: memref<8x128xf32, #tpu.memory_space<vmem>>, %arg11: memref<3x8x128xf32, #tpu.memory_space<vmem>>, %arg12: memref<3x8x128xf32, #tpu.memory_space<vmem>>) attributes {dimension_semantics = [], scalar_prefetch = 0 : i64, scratch_operands = 0 : i64, tpu.core_type = #tpu.core_type<tc>} {
    %c0 = arith.constant 0 : index
    %c0_0 = arith.constant 0 : index
    %c0_1 = arith.constant 0 : index
    %0 = vector.load %arg6[%c0, %c0_0, %c0_1] : memref<3x8x128xf32, #tpu.memory_space<vmem>>, vector<1x8x128xf32>
    %1 = vector.shape_cast %0 : vector<1x8x128xf32> to vector<8x128xf32>
    %c1 = arith.constant 1 : index
    %c0_2 = arith.constant 0 : index
    %c0_3 = arith.constant 0 : index
    %2 = vector.load %arg6[%c1, %c0_2, %c0_3] : memref<3x8x128xf32, #tpu.memory_space<vmem>>, vector<1x8x128xf32>
    %3 = vector.shape_cast %2 : vector<1x8x128xf32> to vector<8x128xf32>
    %c2 = arith.constant 2 : index
    %c0_4 = arith.constant 0 : index
    %c0_5 = arith.constant 0 : index
    %4 = vector.load %arg6[%c2, %c0_4, %c0_5] : memref<3x8x128xf32, #tpu.memory_space<vmem>>, vector<1x8x128xf32>
    %5 = vector.shape_cast %4 : vector<1x8x128xf32> to vector<8x128xf32>
    %c0_6 = arith.constant 0 : index
    %c0_7 = arith.constant 0 : index
    %c0_8 = arith.constant 0 : index
    %6 = vector.load %arg7[%c0_6, %c0_7, %c0_8] : memref<3x8x128xf32, #tpu.memory_space<vmem>>, vector<1x8x128xf32>
    %7 = vector.shape_cast %6 : vector<1x8x128xf32> to vector<8x128xf32>
    %c1_9 = arith.constant 1 : index
    %c0_10 = arith.constant 0 : index
    %c0_11 = arith.constant 0 : index
    %8 = vector.load %arg7[%c1_9, %c0_10, %c0_11] : memref<3x8x128xf32, #tpu.memory_space<vmem>>, vector<1x8x128xf32>
    %9 = vector.shape_cast %8 : vector<1x8x128xf32> to vector<8x128xf32>
    %c2_12 = arith.constant 2 : index
    %c0_13 = arith.constant 0 : index
    %c0_14 = arith.constant 0 : index
    %10 = vector.load %arg7[%c2_12, %c0_13, %c0_14] : memref<3x8x128xf32, #tpu.memory_space<vmem>>, vector<1x8x128xf32>
    %11 = vector.shape_cast %10 : vector<1x8x128xf32> to vector<8x128xf32>
    %c0_15 = arith.constant 0 : index
    %c0_16 = arith.constant 0 : index
    %c0_17 = arith.constant 0 : index
    %12 = vector.load %arg0[%c0_15, %c0_16, %c0_17] : memref<8x8x512xf32, #tpu.memory_space<vmem>>, vector<1x8x512xf32>
    %13 = vector.shape_cast %12 : vector<1x8x512xf32> to vector<8x512xf32>
    %14 = arith.truncf %1 : vector<8x128xf32> to vector<8x128xbf16>
    %c0_18 = arith.constant 0 : index
    %c0_19 = arith.constant 0 : index
    %15 = vector.load %arg1[%c0_18, %c0_19] : memref<128x512xbf16, #tpu.memory_space<vmem>>, vector<128x512xbf16>
    %cst = arith.constant dense<0.000000e+00> : vector<8x512xf32>
    %16 = tpu.matmul %14, %15, %cst {dimension_numbers = #tpu.dot_dimension_numbers<[1], [0], [0], [1], [0, 0, 1, 1], [], []>} : vector<8x128xbf16>, vector<128x512xbf16>, vector<8x512xf32> -> vector<8x512xf32>
    %17 = arith.addf %13, %16 : vector<8x512xf32>
    %18 = vector.extract_strided_slice %17 {offsets = [0, 0], sizes = [8, 384], strides = [1, 1]} : vector<8x512xf32> to vector<8x384xf32>
    %19 = arith.negf %18 : vector<8x384xf32>
    %20 = math.exp %19 : vector<8x384xf32>
    %cst_20 = arith.constant 1.000000e+00 : f32
    %21 = vector.broadcast %cst_20 : f32 to vector<8x384xf32>
    %22 = arith.addf %21, %20 : vector<8x384xf32>
    %23 = arith.divf %21, %22 : vector<8x384xf32>
    %24 = vector.extract_strided_slice %17 {offsets = [0, 384], sizes = [8, 128], strides = [1, 1]} : vector<8x512xf32> to vector<8x128xf32>
    %25 = math.tanh %24 : vector<8x128xf32>
    %26 = vector.extract_strided_slice %23 {offsets = [0, 128], sizes = [8, 128], strides = [1, 1]} : vector<8x384xf32> to vector<8x128xf32>
    %27 = arith.mulf %26, %7 : vector<8x128xf32>
    %28 = vector.extract_strided_slice %23 {offsets = [0, 0], sizes = [8, 128], strides = [1, 1]} : vector<8x384xf32> to vector<8x128xf32>
    %29 = arith.mulf %28, %25 : vector<8x128xf32>
    %30 = arith.addf %27, %29 : vector<8x128xf32>
    %31 = vector.extract_strided_slice %23 {offsets = [0, 256], sizes = [8, 128], strides = [1, 1]} : vector<8x384xf32> to vector<8x128xf32>
    %32 = math.tanh %30 : vector<8x128xf32>
    %33 = arith.mulf %31, %32 : vector<8x128xf32>
    %c1_21 = arith.constant 1 : index
    %c0_22 = arith.constant 0 : index
    %c0_23 = arith.constant 0 : index
    %34 = vector.load %arg0[%c1_21, %c0_22, %c0_23] : memref<8x8x512xf32, #tpu.memory_space<vmem>>, vector<1x8x512xf32>
    %35 = vector.shape_cast %34 : vector<1x8x512xf32> to vector<8x512xf32>
    %36 = arith.truncf %33 : vector<8x128xf32> to vector<8x128xbf16>
    %c0_24 = arith.constant 0 : index
    %c0_25 = arith.constant 0 : index
    %37 = vector.load %arg1[%c0_24, %c0_25] : memref<128x512xbf16, #tpu.memory_space<vmem>>, vector<128x512xbf16>
    %cst_26 = arith.constant dense<0.000000e+00> : vector<8x512xf32>
    %38 = tpu.matmul %36, %37, %cst_26 {dimension_numbers = #tpu.dot_dimension_numbers<[1], [0], [0], [1], [0, 0, 1, 1], [], []>} : vector<8x128xbf16>, vector<128x512xbf16>, vector<8x512xf32> -> vector<8x512xf32>
    %39 = arith.addf %35, %38 : vector<8x512xf32>
    %40 = vector.extract_strided_slice %39 {offsets = [0, 0], sizes = [8, 384], strides = [1, 1]} : vector<8x512xf32> to vector<8x384xf32>
    %41 = arith.negf %40 : vector<8x384xf32>
    %42 = math.exp %41 : vector<8x384xf32>
    %cst_27 = arith.constant 1.000000e+00 : f32
    %43 = vector.broadcast %cst_27 : f32 to vector<8x384xf32>
    %44 = arith.addf %43, %42 : vector<8x384xf32>
    %45 = arith.divf %43, %44 : vector<8x384xf32>
    %46 = vector.extract_strided_slice %39 {offsets = [0, 384], sizes = [8, 128], strides = [1, 1]} : vector<8x512xf32> to vector<8x128xf32>
    %47 = math.tanh %46 : vector<8x128xf32>
    %48 = vector.extract_strided_slice %45 {offsets = [0, 128], sizes = [8, 128], strides = [1, 1]} : vector<8x384xf32> to vector<8x128xf32>
    %49 = arith.mulf %48, %30 : vector<8x128xf32>
    %50 = vector.extract_strided_slice %45 {offsets = [0, 0], sizes = [8, 128], strides = [1, 1]} : vector<8x384xf32> to vector<8x128xf32>
    %51 = arith.mulf %50, %47 : vector<8x128xf32>
    %52 = arith.addf %49, %51 : vector<8x128xf32>
    %53 = vector.extract_strided_slice %45 {offsets = [0, 256], sizes = [8, 128], strides = [1, 1]} : vector<8x384xf32> to vector<8x128xf32>
    %54 = math.tanh %52 : vector<8x128xf32>
    %55 = arith.mulf %53, %54 : vector<8x128xf32>
    %56 = tpu.concatenate %33, %3 in 1 : vector<8x128xf32>, vector<8x128xf32> -> vector<8x256xf32>
    %57 = arith.truncf %56 : vector<8x256xf32> to vector<8x256xbf16>
    %c0_28 = arith.constant 0 : index
    %c0_29 = arith.constant 0 : index
    %58 = vector.load %arg2[%c0_28, %c0_29] : memref<256x512xbf16, #tpu.memory_space<vmem>>, vector<256x512xbf16>
    %cst_30 = arith.constant dense<0.000000e+00> : vector<8x512xf32>
    %59 = tpu.matmul %57, %58, %cst_30 {dimension_numbers = #tpu.dot_dimension_numbers<[1], [0], [0], [1], [0, 0, 1, 1], [], []>} : vector<8x256xbf16>, vector<256x512xbf16>, vector<8x512xf32> -> vector<8x512xf32>
    %c0_31 = arith.constant 0 : index
    %c0_32 = arith.constant 0 : index
    %60 = vector.load %arg4[%c0_31, %c0_32] : memref<1x512xf32, #tpu.memory_space<vmem>>, vector<1x512xf32>
    %61 = vector.broadcast %60 : vector<1x512xf32> to vector<8x512xf32>
    %62 = arith.addf %59, %61 : vector<8x512xf32>
    %63 = vector.extract_strided_slice %62 {offsets = [0, 0], sizes = [8, 384], strides = [1, 1]} : vector<8x512xf32> to vector<8x384xf32>
    %64 = arith.negf %63 : vector<8x384xf32>
    %65 = math.exp %64 : vector<8x384xf32>
    %cst_33 = arith.constant 1.000000e+00 : f32
    %66 = vector.broadcast %cst_33 : f32 to vector<8x384xf32>
    %67 = arith.addf %66, %65 : vector<8x384xf32>
    %68 = arith.divf %66, %67 : vector<8x384xf32>
    %69 = vector.extract_strided_slice %62 {offsets = [0, 384], sizes = [8, 128], strides = [1, 1]} : vector<8x512xf32> to vector<8x128xf32>
    %70 = math.tanh %69 : vector<8x128xf32>
    %71 = vector.extract_strided_slice %68 {offsets = [0, 128], sizes = [8, 128], strides = [1, 1]} : vector<8x384xf32> to vector<8x128xf32>
    %72 = arith.mulf %71, %9 : vector<8x128xf32>
    %73 = vector.extract_strided_slice %68 {offsets = [0, 0], sizes = [8, 128], strides = [1, 1]} : vector<8x384xf32> to vector<8x128xf32>
    %74 = arith.mulf %73, %70 : vector<8x128xf32>
    %75 = arith.addf %72, %74 : vector<8x128xf32>
    %76 = vector.extract_strided_slice %68 {offsets = [0, 256], sizes = [8, 128], strides = [1, 1]} : vector<8x384xf32> to vector<8x128xf32>
    %77 = math.tanh %75 : vector<8x128xf32>
    %78 = arith.mulf %76, %77 : vector<8x128xf32>
    %c2_34 = arith.constant 2 : index
    %c0_35 = arith.constant 0 : index
    %c0_36 = arith.constant 0 : index
    %79 = vector.load %arg0[%c2_34, %c0_35, %c0_36] : memref<8x8x512xf32, #tpu.memory_space<vmem>>, vector<1x8x512xf32>
    %80 = vector.shape_cast %79 : vector<1x8x512xf32> to vector<8x512xf32>
    %81 = arith.truncf %55 : vector<8x128xf32> to vector<8x128xbf16>
    %c0_37 = arith.constant 0 : index
    %c0_38 = arith.constant 0 : index
    %82 = vector.load %arg1[%c0_37, %c0_38] : memref<128x512xbf16, #tpu.memory_space<vmem>>, vector<128x512xbf16>
    %cst_39 = arith.constant dense<0.000000e+00> : vector<8x512xf32>
    %83 = tpu.matmul %81, %82, %cst_39 {dimension_numbers = #tpu.dot_dimension_numbers<[1], [0], [0], [1], [0, 0, 1, 1], [], []>} : vector<8x128xbf16>, vector<128x512xbf16>, vector<8x512xf32> -> vector<8x512xf32>
    %84 = arith.addf %80, %83 : vector<8x512xf32>
    %85 = vector.extract_strided_slice %84 {offsets = [0, 0], sizes = [8, 384], strides = [1, 1]} : vector<8x512xf32> to vector<8x384xf32>
    %86 = arith.negf %85 : vector<8x384xf32>
    %87 = math.exp %86 : vector<8x384xf32>
    %cst_40 = arith.constant 1.000000e+00 : f32
    %88 = vector.broadcast %cst_40 : f32 to vector<8x384xf32>
    %89 = arith.addf %88, %87 : vector<8x384xf32>
    %90 = arith.divf %88, %89 : vector<8x384xf32>
    %91 = vector.extract_strided_slice %84 {offsets = [0, 384], sizes = [8, 128], strides = [1, 1]} : vector<8x512xf32> to vector<8x128xf32>
    %92 = math.tanh %91 : vector<8x128xf32>
    %93 = vector.extract_strided_slice %90 {offsets = [0, 128], sizes = [8, 128], strides = [1, 1]} : vector<8x384xf32> to vector<8x128xf32>
    %94 = arith.mulf %93, %52 : vector<8x128xf32>
    %95 = vector.extract_strided_slice %90 {offsets = [0, 0], sizes = [8, 128], strides = [1, 1]} : vector<8x384xf32> to vector<8x128xf32>
    %96 = arith.mulf %95, %92 : vector<8x128xf32>
    %97 = arith.addf %94, %96 : vector<8x128xf32>
    %98 = vector.extract_strided_slice %90 {offsets = [0, 256], sizes = [8, 128], strides = [1, 1]} : vector<8x384xf32> to vector<8x128xf32>
    %99 = math.tanh %97 : vector<8x128xf32>
    %100 = arith.mulf %98, %99 : vector<8x128xf32>
    %101 = tpu.concatenate %55, %78 in 1 : vector<8x128xf32>, vector<8x128xf32> -> vector<8x256xf32>
    %102 = arith.truncf %101 : vector<8x256xf32> to vector<8x256xbf16>
    %c0_41 = arith.constant 0 : index
    %c0_42 = arith.constant 0 : index
    %103 = vector.load %arg2[%c0_41, %c0_42] : memref<256x512xbf16, #tpu.memory_space<vmem>>, vector<256x512xbf16>
    %cst_43 = arith.constant dense<0.000000e+00> : vector<8x512xf32>
    %104 = tpu.matmul %102, %103, %cst_43 {dimension_numbers = #tpu.dot_dimension_numbers<[1], [0], [0], [1], [0, 0, 1, 1], [], []>} : vector<8x256xbf16>, vector<256x512xbf16>, vector<8x512xf32> -> vector<8x512xf32>
    %c0_44 = arith.constant 0 : index
    %c0_45 = arith.constant 0 : index
    %105 = vector.load %arg4[%c0_44, %c0_45] : memref<1x512xf32, #tpu.memory_space<vmem>>, vector<1x512xf32>
    %106 = vector.broadcast %105 : vector<1x512xf32> to vector<8x512xf32>
    %107 = arith.addf %104, %106 : vector<8x512xf32>
    %108 = vector.extract_strided_slice %107 {offsets = [0, 0], sizes = [8, 384], strides = [1, 1]} : vector<8x512xf32> to vector<8x384xf32>
    %109 = arith.negf %108 : vector<8x384xf32>
    %110 = math.exp %109 : vector<8x384xf32>
    %cst_46 = arith.constant 1.000000e+00 : f32
    %111 = vector.broadcast %cst_46 : f32 to vector<8x384xf32>
    %112 = arith.addf %111, %110 : vector<8x384xf32>
    %113 = arith.divf %111, %112 : vector<8x384xf32>
    %114 = vector.extract_strided_slice %107 {offsets = [0, 384], sizes = [8, 128], strides = [1, 1]} : vector<8x512xf32> to vector<8x128xf32>
    %115 = math.tanh %114 : vector<8x128xf32>
    %116 = vector.extract_strided_slice %113 {offsets = [0, 128], sizes = [8, 128], strides = [1, 1]} : vector<8x384xf32> to vector<8x128xf32>
    %117 = arith.mulf %116, %75 : vector<8x128xf32>
    %118 = vector.extract_strided_slice %113 {offsets = [0, 0], sizes = [8, 128], strides = [1, 1]} : vector<8x384xf32> to vector<8x128xf32>
    %119 = arith.mulf %118, %115 : vector<8x128xf32>
    %120 = arith.addf %117, %119 : vector<8x128xf32>
    %121 = vector.extract_strided_slice %113 {offsets = [0, 256], sizes = [8, 128], strides = [1, 1]} : vector<8x384xf32> to vector<8x128xf32>
    %122 = math.tanh %120 : vector<8x128xf32>
    %123 = arith.mulf %121, %122 : vector<8x128xf32>
    %124 = tpu.concatenate %78, %5 in 1 : vector<8x128xf32>, vector<8x128xf32> -> vector<8x256xf32>
    %125 = arith.truncf %124 : vector<8x256xf32> to vector<8x256xbf16>
    %c0_47 = arith.constant 0 : index
    %c0_48 = arith.constant 0 : index
    %126 = vector.load %arg3[%c0_47, %c0_48] : memref<256x512xbf16, #tpu.memory_space<vmem>>, vector<256x512xbf16>
    %cst_49 = arith.constant dense<0.000000e+00> : vector<8x512xf32>
    %127 = tpu.matmul %125, %126, %cst_49 {dimension_numbers = #tpu.dot_dimension_numbers<[1], [0], [0], [1], [0, 0, 1, 1], [], []>} : vector<8x256xbf16>, vector<256x512xbf16>, vector<8x512xf32> -> vector<8x512xf32>
    %c0_50 = arith.constant 0 : index
    %c0_51 = arith.constant 0 : index
    %128 = vector.load %arg5[%c0_50, %c0_51] : memref<1x512xf32, #tpu.memory_space<vmem>>, vector<1x512xf32>
    %129 = vector.broadcast %128 : vector<1x512xf32> to vector<8x512xf32>
    %130 = arith.addf %127, %129 : vector<8x512xf32>
    %131 = vector.extract_strided_slice %130 {offsets = [0, 0], sizes = [8, 384], strides = [1, 1]} : vector<8x512xf32> to vector<8x384xf32>
    %132 = arith.negf %131 : vector<8x384xf32>
    %133 = math.exp %132 : vector<8x384xf32>
    %cst_52 = arith.constant 1.000000e+00 : f32
    %134 = vector.broadcast %cst_52 : f32 to vector<8x384xf32>
    %135 = arith.addf %134, %133 : vector<8x384xf32>
    %136 = arith.divf %134, %135 : vector<8x384xf32>
    %137 = vector.extract_strided_slice %130 {offsets = [0, 384], sizes = [8, 128], strides = [1, 1]} : vector<8x512xf32> to vector<8x128xf32>
    %138 = math.tanh %137 : vector<8x128xf32>
    %139 = vector.extract_strided_slice %136 {offsets = [0, 128], sizes = [8, 128], strides = [1, 1]} : vector<8x384xf32> to vector<8x128xf32>
    %140 = arith.mulf %139, %11 : vector<8x128xf32>
    %141 = vector.extract_strided_slice %136 {offsets = [0, 0], sizes = [8, 128], strides = [1, 1]} : vector<8x384xf32> to vector<8x128xf32>
    %142 = arith.mulf %141, %138 : vector<8x128xf32>
    %143 = arith.addf %140, %142 : vector<8x128xf32>
    %144 = vector.extract_strided_slice %136 {offsets = [0, 256], sizes = [8, 128], strides = [1, 1]} : vector<8x384xf32> to vector<8x128xf32>
    %145 = math.tanh %143 : vector<8x128xf32>
    %146 = arith.mulf %144, %145 : vector<8x128xf32>
    %c3 = arith.constant 3 : index
    %c0_53 = arith.constant 0 : index
    %c0_54 = arith.constant 0 : index
    %147 = vector.load %arg0[%c3, %c0_53, %c0_54] : memref<8x8x512xf32, #tpu.memory_space<vmem>>, vector<1x8x512xf32>
    %148 = vector.shape_cast %147 : vector<1x8x512xf32> to vector<8x512xf32>
    %149 = arith.truncf %100 : vector<8x128xf32> to vector<8x128xbf16>
    %c0_55 = arith.constant 0 : index
    %c0_56 = arith.constant 0 : index
    %150 = vector.load %arg1[%c0_55, %c0_56] : memref<128x512xbf16, #tpu.memory_space<vmem>>, vector<128x512xbf16>
    %cst_57 = arith.constant dense<0.000000e+00> : vector<8x512xf32>
    %151 = tpu.matmul %149, %150, %cst_57 {dimension_numbers = #tpu.dot_dimension_numbers<[1], [0], [0], [1], [0, 0, 1, 1], [], []>} : vector<8x128xbf16>, vector<128x512xbf16>, vector<8x512xf32> -> vector<8x512xf32>
    %152 = arith.addf %148, %151 : vector<8x512xf32>
    %153 = vector.extract_strided_slice %152 {offsets = [0, 0], sizes = [8, 384], strides = [1, 1]} : vector<8x512xf32> to vector<8x384xf32>
    %154 = arith.negf %153 : vector<8x384xf32>
    %155 = math.exp %154 : vector<8x384xf32>
    %cst_58 = arith.constant 1.000000e+00 : f32
    %156 = vector.broadcast %cst_58 : f32 to vector<8x384xf32>
    %157 = arith.addf %156, %155 : vector<8x384xf32>
    %158 = arith.divf %156, %157 : vector<8x384xf32>
    %159 = vector.extract_strided_slice %152 {offsets = [0, 384], sizes = [8, 128], strides = [1, 1]} : vector<8x512xf32> to vector<8x128xf32>
    %160 = math.tanh %159 : vector<8x128xf32>
    %161 = vector.extract_strided_slice %158 {offsets = [0, 128], sizes = [8, 128], strides = [1, 1]} : vector<8x384xf32> to vector<8x128xf32>
    %162 = arith.mulf %161, %97 : vector<8x128xf32>
    %163 = vector.extract_strided_slice %158 {offsets = [0, 0], sizes = [8, 128], strides = [1, 1]} : vector<8x384xf32> to vector<8x128xf32>
    %164 = arith.mulf %163, %160 : vector<8x128xf32>
    %165 = arith.addf %162, %164 : vector<8x128xf32>
    %166 = vector.extract_strided_slice %158 {offsets = [0, 256], sizes = [8, 128], strides = [1, 1]} : vector<8x384xf32> to vector<8x128xf32>
    %167 = math.tanh %165 : vector<8x128xf32>
    %168 = arith.mulf %166, %167 : vector<8x128xf32>
    %169 = tpu.concatenate %100, %123 in 1 : vector<8x128xf32>, vector<8x128xf32> -> vector<8x256xf32>
    %170 = arith.truncf %169 : vector<8x256xf32> to vector<8x256xbf16>
    %c0_59 = arith.constant 0 : index
    %c0_60 = arith.constant 0 : index
    %171 = vector.load %arg2[%c0_59, %c0_60] : memref<256x512xbf16, #tpu.memory_space<vmem>>, vector<256x512xbf16>
    %cst_61 = arith.constant dense<0.000000e+00> : vector<8x512xf32>
    %172 = tpu.matmul %170, %171, %cst_61 {dimension_numbers = #tpu.dot_dimension_numbers<[1], [0], [0], [1], [0, 0, 1, 1], [], []>} : vector<8x256xbf16>, vector<256x512xbf16>, vector<8x512xf32> -> vector<8x512xf32>
    %c0_62 = arith.constant 0 : index
    %c0_63 = arith.constant 0 : index
    %173 = vector.load %arg4[%c0_62, %c0_63] : memref<1x512xf32, #tpu.memory_space<vmem>>, vector<1x512xf32>
    %174 = vector.broadcast %173 : vector<1x512xf32> to vector<8x512xf32>
    %175 = arith.addf %172, %174 : vector<8x512xf32>
    %176 = vector.extract_strided_slice %175 {offsets = [0, 0], sizes = [8, 384], strides = [1, 1]} : vector<8x512xf32> to vector<8x384xf32>
    %177 = arith.negf %176 : vector<8x384xf32>
    %178 = math.exp %177 : vector<8x384xf32>
    %cst_64 = arith.constant 1.000000e+00 : f32
    %179 = vector.broadcast %cst_64 : f32 to vector<8x384xf32>
    %180 = arith.addf %179, %178 : vector<8x384xf32>
    %181 = arith.divf %179, %180 : vector<8x384xf32>
    %182 = vector.extract_strided_slice %175 {offsets = [0, 384], sizes = [8, 128], strides = [1, 1]} : vector<8x512xf32> to vector<8x128xf32>
    %183 = math.tanh %182 : vector<8x128xf32>
    %184 = vector.extract_strided_slice %181 {offsets = [0, 128], sizes = [8, 128], strides = [1, 1]} : vector<8x384xf32> to vector<8x128xf32>
    %185 = arith.mulf %184, %120 : vector<8x128xf32>
    %186 = vector.extract_strided_slice %181 {offsets = [0, 0], sizes = [8, 128], strides = [1, 1]} : vector<8x384xf32> to vector<8x128xf32>
    %187 = arith.mulf %186, %183 : vector<8x128xf32>
    %188 = arith.addf %185, %187 : vector<8x128xf32>
    %189 = vector.extract_strided_slice %181 {offsets = [0, 256], sizes = [8, 128], strides = [1, 1]} : vector<8x384xf32> to vector<8x128xf32>
    %190 = math.tanh %188 : vector<8x128xf32>
    %191 = arith.mulf %189, %190 : vector<8x128xf32>
    %192 = tpu.concatenate %123, %146 in 1 : vector<8x128xf32>, vector<8x128xf32> -> vector<8x256xf32>
    %193 = arith.truncf %192 : vector<8x256xf32> to vector<8x256xbf16>
    %c0_65 = arith.constant 0 : index
    %c0_66 = arith.constant 0 : index
    %194 = vector.load %arg3[%c0_65, %c0_66] : memref<256x512xbf16, #tpu.memory_space<vmem>>, vector<256x512xbf16>
    %cst_67 = arith.constant dense<0.000000e+00> : vector<8x512xf32>
    %195 = tpu.matmul %193, %194, %cst_67 {dimension_numbers = #tpu.dot_dimension_numbers<[1], [0], [0], [1], [0, 0, 1, 1], [], []>} : vector<8x256xbf16>, vector<256x512xbf16>, vector<8x512xf32> -> vector<8x512xf32>
    %c0_68 = arith.constant 0 : index
    %c0_69 = arith.constant 0 : index
    %196 = vector.load %arg5[%c0_68, %c0_69] : memref<1x512xf32, #tpu.memory_space<vmem>>, vector<1x512xf32>
    %197 = vector.broadcast %196 : vector<1x512xf32> to vector<8x512xf32>
    %198 = arith.addf %195, %197 : vector<8x512xf32>
    %199 = vector.extract_strided_slice %198 {offsets = [0, 0], sizes = [8, 384], strides = [1, 1]} : vector<8x512xf32> to vector<8x384xf32>
    %200 = arith.negf %199 : vector<8x384xf32>
    %201 = math.exp %200 : vector<8x384xf32>
    %cst_70 = arith.constant 1.000000e+00 : f32
    %202 = vector.broadcast %cst_70 : f32 to vector<8x384xf32>
    %203 = arith.addf %202, %201 : vector<8x384xf32>
    %204 = arith.divf %202, %203 : vector<8x384xf32>
    %205 = vector.extract_strided_slice %198 {offsets = [0, 384], sizes = [8, 128], strides = [1, 1]} : vector<8x512xf32> to vector<8x128xf32>
    %206 = math.tanh %205 : vector<8x128xf32>
    %207 = vector.extract_strided_slice %204 {offsets = [0, 128], sizes = [8, 128], strides = [1, 1]} : vector<8x384xf32> to vector<8x128xf32>
    %208 = arith.mulf %207, %143 : vector<8x128xf32>
    %209 = vector.extract_strided_slice %204 {offsets = [0, 0], sizes = [8, 128], strides = [1, 1]} : vector<8x384xf32> to vector<8x128xf32>
    %210 = arith.mulf %209, %206 : vector<8x128xf32>
    %211 = arith.addf %208, %210 : vector<8x128xf32>
    %212 = vector.extract_strided_slice %204 {offsets = [0, 256], sizes = [8, 128], strides = [1, 1]} : vector<8x384xf32> to vector<8x128xf32>
    %213 = math.tanh %211 : vector<8x128xf32>
    %214 = arith.mulf %212, %213 : vector<8x128xf32>
    %c4 = arith.constant 4 : index
    %c0_71 = arith.constant 0 : index
    %c0_72 = arith.constant 0 : index
    %215 = vector.load %arg0[%c4, %c0_71, %c0_72] : memref<8x8x512xf32, #tpu.memory_space<vmem>>, vector<1x8x512xf32>
    %216 = vector.shape_cast %215 : vector<1x8x512xf32> to vector<8x512xf32>
    %217 = arith.truncf %168 : vector<8x128xf32> to vector<8x128xbf16>
    %c0_73 = arith.constant 0 : index
    %c0_74 = arith.constant 0 : index
    %218 = vector.load %arg1[%c0_73, %c0_74] : memref<128x512xbf16, #tpu.memory_space<vmem>>, vector<128x512xbf16>
    %cst_75 = arith.constant dense<0.000000e+00> : vector<8x512xf32>
    %219 = tpu.matmul %217, %218, %cst_75 {dimension_numbers = #tpu.dot_dimension_numbers<[1], [0], [0], [1], [0, 0, 1, 1], [], []>} : vector<8x128xbf16>, vector<128x512xbf16>, vector<8x512xf32> -> vector<8x512xf32>
    %220 = arith.addf %216, %219 : vector<8x512xf32>
    %221 = vector.extract_strided_slice %220 {offsets = [0, 0], sizes = [8, 384], strides = [1, 1]} : vector<8x512xf32> to vector<8x384xf32>
    %222 = arith.negf %221 : vector<8x384xf32>
    %223 = math.exp %222 : vector<8x384xf32>
    %cst_76 = arith.constant 1.000000e+00 : f32
    %224 = vector.broadcast %cst_76 : f32 to vector<8x384xf32>
    %225 = arith.addf %224, %223 : vector<8x384xf32>
    %226 = arith.divf %224, %225 : vector<8x384xf32>
    %227 = vector.extract_strided_slice %220 {offsets = [0, 384], sizes = [8, 128], strides = [1, 1]} : vector<8x512xf32> to vector<8x128xf32>
    %228 = math.tanh %227 : vector<8x128xf32>
    %229 = vector.extract_strided_slice %226 {offsets = [0, 128], sizes = [8, 128], strides = [1, 1]} : vector<8x384xf32> to vector<8x128xf32>
    %230 = arith.mulf %229, %165 : vector<8x128xf32>
    %231 = vector.extract_strided_slice %226 {offsets = [0, 0], sizes = [8, 128], strides = [1, 1]} : vector<8x384xf32> to vector<8x128xf32>
    %232 = arith.mulf %231, %228 : vector<8x128xf32>
    %233 = arith.addf %230, %232 : vector<8x128xf32>
    %234 = vector.extract_strided_slice %226 {offsets = [0, 256], sizes = [8, 128], strides = [1, 1]} : vector<8x384xf32> to vector<8x128xf32>
    %235 = math.tanh %233 : vector<8x128xf32>
    %236 = arith.mulf %234, %235 : vector<8x128xf32>
    %237 = tpu.concatenate %168, %191 in 1 : vector<8x128xf32>, vector<8x128xf32> -> vector<8x256xf32>
    %238 = arith.truncf %237 : vector<8x256xf32> to vector<8x256xbf16>
    %c0_77 = arith.constant 0 : index
    %c0_78 = arith.constant 0 : index
    %239 = vector.load %arg2[%c0_77, %c0_78] : memref<256x512xbf16, #tpu.memory_space<vmem>>, vector<256x512xbf16>
    %cst_79 = arith.constant dense<0.000000e+00> : vector<8x512xf32>
    %240 = tpu.matmul %238, %239, %cst_79 {dimension_numbers = #tpu.dot_dimension_numbers<[1], [0], [0], [1], [0, 0, 1, 1], [], []>} : vector<8x256xbf16>, vector<256x512xbf16>, vector<8x512xf32> -> vector<8x512xf32>
    %c0_80 = arith.constant 0 : index
    %c0_81 = arith.constant 0 : index
    %241 = vector.load %arg4[%c0_80, %c0_81] : memref<1x512xf32, #tpu.memory_space<vmem>>, vector<1x512xf32>
    %242 = vector.broadcast %241 : vector<1x512xf32> to vector<8x512xf32>
    %243 = arith.addf %240, %242 : vector<8x512xf32>
    %244 = vector.extract_strided_slice %243 {offsets = [0, 0], sizes = [8, 384], strides = [1, 1]} : vector<8x512xf32> to vector<8x384xf32>
    %245 = arith.negf %244 : vector<8x384xf32>
    %246 = math.exp %245 : vector<8x384xf32>
    %cst_82 = arith.constant 1.000000e+00 : f32
    %247 = vector.broadcast %cst_82 : f32 to vector<8x384xf32>
    %248 = arith.addf %247, %246 : vector<8x384xf32>
    %249 = arith.divf %247, %248 : vector<8x384xf32>
    %250 = vector.extract_strided_slice %243 {offsets = [0, 384], sizes = [8, 128], strides = [1, 1]} : vector<8x512xf32> to vector<8x128xf32>
    %251 = math.tanh %250 : vector<8x128xf32>
    %252 = vector.extract_strided_slice %249 {offsets = [0, 128], sizes = [8, 128], strides = [1, 1]} : vector<8x384xf32> to vector<8x128xf32>
    %253 = arith.mulf %252, %188 : vector<8x128xf32>
    %254 = vector.extract_strided_slice %249 {offsets = [0, 0], sizes = [8, 128], strides = [1, 1]} : vector<8x384xf32> to vector<8x128xf32>
    %255 = arith.mulf %254, %251 : vector<8x128xf32>
    %256 = arith.addf %253, %255 : vector<8x128xf32>
    %257 = vector.extract_strided_slice %249 {offsets = [0, 256], sizes = [8, 128], strides = [1, 1]} : vector<8x384xf32> to vector<8x128xf32>
    %258 = math.tanh %256 : vector<8x128xf32>
    %259 = arith.mulf %257, %258 : vector<8x128xf32>
    %260 = tpu.concatenate %191, %214 in 1 : vector<8x128xf32>, vector<8x128xf32> -> vector<8x256xf32>
    %261 = arith.truncf %260 : vector<8x256xf32> to vector<8x256xbf16>
    %c0_83 = arith.constant 0 : index
    %c0_84 = arith.constant 0 : index
    %262 = vector.load %arg3[%c0_83, %c0_84] : memref<256x512xbf16, #tpu.memory_space<vmem>>, vector<256x512xbf16>
    %cst_85 = arith.constant dense<0.000000e+00> : vector<8x512xf32>
    %263 = tpu.matmul %261, %262, %cst_85 {dimension_numbers = #tpu.dot_dimension_numbers<[1], [0], [0], [1], [0, 0, 1, 1], [], []>} : vector<8x256xbf16>, vector<256x512xbf16>, vector<8x512xf32> -> vector<8x512xf32>
    %c0_86 = arith.constant 0 : index
    %c0_87 = arith.constant 0 : index
    %264 = vector.load %arg5[%c0_86, %c0_87] : memref<1x512xf32, #tpu.memory_space<vmem>>, vector<1x512xf32>
    %265 = vector.broadcast %264 : vector<1x512xf32> to vector<8x512xf32>
    %266 = arith.addf %263, %265 : vector<8x512xf32>
    %267 = vector.extract_strided_slice %266 {offsets = [0, 0], sizes = [8, 384], strides = [1, 1]} : vector<8x512xf32> to vector<8x384xf32>
    %268 = arith.negf %267 : vector<8x384xf32>
    %269 = math.exp %268 : vector<8x384xf32>
    %cst_88 = arith.constant 1.000000e+00 : f32
    %270 = vector.broadcast %cst_88 : f32 to vector<8x384xf32>
    %271 = arith.addf %270, %269 : vector<8x384xf32>
    %272 = arith.divf %270, %271 : vector<8x384xf32>
    %273 = vector.extract_strided_slice %266 {offsets = [0, 384], sizes = [8, 128], strides = [1, 1]} : vector<8x512xf32> to vector<8x128xf32>
    %274 = math.tanh %273 : vector<8x128xf32>
    %275 = vector.extract_strided_slice %272 {offsets = [0, 128], sizes = [8, 128], strides = [1, 1]} : vector<8x384xf32> to vector<8x128xf32>
    %276 = arith.mulf %275, %211 : vector<8x128xf32>
    %277 = vector.extract_strided_slice %272 {offsets = [0, 0], sizes = [8, 128], strides = [1, 1]} : vector<8x384xf32> to vector<8x128xf32>
    %278 = arith.mulf %277, %274 : vector<8x128xf32>
    %279 = arith.addf %276, %278 : vector<8x128xf32>
    %280 = vector.extract_strided_slice %272 {offsets = [0, 256], sizes = [8, 128], strides = [1, 1]} : vector<8x384xf32> to vector<8x128xf32>
    %281 = math.tanh %279 : vector<8x128xf32>
    %282 = arith.mulf %280, %281 : vector<8x128xf32>
    %c5 = arith.constant 5 : index
    %c0_89 = arith.constant 0 : index
    %c0_90 = arith.constant 0 : index
    %283 = vector.load %arg0[%c5, %c0_89, %c0_90] : memref<8x8x512xf32, #tpu.memory_space<vmem>>, vector<1x8x512xf32>
    %284 = vector.shape_cast %283 : vector<1x8x512xf32> to vector<8x512xf32>
    %285 = arith.truncf %236 : vector<8x128xf32> to vector<8x128xbf16>
    %c0_91 = arith.constant 0 : index
    %c0_92 = arith.constant 0 : index
    %286 = vector.load %arg1[%c0_91, %c0_92] : memref<128x512xbf16, #tpu.memory_space<vmem>>, vector<128x512xbf16>
    %cst_93 = arith.constant dense<0.000000e+00> : vector<8x512xf32>
    %287 = tpu.matmul %285, %286, %cst_93 {dimension_numbers = #tpu.dot_dimension_numbers<[1], [0], [0], [1], [0, 0, 1, 1], [], []>} : vector<8x128xbf16>, vector<128x512xbf16>, vector<8x512xf32> -> vector<8x512xf32>
    %288 = arith.addf %284, %287 : vector<8x512xf32>
    %289 = vector.extract_strided_slice %288 {offsets = [0, 0], sizes = [8, 384], strides = [1, 1]} : vector<8x512xf32> to vector<8x384xf32>
    %290 = arith.negf %289 : vector<8x384xf32>
    %291 = math.exp %290 : vector<8x384xf32>
    %cst_94 = arith.constant 1.000000e+00 : f32
    %292 = vector.broadcast %cst_94 : f32 to vector<8x384xf32>
    %293 = arith.addf %292, %291 : vector<8x384xf32>
    %294 = arith.divf %292, %293 : vector<8x384xf32>
    %295 = vector.extract_strided_slice %288 {offsets = [0, 384], sizes = [8, 128], strides = [1, 1]} : vector<8x512xf32> to vector<8x128xf32>
    %296 = math.tanh %295 : vector<8x128xf32>
    %297 = vector.extract_strided_slice %294 {offsets = [0, 128], sizes = [8, 128], strides = [1, 1]} : vector<8x384xf32> to vector<8x128xf32>
    %298 = arith.mulf %297, %233 : vector<8x128xf32>
    %299 = vector.extract_strided_slice %294 {offsets = [0, 0], sizes = [8, 128], strides = [1, 1]} : vector<8x384xf32> to vector<8x128xf32>
    %300 = arith.mulf %299, %296 : vector<8x128xf32>
    %301 = arith.addf %298, %300 : vector<8x128xf32>
    %302 = vector.extract_strided_slice %294 {offsets = [0, 256], sizes = [8, 128], strides = [1, 1]} : vector<8x384xf32> to vector<8x128xf32>
    %303 = math.tanh %301 : vector<8x128xf32>
    %304 = arith.mulf %302, %303 : vector<8x128xf32>
    %305 = tpu.concatenate %236, %259 in 1 : vector<8x128xf32>, vector<8x128xf32> -> vector<8x256xf32>
    %306 = arith.truncf %305 : vector<8x256xf32> to vector<8x256xbf16>
    %c0_95 = arith.constant 0 : index
    %c0_96 = arith.constant 0 : index
    %307 = vector.load %arg2[%c0_95, %c0_96] : memref<256x512xbf16, #tpu.memory_space<vmem>>, vector<256x512xbf16>
    %cst_97 = arith.constant dense<0.000000e+00> : vector<8x512xf32>
    %308 = tpu.matmul %306, %307, %cst_97 {dimension_numbers = #tpu.dot_dimension_numbers<[1], [0], [0], [1], [0, 0, 1, 1], [], []>} : vector<8x256xbf16>, vector<256x512xbf16>, vector<8x512xf32> -> vector<8x512xf32>
    %c0_98 = arith.constant 0 : index
    %c0_99 = arith.constant 0 : index
    %309 = vector.load %arg4[%c0_98, %c0_99] : memref<1x512xf32, #tpu.memory_space<vmem>>, vector<1x512xf32>
    %310 = vector.broadcast %309 : vector<1x512xf32> to vector<8x512xf32>
    %311 = arith.addf %308, %310 : vector<8x512xf32>
    %312 = vector.extract_strided_slice %311 {offsets = [0, 0], sizes = [8, 384], strides = [1, 1]} : vector<8x512xf32> to vector<8x384xf32>
    %313 = arith.negf %312 : vector<8x384xf32>
    %314 = math.exp %313 : vector<8x384xf32>
    %cst_100 = arith.constant 1.000000e+00 : f32
    %315 = vector.broadcast %cst_100 : f32 to vector<8x384xf32>
    %316 = arith.addf %315, %314 : vector<8x384xf32>
    %317 = arith.divf %315, %316 : vector<8x384xf32>
    %318 = vector.extract_strided_slice %311 {offsets = [0, 384], sizes = [8, 128], strides = [1, 1]} : vector<8x512xf32> to vector<8x128xf32>
    %319 = math.tanh %318 : vector<8x128xf32>
    %320 = vector.extract_strided_slice %317 {offsets = [0, 128], sizes = [8, 128], strides = [1, 1]} : vector<8x384xf32> to vector<8x128xf32>
    %321 = arith.mulf %320, %256 : vector<8x128xf32>
    %322 = vector.extract_strided_slice %317 {offsets = [0, 0], sizes = [8, 128], strides = [1, 1]} : vector<8x384xf32> to vector<8x128xf32>
    %323 = arith.mulf %322, %319 : vector<8x128xf32>
    %324 = arith.addf %321, %323 : vector<8x128xf32>
    %325 = vector.extract_strided_slice %317 {offsets = [0, 256], sizes = [8, 128], strides = [1, 1]} : vector<8x384xf32> to vector<8x128xf32>
    %326 = math.tanh %324 : vector<8x128xf32>
    %327 = arith.mulf %325, %326 : vector<8x128xf32>
    %328 = tpu.concatenate %259, %282 in 1 : vector<8x128xf32>, vector<8x128xf32> -> vector<8x256xf32>
    %329 = arith.truncf %328 : vector<8x256xf32> to vector<8x256xbf16>
    %c0_101 = arith.constant 0 : index
    %c0_102 = arith.constant 0 : index
    %330 = vector.load %arg3[%c0_101, %c0_102] : memref<256x512xbf16, #tpu.memory_space<vmem>>, vector<256x512xbf16>
    %cst_103 = arith.constant dense<0.000000e+00> : vector<8x512xf32>
    %331 = tpu.matmul %329, %330, %cst_103 {dimension_numbers = #tpu.dot_dimension_numbers<[1], [0], [0], [1], [0, 0, 1, 1], [], []>} : vector<8x256xbf16>, vector<256x512xbf16>, vector<8x512xf32> -> vector<8x512xf32>
    %c0_104 = arith.constant 0 : index
    %c0_105 = arith.constant 0 : index
    %332 = vector.load %arg5[%c0_104, %c0_105] : memref<1x512xf32, #tpu.memory_space<vmem>>, vector<1x512xf32>
    %333 = vector.broadcast %332 : vector<1x512xf32> to vector<8x512xf32>
    %334 = arith.addf %331, %333 : vector<8x512xf32>
    %335 = vector.extract_strided_slice %334 {offsets = [0, 0], sizes = [8, 384], strides = [1, 1]} : vector<8x512xf32> to vector<8x384xf32>
    %336 = arith.negf %335 : vector<8x384xf32>
    %337 = math.exp %336 : vector<8x384xf32>
    %cst_106 = arith.constant 1.000000e+00 : f32
    %338 = vector.broadcast %cst_106 : f32 to vector<8x384xf32>
    %339 = arith.addf %338, %337 : vector<8x384xf32>
    %340 = arith.divf %338, %339 : vector<8x384xf32>
    %341 = vector.extract_strided_slice %334 {offsets = [0, 384], sizes = [8, 128], strides = [1, 1]} : vector<8x512xf32> to vector<8x128xf32>
    %342 = math.tanh %341 : vector<8x128xf32>
    %343 = vector.extract_strided_slice %340 {offsets = [0, 128], sizes = [8, 128], strides = [1, 1]} : vector<8x384xf32> to vector<8x128xf32>
    %344 = arith.mulf %343, %279 : vector<8x128xf32>
    %345 = vector.extract_strided_slice %340 {offsets = [0, 0], sizes = [8, 128], strides = [1, 1]} : vector<8x384xf32> to vector<8x128xf32>
    %346 = arith.mulf %345, %342 : vector<8x128xf32>
    %347 = arith.addf %344, %346 : vector<8x128xf32>
    %348 = vector.extract_strided_slice %340 {offsets = [0, 256], sizes = [8, 128], strides = [1, 1]} : vector<8x384xf32> to vector<8x128xf32>
    %349 = math.tanh %347 : vector<8x128xf32>
    %350 = arith.mulf %348, %349 : vector<8x128xf32>
    %c6 = arith.constant 6 : index
    %c0_107 = arith.constant 0 : index
    %c0_108 = arith.constant 0 : index
    %351 = vector.load %arg0[%c6, %c0_107, %c0_108] : memref<8x8x512xf32, #tpu.memory_space<vmem>>, vector<1x8x512xf32>
    %352 = vector.shape_cast %351 : vector<1x8x512xf32> to vector<8x512xf32>
    %353 = arith.truncf %304 : vector<8x128xf32> to vector<8x128xbf16>
    %c0_109 = arith.constant 0 : index
    %c0_110 = arith.constant 0 : index
    %354 = vector.load %arg1[%c0_109, %c0_110] : memref<128x512xbf16, #tpu.memory_space<vmem>>, vector<128x512xbf16>
    %cst_111 = arith.constant dense<0.000000e+00> : vector<8x512xf32>
    %355 = tpu.matmul %353, %354, %cst_111 {dimension_numbers = #tpu.dot_dimension_numbers<[1], [0], [0], [1], [0, 0, 1, 1], [], []>} : vector<8x128xbf16>, vector<128x512xbf16>, vector<8x512xf32> -> vector<8x512xf32>
    %356 = arith.addf %352, %355 : vector<8x512xf32>
    %357 = vector.extract_strided_slice %356 {offsets = [0, 0], sizes = [8, 384], strides = [1, 1]} : vector<8x512xf32> to vector<8x384xf32>
    %358 = arith.negf %357 : vector<8x384xf32>
    %359 = math.exp %358 : vector<8x384xf32>
    %cst_112 = arith.constant 1.000000e+00 : f32
    %360 = vector.broadcast %cst_112 : f32 to vector<8x384xf32>
    %361 = arith.addf %360, %359 : vector<8x384xf32>
    %362 = arith.divf %360, %361 : vector<8x384xf32>
    %363 = vector.extract_strided_slice %356 {offsets = [0, 384], sizes = [8, 128], strides = [1, 1]} : vector<8x512xf32> to vector<8x128xf32>
    %364 = math.tanh %363 : vector<8x128xf32>
    %365 = vector.extract_strided_slice %362 {offsets = [0, 128], sizes = [8, 128], strides = [1, 1]} : vector<8x384xf32> to vector<8x128xf32>
    %366 = arith.mulf %365, %301 : vector<8x128xf32>
    %367 = vector.extract_strided_slice %362 {offsets = [0, 0], sizes = [8, 128], strides = [1, 1]} : vector<8x384xf32> to vector<8x128xf32>
    %368 = arith.mulf %367, %364 : vector<8x128xf32>
    %369 = arith.addf %366, %368 : vector<8x128xf32>
    %370 = vector.extract_strided_slice %362 {offsets = [0, 256], sizes = [8, 128], strides = [1, 1]} : vector<8x384xf32> to vector<8x128xf32>
    %371 = math.tanh %369 : vector<8x128xf32>
    %372 = arith.mulf %370, %371 : vector<8x128xf32>
    %373 = tpu.concatenate %304, %327 in 1 : vector<8x128xf32>, vector<8x128xf32> -> vector<8x256xf32>
    %374 = arith.truncf %373 : vector<8x256xf32> to vector<8x256xbf16>
    %c0_113 = arith.constant 0 : index
    %c0_114 = arith.constant 0 : index
    %375 = vector.load %arg2[%c0_113, %c0_114] : memref<256x512xbf16, #tpu.memory_space<vmem>>, vector<256x512xbf16>
    %cst_115 = arith.constant dense<0.000000e+00> : vector<8x512xf32>
    %376 = tpu.matmul %374, %375, %cst_115 {dimension_numbers = #tpu.dot_dimension_numbers<[1], [0], [0], [1], [0, 0, 1, 1], [], []>} : vector<8x256xbf16>, vector<256x512xbf16>, vector<8x512xf32> -> vector<8x512xf32>
    %c0_116 = arith.constant 0 : index
    %c0_117 = arith.constant 0 : index
    %377 = vector.load %arg4[%c0_116, %c0_117] : memref<1x512xf32, #tpu.memory_space<vmem>>, vector<1x512xf32>
    %378 = vector.broadcast %377 : vector<1x512xf32> to vector<8x512xf32>
    %379 = arith.addf %376, %378 : vector<8x512xf32>
    %380 = vector.extract_strided_slice %379 {offsets = [0, 0], sizes = [8, 384], strides = [1, 1]} : vector<8x512xf32> to vector<8x384xf32>
    %381 = arith.negf %380 : vector<8x384xf32>
    %382 = math.exp %381 : vector<8x384xf32>
    %cst_118 = arith.constant 1.000000e+00 : f32
    %383 = vector.broadcast %cst_118 : f32 to vector<8x384xf32>
    %384 = arith.addf %383, %382 : vector<8x384xf32>
    %385 = arith.divf %383, %384 : vector<8x384xf32>
    %386 = vector.extract_strided_slice %379 {offsets = [0, 384], sizes = [8, 128], strides = [1, 1]} : vector<8x512xf32> to vector<8x128xf32>
    %387 = math.tanh %386 : vector<8x128xf32>
    %388 = vector.extract_strided_slice %385 {offsets = [0, 128], sizes = [8, 128], strides = [1, 1]} : vector<8x384xf32> to vector<8x128xf32>
    %389 = arith.mulf %388, %324 : vector<8x128xf32>
    %390 = vector.extract_strided_slice %385 {offsets = [0, 0], sizes = [8, 128], strides = [1, 1]} : vector<8x384xf32> to vector<8x128xf32>
    %391 = arith.mulf %390, %387 : vector<8x128xf32>
    %392 = arith.addf %389, %391 : vector<8x128xf32>
    %393 = vector.extract_strided_slice %385 {offsets = [0, 256], sizes = [8, 128], strides = [1, 1]} : vector<8x384xf32> to vector<8x128xf32>
    %394 = math.tanh %392 : vector<8x128xf32>
    %395 = arith.mulf %393, %394 : vector<8x128xf32>
    %396 = tpu.concatenate %327, %350 in 1 : vector<8x128xf32>, vector<8x128xf32> -> vector<8x256xf32>
    %397 = arith.truncf %396 : vector<8x256xf32> to vector<8x256xbf16>
    %c0_119 = arith.constant 0 : index
    %c0_120 = arith.constant 0 : index
    %398 = vector.load %arg3[%c0_119, %c0_120] : memref<256x512xbf16, #tpu.memory_space<vmem>>, vector<256x512xbf16>
    %cst_121 = arith.constant dense<0.000000e+00> : vector<8x512xf32>
    %399 = tpu.matmul %397, %398, %cst_121 {dimension_numbers = #tpu.dot_dimension_numbers<[1], [0], [0], [1], [0, 0, 1, 1], [], []>} : vector<8x256xbf16>, vector<256x512xbf16>, vector<8x512xf32> -> vector<8x512xf32>
    %c0_122 = arith.constant 0 : index
    %c0_123 = arith.constant 0 : index
    %400 = vector.load %arg5[%c0_122, %c0_123] : memref<1x512xf32, #tpu.memory_space<vmem>>, vector<1x512xf32>
    %401 = vector.broadcast %400 : vector<1x512xf32> to vector<8x512xf32>
    %402 = arith.addf %399, %401 : vector<8x512xf32>
    %403 = vector.extract_strided_slice %402 {offsets = [0, 0], sizes = [8, 384], strides = [1, 1]} : vector<8x512xf32> to vector<8x384xf32>
    %404 = arith.negf %403 : vector<8x384xf32>
    %405 = math.exp %404 : vector<8x384xf32>
    %cst_124 = arith.constant 1.000000e+00 : f32
    %406 = vector.broadcast %cst_124 : f32 to vector<8x384xf32>
    %407 = arith.addf %406, %405 : vector<8x384xf32>
    %408 = arith.divf %406, %407 : vector<8x384xf32>
    %409 = vector.extract_strided_slice %402 {offsets = [0, 384], sizes = [8, 128], strides = [1, 1]} : vector<8x512xf32> to vector<8x128xf32>
    %410 = math.tanh %409 : vector<8x128xf32>
    %411 = vector.extract_strided_slice %408 {offsets = [0, 128], sizes = [8, 128], strides = [1, 1]} : vector<8x384xf32> to vector<8x128xf32>
    %412 = arith.mulf %411, %347 : vector<8x128xf32>
    %413 = vector.extract_strided_slice %408 {offsets = [0, 0], sizes = [8, 128], strides = [1, 1]} : vector<8x384xf32> to vector<8x128xf32>
    %414 = arith.mulf %413, %410 : vector<8x128xf32>
    %415 = arith.addf %412, %414 : vector<8x128xf32>
    %416 = vector.extract_strided_slice %408 {offsets = [0, 256], sizes = [8, 128], strides = [1, 1]} : vector<8x384xf32> to vector<8x128xf32>
    %417 = math.tanh %415 : vector<8x128xf32>
    %418 = arith.mulf %416, %417 : vector<8x128xf32>
    %c7 = arith.constant 7 : index
    %c0_125 = arith.constant 0 : index
    %c0_126 = arith.constant 0 : index
    %419 = vector.load %arg0[%c7, %c0_125, %c0_126] : memref<8x8x512xf32, #tpu.memory_space<vmem>>, vector<1x8x512xf32>
    %420 = vector.shape_cast %419 : vector<1x8x512xf32> to vector<8x512xf32>
    %421 = arith.truncf %372 : vector<8x128xf32> to vector<8x128xbf16>
    %c0_127 = arith.constant 0 : index
    %c0_128 = arith.constant 0 : index
    %422 = vector.load %arg1[%c0_127, %c0_128] : memref<128x512xbf16, #tpu.memory_space<vmem>>, vector<128x512xbf16>
    %cst_129 = arith.constant dense<0.000000e+00> : vector<8x512xf32>
    %423 = tpu.matmul %421, %422, %cst_129 {dimension_numbers = #tpu.dot_dimension_numbers<[1], [0], [0], [1], [0, 0, 1, 1], [], []>} : vector<8x128xbf16>, vector<128x512xbf16>, vector<8x512xf32> -> vector<8x512xf32>
    %424 = arith.addf %420, %423 : vector<8x512xf32>
    %425 = vector.extract_strided_slice %424 {offsets = [0, 0], sizes = [8, 384], strides = [1, 1]} : vector<8x512xf32> to vector<8x384xf32>
    %426 = arith.negf %425 : vector<8x384xf32>
    %427 = math.exp %426 : vector<8x384xf32>
    %cst_130 = arith.constant 1.000000e+00 : f32
    %428 = vector.broadcast %cst_130 : f32 to vector<8x384xf32>
    %429 = arith.addf %428, %427 : vector<8x384xf32>
    %430 = arith.divf %428, %429 : vector<8x384xf32>
    %431 = vector.extract_strided_slice %424 {offsets = [0, 384], sizes = [8, 128], strides = [1, 1]} : vector<8x512xf32> to vector<8x128xf32>
    %432 = math.tanh %431 : vector<8x128xf32>
    %433 = vector.extract_strided_slice %430 {offsets = [0, 128], sizes = [8, 128], strides = [1, 1]} : vector<8x384xf32> to vector<8x128xf32>
    %434 = arith.mulf %433, %369 : vector<8x128xf32>
    %435 = vector.extract_strided_slice %430 {offsets = [0, 0], sizes = [8, 128], strides = [1, 1]} : vector<8x384xf32> to vector<8x128xf32>
    %436 = arith.mulf %435, %432 : vector<8x128xf32>
    %437 = arith.addf %434, %436 : vector<8x128xf32>
    %438 = vector.extract_strided_slice %430 {offsets = [0, 256], sizes = [8, 128], strides = [1, 1]} : vector<8x384xf32> to vector<8x128xf32>
    %439 = math.tanh %437 : vector<8x128xf32>
    %440 = arith.mulf %438, %439 : vector<8x128xf32>
    %441 = tpu.concatenate %372, %395 in 1 : vector<8x128xf32>, vector<8x128xf32> -> vector<8x256xf32>
    %442 = arith.truncf %441 : vector<8x256xf32> to vector<8x256xbf16>
    %c0_131 = arith.constant 0 : index
    %c0_132 = arith.constant 0 : index
    %443 = vector.load %arg2[%c0_131, %c0_132] : memref<256x512xbf16, #tpu.memory_space<vmem>>, vector<256x512xbf16>
    %cst_133 = arith.constant dense<0.000000e+00> : vector<8x512xf32>
    %444 = tpu.matmul %442, %443, %cst_133 {dimension_numbers = #tpu.dot_dimension_numbers<[1], [0], [0], [1], [0, 0, 1, 1], [], []>} : vector<8x256xbf16>, vector<256x512xbf16>, vector<8x512xf32> -> vector<8x512xf32>
    %c0_134 = arith.constant 0 : index
    %c0_135 = arith.constant 0 : index
    %445 = vector.load %arg4[%c0_134, %c0_135] : memref<1x512xf32, #tpu.memory_space<vmem>>, vector<1x512xf32>
    %446 = vector.broadcast %445 : vector<1x512xf32> to vector<8x512xf32>
    %447 = arith.addf %444, %446 : vector<8x512xf32>
    %448 = vector.extract_strided_slice %447 {offsets = [0, 0], sizes = [8, 384], strides = [1, 1]} : vector<8x512xf32> to vector<8x384xf32>
    %449 = arith.negf %448 : vector<8x384xf32>
    %450 = math.exp %449 : vector<8x384xf32>
    %cst_136 = arith.constant 1.000000e+00 : f32
    %451 = vector.broadcast %cst_136 : f32 to vector<8x384xf32>
    %452 = arith.addf %451, %450 : vector<8x384xf32>
    %453 = arith.divf %451, %452 : vector<8x384xf32>
    %454 = vector.extract_strided_slice %447 {offsets = [0, 384], sizes = [8, 128], strides = [1, 1]} : vector<8x512xf32> to vector<8x128xf32>
    %455 = math.tanh %454 : vector<8x128xf32>
    %456 = vector.extract_strided_slice %453 {offsets = [0, 128], sizes = [8, 128], strides = [1, 1]} : vector<8x384xf32> to vector<8x128xf32>
    %457 = arith.mulf %456, %392 : vector<8x128xf32>
    %458 = vector.extract_strided_slice %453 {offsets = [0, 0], sizes = [8, 128], strides = [1, 1]} : vector<8x384xf32> to vector<8x128xf32>
    %459 = arith.mulf %458, %455 : vector<8x128xf32>
    %460 = arith.addf %457, %459 : vector<8x128xf32>
    %461 = vector.extract_strided_slice %453 {offsets = [0, 256], sizes = [8, 128], strides = [1, 1]} : vector<8x384xf32> to vector<8x128xf32>
    %462 = math.tanh %460 : vector<8x128xf32>
    %463 = arith.mulf %461, %462 : vector<8x128xf32>
    %464 = tpu.concatenate %395, %418 in 1 : vector<8x128xf32>, vector<8x128xf32> -> vector<8x256xf32>
    %465 = arith.truncf %464 : vector<8x256xf32> to vector<8x256xbf16>
    %c0_137 = arith.constant 0 : index
    %c0_138 = arith.constant 0 : index
    %466 = vector.load %arg3[%c0_137, %c0_138] : memref<256x512xbf16, #tpu.memory_space<vmem>>, vector<256x512xbf16>
    %cst_139 = arith.constant dense<0.000000e+00> : vector<8x512xf32>
    %467 = tpu.matmul %465, %466, %cst_139 {dimension_numbers = #tpu.dot_dimension_numbers<[1], [0], [0], [1], [0, 0, 1, 1], [], []>} : vector<8x256xbf16>, vector<256x512xbf16>, vector<8x512xf32> -> vector<8x512xf32>
    %c0_140 = arith.constant 0 : index
    %c0_141 = arith.constant 0 : index
    %468 = vector.load %arg5[%c0_140, %c0_141] : memref<1x512xf32, #tpu.memory_space<vmem>>, vector<1x512xf32>
    %469 = vector.broadcast %468 : vector<1x512xf32> to vector<8x512xf32>
    %470 = arith.addf %467, %469 : vector<8x512xf32>
    %471 = vector.extract_strided_slice %470 {offsets = [0, 0], sizes = [8, 384], strides = [1, 1]} : vector<8x512xf32> to vector<8x384xf32>
    %472 = arith.negf %471 : vector<8x384xf32>
    %473 = math.exp %472 : vector<8x384xf32>
    %cst_142 = arith.constant 1.000000e+00 : f32
    %474 = vector.broadcast %cst_142 : f32 to vector<8x384xf32>
    %475 = arith.addf %474, %473 : vector<8x384xf32>
    %476 = arith.divf %474, %475 : vector<8x384xf32>
    %477 = vector.extract_strided_slice %470 {offsets = [0, 384], sizes = [8, 128], strides = [1, 1]} : vector<8x512xf32> to vector<8x128xf32>
    %478 = math.tanh %477 : vector<8x128xf32>
    %479 = vector.extract_strided_slice %476 {offsets = [0, 128], sizes = [8, 128], strides = [1, 1]} : vector<8x384xf32> to vector<8x128xf32>
    %480 = arith.mulf %479, %415 : vector<8x128xf32>
    %481 = vector.extract_strided_slice %476 {offsets = [0, 0], sizes = [8, 128], strides = [1, 1]} : vector<8x384xf32> to vector<8x128xf32>
    %482 = arith.mulf %481, %478 : vector<8x128xf32>
    %483 = arith.addf %480, %482 : vector<8x128xf32>
    %484 = vector.extract_strided_slice %476 {offsets = [0, 256], sizes = [8, 128], strides = [1, 1]} : vector<8x384xf32> to vector<8x128xf32>
    %485 = math.tanh %483 : vector<8x128xf32>
    %486 = arith.mulf %484, %485 : vector<8x128xf32>
    %487 = tpu.concatenate %440, %463 in 1 : vector<8x128xf32>, vector<8x128xf32> -> vector<8x256xf32>
    %488 = arith.truncf %487 : vector<8x256xf32> to vector<8x256xbf16>
    %c0_143 = arith.constant 0 : index
    %c0_144 = arith.constant 0 : index
    %489 = vector.load %arg2[%c0_143, %c0_144] : memref<256x512xbf16, #tpu.memory_space<vmem>>, vector<256x512xbf16>
    %cst_145 = arith.constant dense<0.000000e+00> : vector<8x512xf32>
    %490 = tpu.matmul %488, %489, %cst_145 {dimension_numbers = #tpu.dot_dimension_numbers<[1], [0], [0], [1], [0, 0, 1, 1], [], []>} : vector<8x256xbf16>, vector<256x512xbf16>, vector<8x512xf32> -> vector<8x512xf32>
    %c0_146 = arith.constant 0 : index
    %c0_147 = arith.constant 0 : index
    %491 = vector.load %arg4[%c0_146, %c0_147] : memref<1x512xf32, #tpu.memory_space<vmem>>, vector<1x512xf32>
    %492 = vector.broadcast %491 : vector<1x512xf32> to vector<8x512xf32>
    %493 = arith.addf %490, %492 : vector<8x512xf32>
    %494 = vector.extract_strided_slice %493 {offsets = [0, 0], sizes = [8, 384], strides = [1, 1]} : vector<8x512xf32> to vector<8x384xf32>
    %495 = arith.negf %494 : vector<8x384xf32>
    %496 = math.exp %495 : vector<8x384xf32>
    %cst_148 = arith.constant 1.000000e+00 : f32
    %497 = vector.broadcast %cst_148 : f32 to vector<8x384xf32>
    %498 = arith.addf %497, %496 : vector<8x384xf32>
    %499 = arith.divf %497, %498 : vector<8x384xf32>
    %500 = vector.extract_strided_slice %493 {offsets = [0, 384], sizes = [8, 128], strides = [1, 1]} : vector<8x512xf32> to vector<8x128xf32>
    %501 = math.tanh %500 : vector<8x128xf32>
    %502 = vector.extract_strided_slice %499 {offsets = [0, 128], sizes = [8, 128], strides = [1, 1]} : vector<8x384xf32> to vector<8x128xf32>
    %503 = arith.mulf %502, %460 : vector<8x128xf32>
    %504 = vector.extract_strided_slice %499 {offsets = [0, 0], sizes = [8, 128], strides = [1, 1]} : vector<8x384xf32> to vector<8x128xf32>
    %505 = arith.mulf %504, %501 : vector<8x128xf32>
    %506 = arith.addf %503, %505 : vector<8x128xf32>
    %507 = vector.extract_strided_slice %499 {offsets = [0, 256], sizes = [8, 128], strides = [1, 1]} : vector<8x384xf32> to vector<8x128xf32>
    %508 = math.tanh %506 : vector<8x128xf32>
    %509 = arith.mulf %507, %508 : vector<8x128xf32>
    %510 = tpu.concatenate %463, %486 in 1 : vector<8x128xf32>, vector<8x128xf32> -> vector<8x256xf32>
    %511 = arith.truncf %510 : vector<8x256xf32> to vector<8x256xbf16>
    %c0_149 = arith.constant 0 : index
    %c0_150 = arith.constant 0 : index
    %512 = vector.load %arg3[%c0_149, %c0_150] : memref<256x512xbf16, #tpu.memory_space<vmem>>, vector<256x512xbf16>
    %cst_151 = arith.constant dense<0.000000e+00> : vector<8x512xf32>
    %513 = tpu.matmul %511, %512, %cst_151 {dimension_numbers = #tpu.dot_dimension_numbers<[1], [0], [0], [1], [0, 0, 1, 1], [], []>} : vector<8x256xbf16>, vector<256x512xbf16>, vector<8x512xf32> -> vector<8x512xf32>
    %c0_152 = arith.constant 0 : index
    %c0_153 = arith.constant 0 : index
    %514 = vector.load %arg5[%c0_152, %c0_153] : memref<1x512xf32, #tpu.memory_space<vmem>>, vector<1x512xf32>
    %515 = vector.broadcast %514 : vector<1x512xf32> to vector<8x512xf32>
    %516 = arith.addf %513, %515 : vector<8x512xf32>
    %517 = vector.extract_strided_slice %516 {offsets = [0, 0], sizes = [8, 384], strides = [1, 1]} : vector<8x512xf32> to vector<8x384xf32>
    %518 = arith.negf %517 : vector<8x384xf32>
    %519 = math.exp %518 : vector<8x384xf32>
    %cst_154 = arith.constant 1.000000e+00 : f32
    %520 = vector.broadcast %cst_154 : f32 to vector<8x384xf32>
    %521 = arith.addf %520, %519 : vector<8x384xf32>
    %522 = arith.divf %520, %521 : vector<8x384xf32>
    %523 = vector.extract_strided_slice %516 {offsets = [0, 384], sizes = [8, 128], strides = [1, 1]} : vector<8x512xf32> to vector<8x128xf32>
    %524 = math.tanh %523 : vector<8x128xf32>
    %525 = vector.extract_strided_slice %522 {offsets = [0, 128], sizes = [8, 128], strides = [1, 1]} : vector<8x384xf32> to vector<8x128xf32>
    %526 = arith.mulf %525, %483 : vector<8x128xf32>
    %527 = vector.extract_strided_slice %522 {offsets = [0, 0], sizes = [8, 128], strides = [1, 1]} : vector<8x384xf32> to vector<8x128xf32>
    %528 = arith.mulf %527, %524 : vector<8x128xf32>
    %529 = arith.addf %526, %528 : vector<8x128xf32>
    %530 = vector.extract_strided_slice %522 {offsets = [0, 256], sizes = [8, 128], strides = [1, 1]} : vector<8x384xf32> to vector<8x128xf32>
    %531 = math.tanh %529 : vector<8x128xf32>
    %532 = arith.mulf %530, %531 : vector<8x128xf32>
    %533 = tpu.concatenate %509, %532 in 1 : vector<8x128xf32>, vector<8x128xf32> -> vector<8x256xf32>
    %534 = arith.truncf %533 : vector<8x256xf32> to vector<8x256xbf16>
    %c0_155 = arith.constant 0 : index
    %c0_156 = arith.constant 0 : index
    %535 = vector.load %arg3[%c0_155, %c0_156] : memref<256x512xbf16, #tpu.memory_space<vmem>>, vector<256x512xbf16>
    %cst_157 = arith.constant dense<0.000000e+00> : vector<8x512xf32>
    %536 = tpu.matmul %534, %535, %cst_157 {dimension_numbers = #tpu.dot_dimension_numbers<[1], [0], [0], [1], [0, 0, 1, 1], [], []>} : vector<8x256xbf16>, vector<256x512xbf16>, vector<8x512xf32> -> vector<8x512xf32>
    %c0_158 = arith.constant 0 : index
    %c0_159 = arith.constant 0 : index
    %537 = vector.load %arg5[%c0_158, %c0_159] : memref<1x512xf32, #tpu.memory_space<vmem>>, vector<1x512xf32>
    %538 = vector.broadcast %537 : vector<1x512xf32> to vector<8x512xf32>
    %539 = arith.addf %536, %538 : vector<8x512xf32>
    %540 = vector.extract_strided_slice %539 {offsets = [0, 0], sizes = [8, 384], strides = [1, 1]} : vector<8x512xf32> to vector<8x384xf32>
    %541 = arith.negf %540 : vector<8x384xf32>
    %542 = math.exp %541 : vector<8x384xf32>
    %cst_160 = arith.constant 1.000000e+00 : f32
    %543 = vector.broadcast %cst_160 : f32 to vector<8x384xf32>
    %544 = arith.addf %543, %542 : vector<8x384xf32>
    %545 = arith.divf %543, %544 : vector<8x384xf32>
    %546 = vector.extract_strided_slice %539 {offsets = [0, 384], sizes = [8, 128], strides = [1, 1]} : vector<8x512xf32> to vector<8x128xf32>
    %547 = math.tanh %546 : vector<8x128xf32>
    %548 = vector.extract_strided_slice %545 {offsets = [0, 128], sizes = [8, 128], strides = [1, 1]} : vector<8x384xf32> to vector<8x128xf32>
    %549 = arith.mulf %548, %529 : vector<8x128xf32>
    %550 = vector.extract_strided_slice %545 {offsets = [0, 0], sizes = [8, 128], strides = [1, 1]} : vector<8x384xf32> to vector<8x128xf32>
    %551 = arith.mulf %550, %547 : vector<8x128xf32>
    %552 = arith.addf %549, %551 : vector<8x128xf32>
    %553 = vector.extract_strided_slice %545 {offsets = [0, 256], sizes = [8, 128], strides = [1, 1]} : vector<8x384xf32> to vector<8x128xf32>
    %554 = math.tanh %552 : vector<8x128xf32>
    %555 = arith.mulf %553, %554 : vector<8x128xf32>
    %c0_161 = arith.constant 0 : index
    %c0_162 = arith.constant 0 : index
    %c0_163 = arith.constant 0 : index
    %556 = vector.load %arg11[%c0_161, %c0_162, %c0_163] : memref<3x8x128xf32, #tpu.memory_space<vmem>>, vector<1x8x128xf32>
    %557 = vector.shape_cast %556 : vector<1x8x128xf32> to vector<8x128xf32>
    %558 = vector.shape_cast %440 : vector<8x128xf32> to vector<1x8x128xf32>
    tpu.vector_store %arg11[%c0_161, %c0_162, %c0_163], %558 {strides = array<i32>} : memref<3x8x128xf32, #tpu.memory_space<vmem>>, vector<1x8x128xf32>,
    %c0_164 = arith.constant 0 : index
    %c0_165 = arith.constant 0 : index
    %c0_166 = arith.constant 0 : index
    %559 = vector.load %arg12[%c0_164, %c0_165, %c0_166] : memref<3x8x128xf32, #tpu.memory_space<vmem>>, vector<1x8x128xf32>
    %560 = vector.shape_cast %559 : vector<1x8x128xf32> to vector<8x128xf32>
    %561 = vector.shape_cast %437 : vector<8x128xf32> to vector<1x8x128xf32>
    tpu.vector_store %arg12[%c0_164, %c0_165, %c0_166], %561 {strides = array<i32>} : memref<3x8x128xf32, #tpu.memory_space<vmem>>, vector<1x8x128xf32>,
    %c1_167 = arith.constant 1 : index
    %c0_168 = arith.constant 0 : index
    %c0_169 = arith.constant 0 : index
    %562 = vector.load %arg11[%c1_167, %c0_168, %c0_169] : memref<3x8x128xf32, #tpu.memory_space<vmem>>, vector<1x8x128xf32>
    %563 = vector.shape_cast %562 : vector<1x8x128xf32> to vector<8x128xf32>
    %564 = vector.shape_cast %509 : vector<8x128xf32> to vector<1x8x128xf32>
    tpu.vector_store %arg11[%c1_167, %c0_168, %c0_169], %564 {strides = array<i32>} : memref<3x8x128xf32, #tpu.memory_space<vmem>>, vector<1x8x128xf32>,
    %c1_170 = arith.constant 1 : index
    %c0_171 = arith.constant 0 : index
    %c0_172 = arith.constant 0 : index
    %565 = vector.load %arg12[%c1_170, %c0_171, %c0_172] : memref<3x8x128xf32, #tpu.memory_space<vmem>>, vector<1x8x128xf32>
    %566 = vector.shape_cast %565 : vector<1x8x128xf32> to vector<8x128xf32>
    %567 = vector.shape_cast %506 : vector<8x128xf32> to vector<1x8x128xf32>
    tpu.vector_store %arg12[%c1_170, %c0_171, %c0_172], %567 {strides = array<i32>} : memref<3x8x128xf32, #tpu.memory_space<vmem>>, vector<1x8x128xf32>,
    %c2_173 = arith.constant 2 : index
    %c0_174 = arith.constant 0 : index
    %c0_175 = arith.constant 0 : index
    %568 = vector.load %arg11[%c2_173, %c0_174, %c0_175] : memref<3x8x128xf32, #tpu.memory_space<vmem>>, vector<1x8x128xf32>
    %569 = vector.shape_cast %568 : vector<1x8x128xf32> to vector<8x128xf32>
    %570 = vector.shape_cast %555 : vector<8x128xf32> to vector<1x8x128xf32>
    tpu.vector_store %arg11[%c2_173, %c0_174, %c0_175], %570 {strides = array<i32>} : memref<3x8x128xf32, #tpu.memory_space<vmem>>, vector<1x8x128xf32>,
    %c2_176 = arith.constant 2 : index
    %c0_177 = arith.constant 0 : index
    %c0_178 = arith.constant 0 : index
    %571 = vector.load %arg12[%c2_176, %c0_177, %c0_178] : memref<3x8x128xf32, #tpu.memory_space<vmem>>, vector<1x8x128xf32>
    %572 = vector.shape_cast %571 : vector<1x8x128xf32> to vector<8x128xf32>
    %573 = vector.shape_cast %552 : vector<8x128xf32> to vector<1x8x128xf32>
    tpu.vector_store %arg12[%c2_176, %c0_177, %c0_178], %573 {strides = array<i32>} : memref<3x8x128xf32, #tpu.memory_space<vmem>>, vector<1x8x128xf32>,
    %574 = arith.truncf %555 : vector<8x128xf32> to vector<8x128xbf16>
    %c0_179 = arith.constant 0 : index
    %c0_180 = arith.constant 0 : index
    %575 = vector.load %arg8[%c0_179, %c0_180] : memref<128x128xbf16, #tpu.memory_space<vmem>>, vector<128x128xbf16>
    %cst_181 = arith.constant dense<0.000000e+00> : vector<8x128xf32>
    %576 = tpu.matmul %574, %575, %cst_181 {dimension_numbers = #tpu.dot_dimension_numbers<[1], [0], [0], [1], [0, 0, 1, 1], [], []>} : vector<8x128xbf16>, vector<128x128xbf16>, vector<8x128xf32> -> vector<8x128xf32>
    %c0_182 = arith.constant 0 : index
    %c0_183 = arith.constant 0 : index
    %577 = vector.load %arg9[%c0_182, %c0_183] : memref<1x128xf32, #tpu.memory_space<vmem>>, vector<1x128xf32>
    %578 = vector.broadcast %577 : vector<1x128xf32> to vector<8x128xf32>
    %579 = arith.addf %576, %578 : vector<8x128xf32>
    %c0_184 = arith.constant 0 : index
    %c0_185 = arith.constant 0 : index
    %580 = vector.load %arg10[%c0_184, %c0_185] : memref<8x128xf32, #tpu.memory_space<vmem>>, vector<8x128xf32>
    tpu.vector_store %arg10[%c0_184, %c0_185], %579 {strides = array<i32>} : memref<8x128xf32, #tpu.memory_space<vmem>>, vector<8x128xf32>,
    return
  }
}

</mosaic_0001>

<llo_original>
// kernel: sentiment_lstm_forward.1
$region0: #{sentiment_lstm_forward.1}
  #allocation0 [shape = 'u32[]', space=smem, size = 0x4, offset = 0x4, fixed_abs, tag = 'smem constant byte address 0x4 - core index']
  #allocation1 [shape = 'u32[72,128]{1,0:T(1,128)}', space=vmem, size = 0x9000, scoped, tag = 'internal scratch']
  %s0 = inlined_call_operand.vmem [shape: f32[8,8,512], index: 0, kind: input, shape index: {}]
  %s1 = inlined_call_operand.vmem [shape: bf16[128,512], index: 1, kind: input, shape index: {}]
  %s2 = inlined_call_operand.vmem [shape: bf16[256,512], index: 2, kind: input, shape index: {}]
  %s3 = inlined_call_operand.vmem [shape: bf16[256,512], index: 3, kind: input, shape index: {}]
  %s4 = inlined_call_operand.vmem [shape: f32[1,512], index: 4, kind: input, shape index: {}]
  %s5 = inlined_call_operand.vmem [shape: f32[1,512], index: 5, kind: input, shape index: {}]
  %s6 = inlined_call_operand.vmem [shape: f32[3,8,128], index: 6, kind: input, shape index: {}]
  %s7 = inlined_call_operand.vmem [shape: f32[3,8,128], index: 7, kind: input, shape index: {}]
  %s8 = inlined_call_operand.vmem [shape: bf16[128,128], index: 8, kind: input, shape index: {}]
  %s9 = inlined_call_operand.vmem [shape: f32[1,128], index: 9, kind: input, shape index: {}]
  %s10 = inlined_call_operand.vmem [shape: f32[8,128], index: 10, kind: output, shape index: {0}]
  %s11 = inlined_call_operand.hbm [shape: f32[3,8,128], index: 11, kind: output, shape index: {1}]
  %s12 = inlined_call_operand.hbm [shape: f32[3,8,128], index: 12, kind: output, shape index: {2}]
  %13 = xla_tuple %s10, %s11, %s12
  %s14 = sld [smem:[#allocation0]]
  $region66: #{sentiment_lstm_forward.1} parent=0
    _
  %s16 = ssub.s32 1, %s14
  %s17 = scalar_select 0, %s16, %s14
  $region1: #{sentiment_lstm_forward.1} parent=0
    #allocation2 [shape = 'u8[12288]{0}', space=vmem, size = 0x3000, scoped, tag = 'output window, operand 1, single buffered']
    #allocation3 [shape = 's32[1]{0}', space=sflag, size = 0x4, scoped, tag = 'scoped memory for sentiment_lstm_forward.1']
    #allocation4 [shape = 'u8[12288]{0}', space=vmem, size = 0x3000, scoped, tag = 'output window, operand 2, single buffered']
    #allocation5 [shape = 's32[1]{0}', space=sflag, size = 0x4, scoped, tag = 'scoped memory for sentiment_lstm_forward.1']
    %18 = vsyncpa [#allocation3], 0
    %19 = vsyncpa [#allocation5], 0
    // Predicated region
    $region2: #{sentiment_lstm_forward.1} parent=1 // pred_check
      _
    $region3: #{sentiment_lstm_forward.1} parent=1 // pred_check_branch
      %21 = sbr.rel (0) target = $region5
    $region4: #{sentiment_lstm_forward.1} parent=1 // pred_region
      _
    $region5: #{sentiment_lstm_forward.1} parent=1 // pred_fallthru
      _
    // Predicated region
    $region6: #{sentiment_lstm_forward.1} parent=1 // pred_check
      _
    $region7: #{sentiment_lstm_forward.1} parent=1 // pred_check_branch
      %23 = sbr.rel (0) target = $region9
    $region8: #{sentiment_lstm_forward.1} parent=1 // pred_region
      _
    $region9: #{sentiment_lstm_forward.1} parent=1 // pred_fallthru
      _
    // Predicated region
    $region10: #{sentiment_lstm_forward.1} parent=1 // pred_check
      _
    $region11: #{sentiment_lstm_forward.1} parent=1 // pred_check_branch
      %25 = sbr.rel (0) target = $region13
    $region12: #{sentiment_lstm_forward.1} parent=1 // pred_region
      _
    $region13: #{sentiment_lstm_forward.1} parent=1 // pred_fallthru
      _
    // Predicated region
    $region14: #{sentiment_lstm_forward.1} parent=1 // pred_check
      _
    $region15: #{sentiment_lstm_forward.1} parent=1 // pred_check_branch
      %27 = sbr.rel (0) target = $region17
    $region16: #{sentiment_lstm_forward.1} parent=1 // pred_region
      _
    $region17: #{sentiment_lstm_forward.1} parent=1 // pred_fallthru
      _
    // Predicated region
    $region18: #{sentiment_lstm_forward.1} parent=1 // pred_check
      _
    $region19: #{sentiment_lstm_forward.1} parent=1 // pred_check_branch
      %29 = sbr.rel (0) target = $region21
    $region20: #{sentiment_lstm_forward.1} parent=1 // pred_region
      _
    $region21: #{sentiment_lstm_forward.1} parent=1 // pred_fallthru
      _
    // Predicated region
    $region22: #{sentiment_lstm_forward.1} parent=1 // pred_check
      _
    $region23: #{sentiment_lstm_forward.1} parent=1 // pred_check_branch
      %31 = sbr.rel (0) target = $region25
    $region24: #{sentiment_lstm_forward.1} parent=1 // pred_region
      _
    $region25: #{sentiment_lstm_forward.1} parent=1 // pred_fallthru
      _
    // Predicated region
    $region26: #{sentiment_lstm_forward.1} parent=1 // pred_check
      _
    $region27: #{sentiment_lstm_forward.1} parent=1 // pred_check_branch
      %33 = sbr.rel (0) target = $region29
    $region28: #{sentiment_lstm_forward.1} parent=1 // pred_region
      _
    $region29: #{sentiment_lstm_forward.1} parent=1 // pred_fallthru
      _
    // Predicated region
    $region30: #{sentiment_lstm_forward.1} parent=1 // pred_check
      _
    $region31: #{sentiment_lstm_forward.1} parent=1 // pred_check_branch
      %35 = sbr.rel (0) target = $region33
    $region32: #{sentiment_lstm_forward.1} parent=1 // pred_region
      _
    $region33: #{sentiment_lstm_forward.1} parent=1 // pred_fallthru
      _
    // Predicated region
    $region34: #{sentiment_lstm_forward.1} parent=1 // pred_check
      _
    $region35: #{sentiment_lstm_forward.1} parent=1 // pred_check_branch
      %37 = sbr.rel (0) target = $region37
    $region36: #{sentiment_lstm_forward.1} parent=1 // pred_region
      _
    $region37: #{sentiment_lstm_forward.1} parent=1 // pred_fallthru
      _
    // Predicated region
    $region38: #{sentiment_lstm_forward.1} parent=1 // pred_check
      _
    $region39: #{sentiment_lstm_forward.1} parent=1 // pred_check_branch
      %39 = sbr.rel (0) target = $region41
    $region40: #{sentiment_lstm_forward.1} parent=1 // pred_region
      _
    $region41: #{sentiment_lstm_forward.1} parent=1 // pred_fallthru
      _
    %v40 = vld [vmem:[%s6] sm:$0xff]
    %s41 = scalar_lea.vmem %s6, 8
    %v42 = vld [vmem:[%s41] sm:$0xff]
    %s43 = scalar_lea.vmem %s6, 16
    %v44 = vld [vmem:[%s43] sm:$0xff]
    %v45 = vld [vmem:[%s7] sm:$0xff]
    %s46 = scalar_lea.vmem %s7, 8
    %v47 = vld [vmem:[%s46] sm:$0xff]
    %s48 = scalar_lea.vmem %s7, 16
    %v49 = vld [vmem:[%s48] sm:$0xff]
    %v50 = vld [vmem:[%s0] sm:$0xff]
    %v51 = vld [vmem:[%s0 + $0x8] sm:$0xff]
    %v52 = vld [vmem:[%s0 + $0x10] sm:$0xff]
    %v53 = vld [vmem:[%s0 + $0x18] sm:$0xff]
    %v54 = vpack.c.bf16 %v40, %v40
    %v55 = vld [vmem:[%s1] sm:$0xff]
    %v56 = vld [vmem:[%s1 + $0x8] sm:$0xff]
    %v57 = vld [vmem:[%s1 + $0x10] sm:$0xff]
    %v58 = vld [vmem:[%s1 + $0x18] sm:$0xff]
    %v59 = vld [vmem:[%s1 + $0x20] sm:$0xff]
    %v60 = vld [vmem:[%s1 + $0x28] sm:$0xff]
    %v61 = vld [vmem:[%s1 + $0x30] sm:$0xff]
    %v62 = vld [vmem:[%s1 + $0x38] sm:$0xff]
    %v63 = vld [vmem:[%s1 + $0x40] sm:$0xff]
    %v64 = vld [vmem:[%s1 + $0x48] sm:$0xff]
    %v65 = vld [vmem:[%s1 + $0x50] sm:$0xff]
    %v66 = vld [vmem:[%s1 + $0x58] sm:$0xff]
    %v67 = vld [vmem:[%s1 + $0x60] sm:$0xff]
    %v68 = vld [vmem:[%s1 + $0x68] sm:$0xff]
    %v69 = vld [vmem:[%s1 + $0x70] sm:$0xff]
    %v70 = vld [vmem:[%s1 + $0x78] sm:$0xff]
    %v71 = vld [vmem:[%s1 + $0x80] sm:$0xff]
    %v72 = vld [vmem:[%s1 + $0x88] sm:$0xff]
    %v73 = vld [vmem:[%s1 + $0x90] sm:$0xff]
    %v74 = vld [vmem:[%s1 + $0x98] sm:$0xff]
    %v75 = vld [vmem:[%s1 + $0xa0] sm:$0xff]
    %v76 = vld [vmem:[%s1 + $0xa8] sm:$0xff]
    %v77 = vld [vmem:[%s1 + $0xb0] sm:$0xff]
    %v78 = vld [vmem:[%s1 + $0xb8] sm:$0xff]
    %v79 = vld [vmem:[%s1 + $0xc0] sm:$0xff]
    %v80 = vld [vmem:[%s1 + $0xc8] sm:$0xff]
    %v81 = vld [vmem:[%s1 + $0xd0] sm:$0xff]
    %v82 = vld [vmem:[%s1 + $0xd8] sm:$0xff]
    %v83 = vld [vmem:[%s1 + $0xe0] sm:$0xff]
    %v84 = vld [vmem:[%s1 + $0xe8] sm:$0xff]
    %v85 = vld [vmem:[%s1 + $0xf0] sm:$0xff]
    %v86 = vld [vmem:[%s1 + $0xf8] sm:$0xff]
    %v119 = vunpack.c.l.b16 %v55
    %v120 = vunpack.c.h.b16 %v55
    %v121 = vunpack.c.l.b16 %v56
    %v122 = vunpack.c.h.b16 %v56
    %v123 = vunpack.c.l.b16 %v57
    %v124 = vunpack.c.h.b16 %v57
    %v125 = vunpack.c.l.b16 %v58
    %v126 = vunpack.c.h.b16 %v58
    %v127 = vunpack.c.l.b16 %v59
    %v128 = vunpack.c.h.b16 %v59
    %v129 = vunpack.c.l.b16 %v60
    %v130 = vunpack.c.h.b16 %v60
    %v131 = vunpack.c.l.b16 %v61
    %v132 = vunpack.c.h.b16 %v61
    %v133 = vunpack.c.l.b16 %v62
    %v134 = vunpack.c.h.b16 %v62
    %v135 = vunpack.c.l.b16 %v63
    %v136 = vunpack.c.h.b16 %v63
    %v137 = vunpack.c.l.b16 %v64
    %v138 = vunpack.c.h.b16 %v64
    %v139 = vunpack.c.l.b16 %v65
    %v140 = vunpack.c.h.b16 %v65
    %v141 = vunpack.c.l.b16 %v66
    %v142 = vunpack.c.h.b16 %v66
    %v143 = vunpack.c.l.b16 %v67
    %v144 = vunpack.c.h.b16 %v67
    %v145 = vunpack.c.l.b16 %v68
    %v146 = vunpack.c.h.b16 %v68
    %v147 = vunpack.c.l.b16 %v69
    %v148 = vunpack.c.h.b16 %v69
    %v149 = vunpack.c.l.b16 %v70
    %v150 = vunpack.c.h.b16 %v70
    %v151 = vunpack.c.l.b16 %v71
    %v152 = vunpack.c.h.b16 %v71
    %v153 = vunpack.c.l.b16 %v72
    %v154 = vunpack.c.h.b16 %v72
    %v155 = vunpack.c.l.b16 %v73
    %v156 = vunpack.c.h.b16 %v73
    %v157 = vunpack.c.l.b16 %v74
    %v158 = vunpack.c.h.b16 %v74
    %v159 = vunpack.c.l.b16 %v75
    %v160 = vunpack.c.h.b16 %v75
    %v161 = vunpack.c.l.b16 %v76
    %v162 = vunpack.c.h.b16 %v76
    %v163 = vunpack.c.l.b16 %v77
    %v164 = vunpack.c.h.b16 %v77
    %v165 = vunpack.c.l.b16 %v78
    %v166 = vunpack.c.h.b16 %v78
    %v167 = vunpack.c.l.b16 %v79
    %v168 = vunpack.c.h.b16 %v79
    %v169 = vunpack.c.l.b16 %v80
    %v170 = vunpack.c.h.b16 %v80
    %v171 = vunpack.c.l.b16 %v81
    %v172 = vunpack.c.h.b16 %v81
    %v173 = vunpack.c.l.b16 %v82
    %v174 = vunpack.c.h.b16 %v82
    %v175 = vunpack.c.l.b16 %v83
    %v176 = vunpack.c.h.b16 %v83
    %v177 = vunpack.c.l.b16 %v84
    %v178 = vunpack.c.h.b16 %v84
    %v179 = vunpack.c.l.b16 %v85
    %v180 = vunpack.c.h.b16 %v85
    %v181 = vunpack.c.l.b16 %v86
    %v182 = vunpack.c.h.b16 %v86
    %v183 = vpack.c.b16 %v123, %v119
    %v184 = vpack.c.b16 %v124, %v120
    %v185 = vpack.c.b16 %v125, %v121
    %v186 = vpack.c.b16 %v126, %v122
    %v187 = vpack.c.b16 %v131, %v127
    %v188 = vpack.c.b16 %v132, %v128
    %v189 = vpack.c.b16 %v133, %v129
    %v190 = vpack.c.b16 %v134, %v130
    %v191 = vpack.c.b16 %v139, %v135
    %v192 = vpack.c.b16 %v140, %v136
    %v193 = vpack.c.b16 %v141, %v137
    %v194 = vpack.c.b16 %v142, %v138
    %v195 = vpack.c.b16 %v147, %v143
    %v196 = vpack.c.b16 %v148, %v144
    %v197 = vpack.c.b16 %v149, %v145
    %v198 = vpack.c.b16 %v150, %v146
    %v199 = vpack.c.b16 %v155, %v151
    %v200 = vpack.c.b16 %v156, %v152
    %v201 = vpack.c.b16 %v157, %v153
    %v202 = vpack.c.b16 %v158, %v154
    %v203 = vpack.c.b16 %v163, %v159
    %v204 = vpack.c.b16 %v164, %v160
    %v205 = vpack.c.b16 %v165, %v161
    %v206 = vpack.c.b16 %v166, %v162
    %v207 = vpack.c.b16 %v171, %v167
    %v208 = vpack.c.b16 %v172, %v168
    %v209 = vpack.c.b16 %v173, %v169
    %v210 = vpack.c.b16 %v174, %v170
    %v211 = vpack.c.b16 %v179, %v175
    %v212 = vpack.c.b16 %v180, %v176
    %v213 = vpack.c.b16 %v181, %v177
    %v214 = vpack.c.b16 %v182, %v178
    %247 = vmatpush.bf16.msra.mxu0 %v211
    %248 = vmatpush.bf16.msra.mxu0 %v207
    %249 = vmatpush.bf16.msra.mxu0 %v203
    %250 = vmatpush.bf16.msra.mxu0 %v199
    %251 = vmatpush.bf16.msra.mxu0 %v195
    %252 = vmatpush.bf16.msra.mxu0 %v191
    %253 = vmatpush.bf16.msra.mxu0 %v187
    %254 = vmatpush.bf16.msra.mxu0 %v183
    %255 = vmatmul.bf16.gmra.mxu0 %v54
    %v256 = vpop.f32.mrf.mxu0
    %v257 = vadd.f32 0.0, %v256
    %v258 = vpop.f32.mrf.mxu0
    %259 = vdwg.mxu0
    %260 = vmatpush.bf16.msra.mxu0 %v212
    %261 = vmatpush.bf16.msra.mxu0 %v208
    %262 = vmatpush.bf16.msra.mxu0 %v204
    %263 = vmatpush.bf16.msra.mxu0 %v200
    %264 = vmatpush.bf16.msra.mxu0 %v196
    %265 = vmatpush.bf16.msra.mxu0 %v192
    %266 = vmatpush.bf16.msra.mxu0 %v188
    %267 = vmatpush.bf16.msra.mxu0 %v184
    %268 = vmatmul.bf16.gmra.mxu0 %v54
    %v269 = vpop.f32.mrf.mxu0
    %v270 = vadd.f32 0.0, %v269
    %v271 = vpop.f32.mrf.mxu0
    %272 = vdwg.mxu0
    %273 = vmatpush.bf16.msra.mxu0 %v213
    %274 = vmatpush.bf16.msra.mxu0 %v209
    %275 = vmatpush.bf16.msra.mxu0 %v205
    %276 = vmatpush.bf16.msra.mxu0 %v201
    %277 = vmatpush.bf16.msra.mxu0 %v197
    %278 = vmatpush.bf16.msra.mxu0 %v193
    %279 = vmatpush.bf16.msra.mxu0 %v189
    %280 = vmatpush.bf16.msra.mxu0 %v185
    %281 = vmatmul.bf16.gmra.mxu0 %v54
    %v282 = vpop.f32.mrf.mxu0
    %v283 = vadd.f32 0.0, %v282
    %v284 = vpop.f32.mrf.mxu0
    %285 = vdwg.mxu0
    %286 = vmatpush.bf16.msra.mxu0 %v214
    %287 = vmatpush.bf16.msra.mxu0 %v210
    %288 = vmatpush.bf16.msra.mxu0 %v206
    %289 = vmatpush.bf16.msra.mxu0 %v202
    %290 = vmatpush.bf16.msra.mxu0 %v198
    %291 = vmatpush.bf16.msra.mxu0 %v194
    %292 = vmatpush.bf16.msra.mxu0 %v190
    %293 = vmatpush.bf16.msra.mxu0 %v186
    %294 = vmatmul.bf16.gmra.mxu0 %v54
    %v295 = vpop.f32.mrf.mxu0
    %v296 = vadd.f32 0.0, %v295
    %v297 = vpop.f32.mrf.mxu0
    %298 = vdwg.mxu0
    %v299 = vadd.f32 %v50, %v257
    %v300 = vadd.f32 %v51, %v270
    %v301 = vadd.f32 %v52, %v283
    %v302 = vadd.f32 %v53, %v296
    %v303 = vxor.u32 %v299, 2147483648
    %v304 = vxor.u32 %v300, 2147483648
    %v305 = vxor.u32 %v301, 2147483648
    %v306 = vmul.f32 %v303, 1.442695
    %v307 = vpow.pop %v306
    %v308 = vmul.f32 %v304, 1.442695
    %v309 = vpow.pop %v308
    %v310 = vmul.f32 %v305, 1.442695
    %v311 = vpow.pop %v310
    %v312 = vadd.f32 %v307, 1.0
    %v313 = vadd.f32 %v309, 1.0
    %v314 = vadd.f32 %v311, 1.0
    %v315 = vrcp.pop %v312
    %v316 = vmul.f32 %v312, %v315
    %v317 = vsub.f32 1.0, %v316
    %v318 = vmul.f32 %v315, %v317
    %v319 = vadd.f32 %v315, %v318
    %vm320 = vweird.f32 %v312
    %vm321 = vweird.f32 %v315
    %vm322 = vmor %vm320, %vm321
    %v323 = vsel %vm322, %v315, %v319
    %v324 = vand.u32 2147483647, %v312
    %vm325 = vcmp.eq.f32.partialorder %v324, 8.507059e+37
    %v326 = vand.u32 %v312, 2147483648
    %v327 = vor.u32 1.1754944e-38, %v326
    %v328 = vsel %vm325, %v327, %v323
    %v329 = vmul.f32 1.0, %v328
    %v330 = vrcp.pop %v313
    %v331 = vmul.f32 %v313, %v330
    %v332 = vsub.f32 1.0, %v331
    %v333 = vmul.f32 %v330, %v332
    %v334 = vadd.f32 %v330, %v333
    %vm335 = vweird.f32 %v313
    %vm336 = vweird.f32 %v330
    %vm337 = vmor %vm335, %vm336
    %v338 = vsel %vm337, %v330, %v334
    %v339 = vand.u32 2147483647, %v313
    %vm340 = vcmp.eq.f32.partialorder %v339, 8.507059e+37
    %v341 = vand.u32 %v313, 2147483648
    %v342 = vor.u32 1.1754944e-38, %v341
    %v343 = vsel %vm340, %v342, %v338
    %v344 = vmul.f32 1.0, %v343
    %v345 = vrcp.pop %v314
    %v346 = vmul.f32 %v314, %v345
    %v347 = vsub.f32 1.0, %v346
    %v348 = vmul.f32 %v345, %v347
    %v349 = vadd.f32 %v345, %v348
    %vm350 = vweird.f32 %v314
    %vm351 = vweird.f32 %v345
    %vm352 = vmor %vm350, %vm351
    %v353 = vsel %vm352, %v345, %v349
    %v354 = vand.u32 2147483647, %v314
    %vm355 = vcmp.eq.f32.partialorder %v354, 8.507059e+37
    %v356 = vand.u32 %v314, 2147483648
    %v357 = vor.u32 1.1754944e-38, %v356
    %v358 = vsel %vm355, %v357, %v353
    %v359 = vmul.f32 1.0, %v358
    %v360 = vtanh.pop %v302
    %v361 = vmul.f32 %v344, %v45
    %v362 = vmul.f32 %v329, %v360
    %v363 = vadd.f32 %v361, %v362
    %v364 = vtanh.pop %v363
    %v365 = vmul.f32 %v359, %v364
    %s366 = scalar_lea.vmem %s0, 32
    %v367 = vld [vmem:[%s366] sm:$0xff]
    %v368 = vld [vmem:[%s366 + $0x8] sm:$0xff]
    %v369 = vld [vmem:[%s366 + $0x10] sm:$0xff]
    %v370 = vld [vmem:[%s366 + $0x18] sm:$0xff]
    %v371 = vpack.c.bf16 %v365, %v365
    %372 = vmatpush.bf16.msra.mxu0 %v211
    %373 = vmatpush.bf16.msra.mxu0 %v207
    %374 = vmatpush.bf16.msra.mxu0 %v203
    %375 = vmatpush.bf16.msra.mxu0 %v199
    %376 = vmatpush.bf16.msra.mxu0 %v195
    %377 = vmatpush.bf16.msra.mxu0 %v191
    %378 = vmatpush.bf16.msra.mxu0 %v187
    %379 = vmatpush.bf16.msra.mxu0 %v183
    %380 = vmatmul.bf16.gmra.mxu0 %v371
    %v381 = vpop.f32.mrf.mxu0
    %v382 = vadd.f32 0.0, %v381
    %v383 = vpop.f32.mrf.mxu0
    %384 = vdwg.mxu0
    %385 = vmatpush.bf16.msra.mxu0 %v212
    %386 = vmatpush.bf16.msra.mxu0 %v208
    %387 = vmatpush.bf16.msra.mxu0 %v204
    %388 = vmatpush.bf16.msra.mxu0 %v200
    %389 = vmatpush.bf16.msra.mxu0 %v196
    %390 = vmatpush.bf16.msra.mxu0 %v192
    %391 = vmatpush.bf16.msra.mxu0 %v188
    %392 = vmatpush.bf16.msra.mxu0 %v184
    %393 = vmatmul.bf16.gmra.mxu0 %v371
    %v394 = vpop.f32.mrf.mxu0
    %v395 = vadd.f32 0.0, %v394
    %v396 = vpop.f32.mrf.mxu0
    %397 = vdwg.mxu0
    %398 = vmatpush.bf16.msra.mxu0 %v213
    %399 = vmatpush.bf16.msra.mxu0 %v209
    %400 = vmatpush.bf16.msra.mxu0 %v205
    %401 = vmatpush.bf16.msra.mxu0 %v201
    %402 = vmatpush.bf16.msra.mxu0 %v197
    %403 = vmatpush.bf16.msra.mxu0 %v193
    %404 = vmatpush.bf16.msra.mxu0 %v189
    %405 = vmatpush.bf16.msra.mxu0 %v185
    %406 = vmatmul.bf16.gmra.mxu0 %v371
    %v407 = vpop.f32.mrf.mxu0
    %v408 = vadd.f32 0.0, %v407
    %v409 = vpop.f32.mrf.mxu0
    %410 = vdwg.mxu0
    %411 = vmatpush.bf16.msra.mxu0 %v214
    %412 = vmatpush.bf16.msra.mxu0 %v210
    %413 = vmatpush.bf16.msra.mxu0 %v206
    %414 = vmatpush.bf16.msra.mxu0 %v202
    %415 = vmatpush.bf16.msra.mxu0 %v198
    %416 = vmatpush.bf16.msra.mxu0 %v194
    %417 = vmatpush.bf16.msra.mxu0 %v190
    %418 = vmatpush.bf16.msra.mxu0 %v186
    %419 = vmatmul.bf16.gmra.mxu0 %v371
    %v420 = vpop.f32.mrf.mxu0
    %v421 = vadd.f32 0.0, %v420
    %v422 = vpop.f32.mrf.mxu0
    %423 = vdwg.mxu0
    %v424 = vadd.f32 %v367, %v382
    %v425 = vadd.f32 %v368, %v395
    %v426 = vadd.f32 %v369, %v408
    %v427 = vadd.f32 %v370, %v421
    %v428 = vxor.u32 %v424, 2147483648
    %v429 = vxor.u32 %v425, 2147483648
    %v430 = vxor.u32 %v426, 2147483648
    %v431 = vmul.f32 %v428, 1.442695
    %v432 = vpow.pop %v431
    %v433 = vmul.f32 %v429, 1.442695
    %v434 = vpow.pop %v433
    %v435 = vmul.f32 %v430, 1.442695
    %v436 = vpow.pop %v435
    %v437 = vadd.f32 %v432, 1.0
    %v438 = vadd.f32 %v434, 1.0
    %v439 = vadd.f32 %v436, 1.0
    %v440 = vrcp.pop %v437
    %v441 = vmul.f32 %v437, %v440
    %v442 = vsub.f32 1.0, %v441
    %v443 = vmul.f32 %v440, %v442
    %v444 = vadd.f32 %v440, %v443
    %vm445 = vweird.f32 %v437
    %vm446 = vweird.f32 %v440
    %vm447 = vmor %vm445, %vm446
    %v448 = vsel %vm447, %v440, %v444
    %v449 = vand.u32 2147483647, %v437
    %vm450 = vcmp.eq.f32.partialorder %v449, 8.507059e+37
    %v451 = vand.u32 %v437, 2147483648
    %v452 = vor.u32 1.1754944e-38, %v451
    %v453 = vsel %vm450, %v452, %v448
    %v454 = vmul.f32 1.0, %v453
    %v455 = vrcp.pop %v438
    %v456 = vmul.f32 %v438, %v455
    %v457 = vsub.f32 1.0, %v456
    %v458 = vmul.f32 %v455, %v457
    %v459 = vadd.f32 %v455, %v458
    %vm460 = vweird.f32 %v438
    %vm461 = vweird.f32 %v455
    %vm462 = vmor %vm460, %vm461
    %v463 = vsel %vm462, %v455, %v459
    %v464 = vand.u32 2147483647, %v438
    %vm465 = vcmp.eq.f32.partialorder %v464, 8.507059e+37
    %v466 = vand.u32 %v438, 2147483648
    %v467 = vor.u32 1.1754944e-38, %v466
    %v468 = vsel %vm465, %v467, %v463
    %v469 = vmul.f32 1.0, %v468
    %v470 = vrcp.pop %v439
    %v471 = vmul.f32 %v439, %v470
    %v472 = vsub.f32 1.0, %v471
    %v473 = vmul.f32 %v470, %v472
    %v474 = vadd.f32 %v470, %v473
    %vm475 = vweird.f32 %v439
    %vm476 = vweird.f32 %v470
    %vm477 = vmor %vm475, %vm476
    %v478 = vsel %vm477, %v470, %v474
    %v479 = vand.u32 2147483647, %v439
    %vm480 = vcmp.eq.f32.partialorder %v479, 8.507059e+37
    %v481 = vand.u32 %v439, 2147483648
    %v482 = vor.u32 1.1754944e-38, %v481
    %v483 = vsel %vm480, %v482, %v478
    %v484 = vmul.f32 1.0, %v483
    %v485 = vtanh.pop %v427
    %v486 = vmul.f32 %v469, %v363
    %v487 = vmul.f32 %v454, %v485
    %v488 = vadd.f32 %v486, %v487
    %v489 = vtanh.pop %v488
    %v490 = vmul.f32 %v484, %v489
    %v491 = vpack.c.bf16 %v42, %v42
    %v492 = vld [vmem:[%s2] sm:$0xff]
    %v493 = vld [vmem:[%s2 + $0x8] sm:$0xff]
    %v494 = vld [vmem:[%s2 + $0x10] sm:$0xff]
    %v495 = vld [vmem:[%s2 + $0x18] sm:$0xff]
    %v496 = vld [vmem:[%s2 + $0x20] sm:$0xff]
    %v497 = vld [vmem:[%s2 + $0x28] sm:$0xff]
    %v498 = vld [vmem:[%s2 + $0x30] sm:$0xff]
    %v499 = vld [vmem:[%s2 + $0x38] sm:$0xff]
    %v500 = vld [vmem:[%s2 + $0x40] sm:$0xff]
    %v501 = vld [vmem:[%s2 + $0x48] sm:$0xff]
    %v502 = vld [vmem:[%s2 + $0x50] sm:$0xff]
    %v503 = vld [vmem:[%s2 + $0x58] sm:$0xff]
    %v504 = vld [vmem:[%s2 + $0x60] sm:$0xff]
    %v505 = vld [vmem:[%s2 + $0x68] sm:$0xff]
    %v506 = vld [vmem:[%s2 + $0x70] sm:$0xff]
    %v507 = vld [vmem:[%s2 + $0x78] sm:$0xff]
    %v508 = vld [vmem:[%s2 + $0x80] sm:$0xff]
    %v509 = vld [vmem:[%s2 + $0x88] sm:$0xff]
    %v510 = vld [vmem:[%s2 + $0x90] sm:$0xff]
    %v511 = vld [vmem:[%s2 + $0x98] sm:$0xff]
    %v512 = vld [vmem:[%s2 + $0xa0] sm:$0xff]
    %v513 = vld [vmem:[%s2 + $0xa8] sm:$0xff]
    %v514 = vld [vmem:[%s2 + $0xb0] sm:$0xff]
    %v515 = vld [vmem:[%s2 + $0xb8] sm:$0xff]
    %v516 = vld [vmem:[%s2 + $0xc0] sm:$0xff]
    %v517 = vld [vmem:[%s2 + $0xc8] sm:$0xff]
    %v518 = vld [vmem:[%s2 + $0xd0] sm:$0xff]
    %v519 = vld [vmem:[%s2 + $0xd8] sm:$0xff]
    %v520 = vld [vmem:[%s2 + $0xe0] sm:$0xff]
    %v521 = vld [vmem:[%s2 + $0xe8] sm:$0xff]
    %v522 = vld [vmem:[%s2 + $0xf0] sm:$0xff]
    %v523 = vld [vmem:[%s2 + $0xf8] sm:$0xff]
    %v524 = vld [vmem:[%s2 + $0x100] sm:$0xff]
    %v525 = vld [vmem:[%s2 + $0x108] sm:$0xff]
    %v526 = vld [vmem:[%s2 + $0x110] sm:$0xff]
    %v527 = vld [vmem:[%s2 + $0x118] sm:$0xff]
    %v528 = vld [vmem:[%s2 + $0x120] sm:$0xff]
    %v529 = vld [vmem:[%s2 + $0x128] sm:$0xff]
    %v530 = vld [vmem:[%s2 + $0x130] sm:$0xff]
    %v531 = vld [vmem:[%s2 + $0x138] sm:$0xff]
    %v532 = vld [vmem:[%s2 + $0x140] sm:$0xff]
    %v533 = vld [vmem:[%s2 + $0x148] sm:$0xff]
    %v534 = vld [vmem:[%s2 + $0x150] sm:$0xff]
    %v535 = vld [vmem:[%s2 + $0x158] sm:$0xff]
    %v536 = vld [vmem:[%s2 + $0x160] sm:$0xff]
    %v537 = vld [vmem:[%s2 + $0x168] sm:$0xff]
    %v538 = vld [vmem:[%s2 + $0x170] sm:$0xff]
    %v539 = vld [vmem:[%s2 + $0x178] sm:$0xff]
    %v540 = vld [vmem:[%s2 + $0x180] sm:$0xff]
    %v541 = vld [vmem:[%s2 + $0x188] sm:$0xff]
    %v542 = vld [vmem:[%s2 + $0x190] sm:$0xff]
    %v543 = vld [vmem:[%s2 + $0x198] sm:$0xff]
    %v544 = vld [vmem:[%s2 + $0x1a0] sm:$0xff]
    %v545 = vld [vmem:[%s2 + $0x1a8] sm:$0xff]
    %v546 = vld [vmem:[%s2 + $0x1b0] sm:$0xff]
    %v547 = vld [vmem:[%s2 + $0x1b8] sm:$0xff]
    %v548 = vld [vmem:[%s2 + $0x1c0] sm:$0xff]
    %v549 = vld [vmem:[%s2 + $0x1c8] sm:$0xff]
    %v550 = vld [vmem:[%s2 + $0x1d0] sm:$0xff]
    %v551 = vld [vmem:[%s2 + $0x1d8] sm:$0xff]
    %v552 = vld [vmem:[%s2 + $0x1e0] sm:$0xff]
    %v553 = vld [vmem:[%s2 + $0x1e8] sm:$0xff]
    %v554 = vld [vmem:[%s2 + $0x1f0] sm:$0xff]
    %v555 = vld [vmem:[%s2 + $0x1f8] sm:$0xff]
    %v556 = vld [vmem:[%s4] sm:$0xf]
    %v558 = vperm.slane %v556, 0
    %v559 = vperm.slane %v556, 1
    %v560 = vperm.slane %v556, 2
    %v561 = vperm.slane %v556, 3
    %v630 = vunpack.c.l.b16 %v492
    %v631 = vunpack.c.h.b16 %v492
    %v632 = vunpack.c.l.b16 %v493
    %v633 = vunpack.c.h.b16 %v493
    %v634 = vunpack.c.l.b16 %v494
    %v635 = vunpack.c.h.b16 %v494
    %v636 = vunpack.c.l.b16 %v495
    %v637 = vunpack.c.h.b16 %v495
    %v638 = vunpack.c.l.b16 %v496
    %v639 = vunpack.c.h.b16 %v496
    %v640 = vunpack.c.l.b16 %v497
    %v641 = vunpack.c.h.b16 %v497
    %v642 = vunpack.c.l.b16 %v498
    %v643 = vunpack.c.h.b16 %v498
    %v644 = vunpack.c.l.b16 %v499
    %v645 = vunpack.c.h.b16 %v499
    %v646 = vunpack.c.l.b16 %v500
    %v647 = vunpack.c.h.b16 %v500
    %v648 = vunpack.c.l.b16 %v501
    %v649 = vunpack.c.h.b16 %v501
    %v650 = vunpack.c.l.b16 %v502
    %v651 = vunpack.c.h.b16 %v502
    %v652 = vunpack.c.l.b16 %v503
    %v653 = vunpack.c.h.b16 %v503
    %v654 = vunpack.c.l.b16 %v504
    %v655 = vunpack.c.h.b16 %v504
    %v656 = vunpack.c.l.b16 %v505
    %v657 = vunpack.c.h.b16 %v505
    %v658 = vunpack.c.l.b16 %v506
    %v659 = vunpack.c.h.b16 %v506
    %v660 = vunpack.c.l.b16 %v507
    %v661 = vunpack.c.h.b16 %v507
    %v662 = vunpack.c.l.b16 %v508
    %v663 = vunpack.c.h.b16 %v508
    %v664 = vunpack.c.l.b16 %v509
    %v665 = vunpack.c.h.b16 %v509
    %v666 = vunpack.c.l.b16 %v510
    %v667 = vunpack.c.h.b16 %v510
    %v668 = vunpack.c.l.b16 %v511
    %v669 = vunpack.c.h.b16 %v511
    %v670 = vunpack.c.l.b16 %v512
    %v671 = vunpack.c.h.b16 %v512
    %v672 = vunpack.c.l.b16 %v513
    %v673 = vunpack.c.h.b16 %v513
    %v674 = vunpack.c.l.b16 %v514
    %v675 = vunpack.c.h.b16 %v514
    %v676 = vunpack.c.l.b16 %v515
    %v677 = vunpack.c.h.b16 %v515
    %v678 = vunpack.c.l.b16 %v516
    %v679 = vunpack.c.h.b16 %v516
    %v680 = vunpack.c.l.b16 %v517
    %v681 = vunpack.c.h.b16 %v517
    %v682 = vunpack.c.l.b16 %v518
    %v683 = vunpack.c.h.b16 %v518
    %v684 = vunpack.c.l.b16 %v519
    %v685 = vunpack.c.h.b16 %v519
    %v686 = vunpack.c.l.b16 %v520
    %v687 = vunpack.c.h.b16 %v520
    %v688 = vunpack.c.l.b16 %v521
    %v689 = vunpack.c.h.b16 %v521
    %v690 = vunpack.c.l.b16 %v522
    %v691 = vunpack.c.h.b16 %v522
    %v692 = vunpack.c.l.b16 %v523
    %v693 = vunpack.c.h.b16 %v523
    %v694 = vunpack.c.l.b16 %v524
    %v695 = vunpack.c.h.b16 %v524
    %v696 = vunpack.c.l.b16 %v525
    %v697 = vunpack.c.h.b16 %v525
    %v698 = vunpack.c.l.b16 %v526
    %v699 = vunpack.c.h.b16 %v526
    %v700 = vunpack.c.l.b16 %v527
    %v701 = vunpack.c.h.b16 %v527
    %v702 = vunpack.c.l.b16 %v528
    %v703 = vunpack.c.h.b16 %v528
    %v704 = vunpack.c.l.b16 %v529
    %v705 = vunpack.c.h.b16 %v529
    %v706 = vunpack.c.l.b16 %v530
    %v707 = vunpack.c.h.b16 %v530
    %v708 = vunpack.c.l.b16 %v531
    %v709 = vunpack.c.h.b16 %v531
    %v710 = vunpack.c.l.b16 %v532
    %v711 = vunpack.c.h.b16 %v532
    %v712 = vunpack.c.l.b16 %v533
    %v713 = vunpack.c.h.b16 %v533
    %v714 = vunpack.c.l.b16 %v534
    %v715 = vunpack.c.h.b16 %v534
    %v716 = vunpack.c.l.b16 %v535
    %v717 = vunpack.c.h.b16 %v535
    %v718 = vunpack.c.l.b16 %v536
    %v719 = vunpack.c.h.b16 %v536
    %v720 = vunpack.c.l.b16 %v537
    %v721 = vunpack.c.h.b16 %v537
    %v722 = vunpack.c.l.b16 %v538
    %v723 = vunpack.c.h.b16 %v538
    %v724 = vunpack.c.l.b16 %v539
    %v725 = vunpack.c.h.b16 %v539
    %v726 = vunpack.c.l.b16 %v540
    %v727 = vunpack.c.h.b16 %v540
    %v728 = vunpack.c.l.b16 %v541
    %v729 = vunpack.c.h.b16 %v541
    %v730 = vunpack.c.l.b16 %v542
    %v731 = vunpack.c.h.b16 %v542
    %v732 = vunpack.c.l.b16 %v543
    %v733 = vunpack.c.h.b16 %v543
    %v734 = vunpack.c.l.b16 %v544
    %v735 = vunpack.c.h.b16 %v544
    %v736 = vunpack.c.l.b16 %v545
    %v737 = vunpack.c.h.b16 %v545
    %v738 = vunpack.c.l.b16 %v546
    %v739 = vunpack.c.h.b16 %v546
    %v740 = vunpack.c.l.b16 %v547
    %v741 = vunpack.c.h.b16 %v547
    %v742 = vunpack.c.l.b16 %v548
    %v743 = vunpack.c.h.b16 %v548
    %v744 = vunpack.c.l.b16 %v549
    %v745 = vunpack.c.h.b16 %v549
    %v746 = vunpack.c.l.b16 %v550
    %v747 = vunpack.c.h.b16 %v550
    %v748 = vunpack.c.l.b16 %v551
    %v749 = vunpack.c.h.b16 %v551
    %v750 = vunpack.c.l.b16 %v552
    %v751 = vunpack.c.h.b16 %v552
    %v752 = vunpack.c.l.b16 %v553
    %v753 = vunpack.c.h.b16 %v553
    %v754 = vunpack.c.l.b16 %v554
    %v755 = vunpack.c.h.b16 %v554
    %v756 = vunpack.c.l.b16 %v555
    %v757 = vunpack.c.h.b16 %v555
    %v758 = vpack.c.b16 %v634, %v630
    %v759 = vpack.c.b16 %v635, %v631
    %v760 = vpack.c.b16 %v636, %v632
    %v761 = vpack.c.b16 %v637, %v633
    %v762 = vpack.c.b16 %v642, %v638
    %v763 = vpack.c.b16 %v643, %v639
    %v764 = vpack.c.b16 %v644, %v640
    %v765 = vpack.c.b16 %v645, %v641
    %v766 = vpack.c.b16 %v650, %v646
    %v767 = vpack.c.b16 %v651, %v647
    %v768 = vpack.c.b16 %v652, %v648
    %v769 = vpack.c.b16 %v653, %v649
    %v770 = vpack.c.b16 %v658, %v654
    %v771 = vpack.c.b16 %v659, %v655
    %v772 = vpack.c.b16 %v660, %v656
    %v773 = vpack.c.b16 %v661, %v657
    %v774 = vpack.c.b16 %v666, %v662
    %v775 = vpack.c.b16 %v667, %v663
    %v776 = vpack.c.b16 %v668, %v664
    %v777 = vpack.c.b16 %v669, %v665
    %v778 = vpack.c.b16 %v674, %v670
    %v779 = vpack.c.b16 %v675, %v671
    %v780 = vpack.c.b16 %v676, %v672
    %v781 = vpack.c.b16 %v677, %v673
    %v782 = vpack.c.b16 %v682, %v678
    %v783 = vpack.c.b16 %v683, %v679
    %v784 = vpack.c.b16 %v684, %v680
    %v785 = vpack.c.b16 %v685, %v681
    %v786 = vpack.c.b16 %v690, %v686
    %v787 = vpack.c.b16 %v691, %v687
    %v788 = vpack.c.b16 %v692, %v688
    %v789 = vpack.c.b16 %v693, %v689
    %v790 = vpack.c.b16 %v698, %v694
    %v791 = vpack.c.b16 %v699, %v695
    %v792 = vpack.c.b16 %v700, %v696
    %v793 = vpack.c.b16 %v701, %v697
    %v794 = vpack.c.b16 %v706, %v702
    %v795 = vpack.c.b16 %v707, %v703
    %v796 = vpack.c.b16 %v708, %v704
    %v797 = vpack.c.b16 %v709, %v705
    %v798 = vpack.c.b16 %v714, %v710
    %v799 = vpack.c.b16 %v715, %v711
    %v800 = vpack.c.b16 %v716, %v712
    %v801 = vpack.c.b16 %v717, %v713
    %v802 = vpack.c.b16 %v722, %v718
    %v803 = vpack.c.b16 %v723, %v719
    %v804 = vpack.c.b16 %v724, %v720
    %v805 = vpack.c.b16 %v725, %v721
    %v806 = vpack.c.b16 %v730, %v726
    %v807 = vpack.c.b16 %v731, %v727
    %v808 = vpack.c.b16 %v732, %v728
    %v809 = vpack.c.b16 %v733, %v729
    %v810 = vpack.c.b16 %v738, %v734
    %v811 = vpack.c.b16 %v739, %v735
    %v812 = vpack.c.b16 %v740, %v736
    %v813 = vpack.c.b16 %v741, %v737
    %v814 = vpack.c.b16 %v746, %v742
    %v815 = vpack.c.b16 %v747, %v743
    %v816 = vpack.c.b16 %v748, %v744
    %v817 = vpack.c.b16 %v749, %v745
    %v818 = vpack.c.b16 %v754, %v750
    %v819 = vpack.c.b16 %v755, %v751
    %v820 = vpack.c.b16 %v756, %v752
    %v821 = vpack.c.b16 %v757, %v753
    %886 = vmatpush.bf16.msra.mxu0 %v786
    %887 = vmatpush.bf16.msra.mxu0 %v782
    %888 = vmatpush.bf16.msra.mxu0 %v778
    %889 = vmatpush.bf16.msra.mxu0 %v774
    %890 = vmatpush.bf16.msra.mxu0 %v770
    %891 = vmatpush.bf16.msra.mxu0 %v766
    %892 = vmatpush.bf16.msra.mxu0 %v762
    %893 = vmatpush.bf16.msra.mxu0 %v758
    %894 = vmatmul.bf16.gmra.mxu0 %v371
    %v895 = vpop.f32.mrf.mxu0
    %v896 = vadd.f32 %v558, %v895
    %v897 = vpop.f32.mrf.mxu0
    %898 = vdwg.mxu0
    %899 = vmatpush.bf16.msra.mxu0 %v818
    %900 = vmatpush.bf16.msra.mxu0 %v814
    %901 = vmatpush.bf16.msra.mxu0 %v810
    %902 = vmatpush.bf16.msra.mxu0 %v806
    %903 = vmatpush.bf16.msra.mxu0 %v802
    %904 = vmatpush.bf16.msra.mxu0 %v798
    %905 = vmatpush.bf16.msra.mxu0 %v794
    %906 = vmatpush.bf16.msra.mxu0 %v790
    %907 = vmatmul.bf16.gmra.mxu0 %v491
    %v908 = vpop.f32.mrf.mxu0
    %v909 = vadd.f32 %v896, %v908
    %v910 = vpop.f32.mrf.mxu0
    %911 = vdwg.mxu0
    %912 = vmatpush.bf16.msra.mxu0 %v787
    %913 = vmatpush.bf16.msra.mxu0 %v783
    %914 = vmatpush.bf16.msra.mxu0 %v779
    %915 = vmatpush.bf16.msra.mxu0 %v775
    %916 = vmatpush.bf16.msra.mxu0 %v771
    %917 = vmatpush.bf16.msra.mxu0 %v767
    %918 = vmatpush.bf16.msra.mxu0 %v763
    %919 = vmatpush.bf16.msra.mxu0 %v759
    %920 = vmatmul.bf16.gmra.mxu0 %v371
    %v921 = vpop.f32.mrf.mxu0
    %v922 = vadd.f32 %v559, %v921
    %v923 = vpop.f32.mrf.mxu0
    %924 = vdwg.mxu0
    %925 = vmatpush.bf16.msra.mxu0 %v819
    %926 = vmatpush.bf16.msra.mxu0 %v815
    %927 = vmatpush.bf16.msra.mxu0 %v811
    %928 = vmatpush.bf16.msra.mxu0 %v807
    %929 = vmatpush.bf16.msra.mxu0 %v803
    %930 = vmatpush.bf16.msra.mxu0 %v799
    %931 = vmatpush.bf16.msra.mxu0 %v795
    %932 = vmatpush.bf16.msra.mxu0 %v791
    %933 = vmatmul.bf16.gmra.mxu0 %v491
    %v934 = vpop.f32.mrf.mxu0
    %v935 = vadd.f32 %v922, %v934
    %v936 = vpop.f32.mrf.mxu0
    %937 = vdwg.mxu0
    %938 = vmatpush.bf16.msra.mxu0 %v788
    %939 = vmatpush.bf16.msra.mxu0 %v784
    %940 = vmatpush.bf16.msra.mxu0 %v780
    %941 = vmatpush.bf16.msra.mxu0 %v776
    %942 = vmatpush.bf16.msra.mxu0 %v772
    %943 = vmatpush.bf16.msra.mxu0 %v768
    %944 = vmatpush.bf16.msra.mxu0 %v764
    %945 = vmatpush.bf16.msra.mxu0 %v760
    %946 = vmatmul.bf16.gmra.mxu0 %v371
    %v947 = vpop.f32.mrf.mxu0
    %v948 = vadd.f32 %v560, %v947
    %v949 = vpop.f32.mrf.mxu0
    %950 = vdwg.mxu0
    %951 = vmatpush.bf16.msra.mxu0 %v820
    %952 = vmatpush.bf16.msra.mxu0 %v816
    %953 = vmatpush.bf16.msra.mxu0 %v812
    %954 = vmatpush.bf16.msra.mxu0 %v808
    %955 = vmatpush.bf16.msra.mxu0 %v804
    %956 = vmatpush.bf16.msra.mxu0 %v800
    %957 = vmatpush.bf16.msra.mxu0 %v796
    %958 = vmatpush.bf16.msra.mxu0 %v792
    %959 = vmatmul.bf16.gmra.mxu0 %v491
    %v960 = vpop.f32.mrf.mxu0
    %v961 = vadd.f32 %v948, %v960
    %v962 = vpop.f32.mrf.mxu0
    %963 = vdwg.mxu0
    %964 = vmatpush.bf16.msra.mxu0 %v789
    %965 = vmatpush.bf16.msra.mxu0 %v785
    %966 = vmatpush.bf16.msra.mxu0 %v781
    %967 = vmatpush.bf16.msra.mxu0 %v777
    %968 = vmatpush.bf16.msra.mxu0 %v773
    %969 = vmatpush.bf16.msra.mxu0 %v769
    %970 = vmatpush.bf16.msra.mxu0 %v765
    %971 = vmatpush.bf16.msra.mxu0 %v761
    %972 = vmatmul.bf16.gmra.mxu0 %v371
    %v973 = vpop.f32.mrf.mxu0
    %v974 = vadd.f32 %v561, %v973
    %v975 = vpop.f32.mrf.mxu0
    %976 = vdwg.mxu0
    %977 = vmatpush.bf16.msra.mxu0 %v821
    %978 = vmatpush.bf16.msra.mxu0 %v817
    %979 = vmatpush.bf16.msra.mxu0 %v813
    %980 = vmatpush.bf16.msra.mxu0 %v809
    %981 = vmatpush.bf16.msra.mxu0 %v805
    %982 = vmatpush.bf16.msra.mxu0 %v801
    %983 = vmatpush.bf16.msra.mxu0 %v797
    %984 = vmatpush.bf16.msra.mxu0 %v793
    %985 = vmatmul.bf16.gmra.mxu0 %v491
    %v986 = vpop.f32.mrf.mxu0
    %v987 = vadd.f32 %v974, %v986
    %v988 = vpop.f32.mrf.mxu0
    %989 = vdwg.mxu0
    %v990 = vxor.u32 %v909, 2147483648
    %v991 = vxor.u32 %v935, 2147483648
    %v992 = vxor.u32 %v961, 2147483648
    %v993 = vmul.f32 %v990, 1.442695
    %v994 = vpow.pop %v993
    %v995 = vmul.f32 %v991, 1.442695
    %v996 = vpow.pop %v995
    %v997 = vmul.f32 %v992, 1.442695
    %v998 = vpow.pop %v997
    %v999 = vadd.f32 %v994, 1.0
    %v1000 = vadd.f32 %v996, 1.0
    %v1001 = vadd.f32 %v998, 1.0
    %v1002 = vrcp.pop %v999
    %v1003 = vmul.f32 %v999, %v1002
    %v1004 = vsub.f32 1.0, %v1003
    %v1005 = vmul.f32 %v1002, %v1004
    %v1006 = vadd.f32 %v1002, %v1005
    %vm1007 = vweird.f32 %v999
    %vm1008 = vweird.f32 %v1002
    %vm1009 = vmor %vm1007, %vm1008
    %v1010 = vsel %vm1009, %v1002, %v1006
    %v1011 = vand.u32 2147483647, %v999
    %vm1012 = vcmp.eq.f32.partialorder %v1011, 8.507059e+37
    %v1013 = vand.u32 %v999, 2147483648
    %v1014 = vor.u32 1.1754944e-38, %v1013
    %v1015 = vsel %vm1012, %v1014, %v1010
    %v1016 = vmul.f32 1.0, %v1015
    %v1017 = vrcp.pop %v1000
    %v1018 = vmul.f32 %v1000, %v1017
    %v1019 = vsub.f32 1.0, %v1018
    %v1020 = vmul.f32 %v1017, %v1019
    %v1021 = vadd.f32 %v1017, %v1020
    %vm1022 = vweird.f32 %v1000
    %vm1023 = vweird.f32 %v1017
    %vm1024 = vmor %vm1022, %vm1023
    %v1025 = vsel %vm1024, %v1017, %v1021
    %v1026 = vand.u32 2147483647, %v1000
    %vm1027 = vcmp.eq.f32.partialorder %v1026, 8.507059e+37
    %v1028 = vand.u32 %v1000, 2147483648
    %v1029 = vor.u32 1.1754944e-38, %v1028
    %v1030 = vsel %vm1027, %v1029, %v1025
    %v1031 = vmul.f32 1.0, %v1030
    %v1032 = vrcp.pop %v1001
    %v1033 = vmul.f32 %v1001, %v1032
    %v1034 = vsub.f32 1.0, %v1033
    %v1035 = vmul.f32 %v1032, %v1034
    %v1036 = vadd.f32 %v1032, %v1035
    %vm1037 = vweird.f32 %v1001
    %vm1038 = vweird.f32 %v1032
    %vm1039 = vmor %vm1037, %vm1038
    %v1040 = vsel %vm1039, %v1032, %v1036
    %v1041 = vand.u32 2147483647, %v1001
    %vm1042 = vcmp.eq.f32.partialorder %v1041, 8.507059e+37
    %v1043 = vand.u32 %v1001, 2147483648
    %v1044 = vor.u32 1.1754944e-38, %v1043
    %v1045 = vsel %vm1042, %v1044, %v1040
    %v1046 = vmul.f32 1.0, %v1045
    %v1047 = vtanh.pop %v987
    %v1048 = vmul.f32 %v1031, %v47
    %v1049 = vmul.f32 %v1016, %v1047
    %v1050 = vadd.f32 %v1048, %v1049
    %v1051 = vtanh.pop %v1050
    %v1052 = vmul.f32 %v1046, %v1051
    %s1053 = scalar_lea.vmem %s0, 64
    %v1054 = vld [vmem:[%s1053] sm:$0xff]
    %v1055 = vld [vmem:[%s1053 + $0x8] sm:$0xff]
    %v1056 = vld [vmem:[%s1053 + $0x10] sm:$0xff]
    %v1057 = vld [vmem:[%s1053 + $0x18] sm:$0xff]
    %v1058 = vpack.c.bf16 %v490, %v490
    %1059 = vmatpush.bf16.msra.mxu0 %v211
    %1060 = vmatpush.bf16.msra.mxu0 %v207
    %1061 = vmatpush.bf16.msra.mxu0 %v203
    %1062 = vmatpush.bf16.msra.mxu0 %v199
    %1063 = vmatpush.bf16.msra.mxu0 %v195
    %1064 = vmatpush.bf16.msra.mxu0 %v191
    %1065 = vmatpush.bf16.msra.mxu0 %v187
    %1066 = vmatpush.bf16.msra.mxu0 %v183
    %1067 = vmatmul.bf16.gmra.mxu0 %v1058
    %v1068 = vpop.f32.mrf.mxu0
    %v1069 = vadd.f32 0.0, %v1068
    %v1070 = vpop.f32.mrf.mxu0
    %1071 = vdwg.mxu0
    %1072 = vmatpush.bf16.msra.mxu0 %v212
    %1073 = vmatpush.bf16.msra.mxu0 %v208
    %1074 = vmatpush.bf16.msra.mxu0 %v204
    %1075 = vmatpush.bf16.msra.mxu0 %v200
    %1076 = vmatpush.bf16.msra.mxu0 %v196
    %1077 = vmatpush.bf16.msra.mxu0 %v192
    %1078 = vmatpush.bf16.msra.mxu0 %v188
    %1079 = vmatpush.bf16.msra.mxu0 %v184
    %1080 = vmatmul.bf16.gmra.mxu0 %v1058
    %v1081 = vpop.f32.mrf.mxu0
    %v1082 = vadd.f32 0.0, %v1081
    %v1083 = vpop.f32.mrf.mxu0
    %1084 = vdwg.mxu0
    %1085 = vmatpush.bf16.msra.mxu0 %v213
    %1086 = vmatpush.bf16.msra.mxu0 %v209
    %1087 = vmatpush.bf16.msra.mxu0 %v205
    %1088 = vmatpush.bf16.msra.mxu0 %v201
    %1089 = vmatpush.bf16.msra.mxu0 %v197
    %1090 = vmatpush.bf16.msra.mxu0 %v193
    %1091 = vmatpush.bf16.msra.mxu0 %v189
    %1092 = vmatpush.bf16.msra.mxu0 %v185
    %1093 = vmatmul.bf16.gmra.mxu0 %v1058
    %v1094 = vpop.f32.mrf.mxu0
    %v1095 = vadd.f32 0.0, %v1094
    %v1096 = vpop.f32.mrf.mxu0
    %1097 = vdwg.mxu0
    %1098 = vmatpush.bf16.msra.mxu0 %v214
    %1099 = vmatpush.bf16.msra.mxu0 %v210
    %1100 = vmatpush.bf16.msra.mxu0 %v206
    %1101 = vmatpush.bf16.msra.mxu0 %v202
    %1102 = vmatpush.bf16.msra.mxu0 %v198
    %1103 = vmatpush.bf16.msra.mxu0 %v194
    %1104 = vmatpush.bf16.msra.mxu0 %v190
    %1105 = vmatpush.bf16.msra.mxu0 %v186
    %1106 = vmatmul.bf16.gmra.mxu0 %v1058
    %v1107 = vpop.f32.mrf.mxu0
    %v1108 = vadd.f32 0.0, %v1107
    %v1109 = vpop.f32.mrf.mxu0
    %1110 = vdwg.mxu0
    %v1111 = vadd.f32 %v1054, %v1069
    %v1112 = vadd.f32 %v1055, %v1082
    %v1113 = vadd.f32 %v1056, %v1095
    %v1114 = vadd.f32 %v1057, %v1108
    %v1115 = vxor.u32 %v1111, 2147483648
    %v1116 = vxor.u32 %v1112, 2147483648
    %v1117 = vxor.u32 %v1113, 2147483648
    %v1118 = vmul.f32 %v1115, 1.442695
    %v1119 = vpow.pop %v1118
    %v1120 = vmul.f32 %v1116, 1.442695
    %v1121 = vpow.pop %v1120
    %v1122 = vmul.f32 %v1117, 1.442695
    %v1123 = vpow.pop %v1122
    %v1124 = vadd.f32 %v1119, 1.0
    %v1125 = vadd.f32 %v1121, 1.0
    %v1126 = vadd.f32 %v1123, 1.0
    %v1127 = vrcp.pop %v1124
    %v1128 = vmul.f32 %v1124, %v1127
    %v1129 = vsub.f32 1.0, %v1128
    %v1130 = vmul.f32 %v1127, %v1129
    %v1131 = vadd.f32 %v1127, %v1130
    %vm1132 = vweird.f32 %v1124
    %vm1133 = vweird.f32 %v1127
    %vm1134 = vmor %vm1132, %vm1133
    %v1135 = vsel %vm1134, %v1127, %v1131
    %v1136 = vand.u32 2147483647, %v1124
    %vm1137 = vcmp.eq.f32.partialorder %v1136, 8.507059e+37
    %v1138 = vand.u32 %v1124, 2147483648
    %v1139 = vor.u32 1.1754944e-38, %v1138
    %v1140 = vsel %vm1137, %v1139, %v1135
    %v1141 = vmul.f32 1.0, %v1140
    %v1142 = vrcp.pop %v1125
    %v1143 = vmul.f32 %v1125, %v1142
    %v1144 = vsub.f32 1.0, %v1143
    %v1145 = vmul.f32 %v1142, %v1144
    %v1146 = vadd.f32 %v1142, %v1145
    %vm1147 = vweird.f32 %v1125
    %vm1148 = vweird.f32 %v1142
    %vm1149 = vmor %vm1147, %vm1148
    %v1150 = vsel %vm1149, %v1142, %v1146
    %v1151 = vand.u32 2147483647, %v1125
    %vm1152 = vcmp.eq.f32.partialorder %v1151, 8.507059e+37
    %v1153 = vand.u32 %v1125, 2147483648
    %v1154 = vor.u32 1.1754944e-38, %v1153
    %v1155 = vsel %vm1152, %v1154, %v1150
    %v1156 = vmul.f32 1.0, %v1155
    %v1157 = vrcp.pop %v1126
    %v1158 = vmul.f32 %v1126, %v1157
    %v1159 = vsub.f32 1.0, %v1158
    %v1160 = vmul.f32 %v1157, %v1159
    %v1161 = vadd.f32 %v1157, %v1160
    %vm1162 = vweird.f32 %v1126
    %vm1163 = vweird.f32 %v1157
    %vm1164 = vmor %vm1162, %vm1163
    %v1165 = vsel %vm1164, %v1157, %v1161
    %v1166 = vand.u32 2147483647, %v1126
    %vm1167 = vcmp.eq.f32.partialorder %v1166, 8.507059e+37
    %v1168 = vand.u32 %v1126, 2147483648
    %v1169 = vor.u32 1.1754944e-38, %v1168
    %v1170 = vsel %vm1167, %v1169, %v1165
    %v1171 = vmul.f32 1.0, %v1170
    %v1172 = vtanh.pop %v1114
    %v1173 = vmul.f32 %v1156, %v488
    %v1174 = vmul.f32 %v1141, %v1172
    %v1175 = vadd.f32 %v1173, %v1174
    %v1176 = vtanh.pop %v1175
    %v1177 = vmul.f32 %v1171, %v1176
    %v1178 = vpack.c.bf16 %v1052, %v1052
    %1179 = vmatpush.bf16.msra.mxu0 %v786
    %1180 = vmatpush.bf16.msra.mxu0 %v782
    %1181 = vmatpush.bf16.msra.mxu0 %v778
    %1182 = vmatpush.bf16.msra.mxu0 %v774
    %1183 = vmatpush.bf16.msra.mxu0 %v770
    %1184 = vmatpush.bf16.msra.mxu0 %v766
    %1185 = vmatpush.bf16.msra.mxu0 %v762
    %1186 = vmatpush.bf16.msra.mxu0 %v758
    %1187 = vmatmul.bf16.gmra.mxu0 %v1058
    %v1188 = vpop.f32.mrf.mxu0
    %v1189 = vadd.f32 %v558, %v1188
    %v1190 = vpop.f32.mrf.mxu0
    %1191 = vdwg.mxu0
    %1192 = vmatpush.bf16.msra.mxu0 %v818
    %1193 = vmatpush.bf16.msra.mxu0 %v814
    %1194 = vmatpush.bf16.msra.mxu0 %v810
    %1195 = vmatpush.bf16.msra.mxu0 %v806
    %1196 = vmatpush.bf16.msra.mxu0 %v802
    %1197 = vmatpush.bf16.msra.mxu0 %v798
    %1198 = vmatpush.bf16.msra.mxu0 %v794
    %1199 = vmatpush.bf16.msra.mxu0 %v790
    %1200 = vmatmul.bf16.gmra.mxu0 %v1178
    %v1201 = vpop.f32.mrf.mxu0
    %v1202 = vadd.f32 %v1189, %v1201
    %v1203 = vpop.f32.mrf.mxu0
    %1204 = vdwg.mxu0
    %1205 = vmatpush.bf16.msra.mxu0 %v787
    %1206 = vmatpush.bf16.msra.mxu0 %v783
    %1207 = vmatpush.bf16.msra.mxu0 %v779
    %1208 = vmatpush.bf16.msra.mxu0 %v775
    %1209 = vmatpush.bf16.msra.mxu0 %v771
    %1210 = vmatpush.bf16.msra.mxu0 %v767
    %1211 = vmatpush.bf16.msra.mxu0 %v763
    %1212 = vmatpush.bf16.msra.mxu0 %v759
    %1213 = vmatmul.bf16.gmra.mxu0 %v1058
    %v1214 = vpop.f32.mrf.mxu0
    %v1215 = vadd.f32 %v559, %v1214
    %v1216 = vpop.f32.mrf.mxu0
    %1217 = vdwg.mxu0
    %1218 = vmatpush.bf16.msra.mxu0 %v819
    %1219 = vmatpush.bf16.msra.mxu0 %v815
    %1220 = vmatpush.bf16.msra.mxu0 %v811
    %1221 = vmatpush.bf16.msra.mxu0 %v807
    %1222 = vmatpush.bf16.msra.mxu0 %v803
    %1223 = vmatpush.bf16.msra.mxu0 %v799
    %1224 = vmatpush.bf16.msra.mxu0 %v795
    %1225 = vmatpush.bf16.msra.mxu0 %v791
    %1226 = vmatmul.bf16.gmra.mxu0 %v1178
    %v1227 = vpop.f32.mrf.mxu0
    %v1228 = vadd.f32 %v1215, %v1227
    %v1229 = vpop.f32.mrf.mxu0
    %1230 = vdwg.mxu0
    %1231 = vmatpush.bf16.msra.mxu0 %v788
    %1232 = vmatpush.bf16.msra.mxu0 %v784
    %1233 = vmatpush.bf16.msra.mxu0 %v780
    %1234 = vmatpush.bf16.msra.mxu0 %v776
    %1235 = vmatpush.bf16.msra.mxu0 %v772
    %1236 = vmatpush.bf16.msra.mxu0 %v768
    %1237 = vmatpush.bf16.msra.mxu0 %v764
    %1238 = vmatpush.bf16.msra.mxu0 %v760
    %1239 = vmatmul.bf16.gmra.mxu0 %v1058
    %v1240 = vpop.f32.mrf.mxu0
    %v1241 = vadd.f32 %v560, %v1240
    %v1242 = vpop.f32.mrf.mxu0
    %1243 = vdwg.mxu0
    %1244 = vmatpush.bf16.msra.mxu0 %v820
    %1245 = vmatpush.bf16.msra.mxu0 %v816
    %1246 = vmatpush.bf16.msra.mxu0 %v812
    %1247 = vmatpush.bf16.msra.mxu0 %v808
    %1248 = vmatpush.bf16.msra.mxu0 %v804
    %1249 = vmatpush.bf16.msra.mxu0 %v800
    %1250 = vmatpush.bf16.msra.mxu0 %v796
    %1251 = vmatpush.bf16.msra.mxu0 %v792
    %1252 = vmatmul.bf16.gmra.mxu0 %v1178
    %v1253 = vpop.f32.mrf.mxu0
    %v1254 = vadd.f32 %v1241, %v1253
    %v1255 = vpop.f32.mrf.mxu0
    %1256 = vdwg.mxu0
    %1257 = vmatpush.bf16.msra.mxu0 %v789
    %1258 = vmatpush.bf16.msra.mxu0 %v785
    %1259 = vmatpush.bf16.msra.mxu0 %v781
    %1260 = vmatpush.bf16.msra.mxu0 %v777
    %1261 = vmatpush.bf16.msra.mxu0 %v773
    %1262 = vmatpush.bf16.msra.mxu0 %v769
    %1263 = vmatpush.bf16.msra.mxu0 %v765
    %1264 = vmatpush.bf16.msra.mxu0 %v761
    %1265 = vmatmul.bf16.gmra.mxu0 %v1058
    %v1266 = vpop.f32.mrf.mxu0
    %v1267 = vadd.f32 %v561, %v1266
    %v1268 = vpop.f32.mrf.mxu0
    %1269 = vdwg.mxu0
    %1270 = vmatpush.bf16.msra.mxu0 %v821
    %1271 = vmatpush.bf16.msra.mxu0 %v817
    %1272 = vmatpush.bf16.msra.mxu0 %v813
    %1273 = vmatpush.bf16.msra.mxu0 %v809
    %1274 = vmatpush.bf16.msra.mxu0 %v805
    %1275 = vmatpush.bf16.msra.mxu0 %v801
    %1276 = vmatpush.bf16.msra.mxu0 %v797
    %1277 = vmatpush.bf16.msra.mxu0 %v793
    %1278 = vmatmul.bf16.gmra.mxu0 %v1178
    %v1279 = vpop.f32.mrf.mxu0
    %v1280 = vadd.f32 %v1267, %v1279
    %v1281 = vpop.f32.mrf.mxu0
    %1282 = vdwg.mxu0
    %v1283 = vxor.u32 %v1202, 2147483648
    %v1284 = vxor.u32 %v1228, 2147483648
    %v1285 = vxor.u32 %v1254, 2147483648
    %v1286 = vmul.f32 %v1283, 1.442695
    %v1287 = vpow.pop %v1286
    %v1288 = vmul.f32 %v1284, 1.442695
    %v1289 = vpow.pop %v1288
    %v1290 = vmul.f32 %v1285, 1.442695
    %v1291 = vpow.pop %v1290
    %v1292 = vadd.f32 %v1287, 1.0
    %v1293 = vadd.f32 %v1289, 1.0
    %v1294 = vadd.f32 %v1291, 1.0
    %v1295 = vrcp.pop %v1292
    %v1296 = vmul.f32 %v1292, %v1295
    %v1297 = vsub.f32 1.0, %v1296
    %v1298 = vmul.f32 %v1295, %v1297
    %v1299 = vadd.f32 %v1295, %v1298
    %vm1300 = vweird.f32 %v1292
    %vm1301 = vweird.f32 %v1295
    %vm1302 = vmor %vm1300, %vm1301
    %v1303 = vsel %vm1302, %v1295, %v1299
    %v1304 = vand.u32 2147483647, %v1292
    %vm1305 = vcmp.eq.f32.partialorder %v1304, 8.507059e+37
    %v1306 = vand.u32 %v1292, 2147483648
    %v1307 = vor.u32 1.1754944e-38, %v1306
    %v1308 = vsel %vm1305, %v1307, %v1303
    %v1309 = vmul.f32 1.0, %v1308
    %v1310 = vrcp.pop %v1293
    %v1311 = vmul.f32 %v1293, %v1310
    %v1312 = vsub.f32 1.0, %v1311
    %v1313 = vmul.f32 %v1310, %v1312
    %v1314 = vadd.f32 %v1310, %v1313
    %vm1315 = vweird.f32 %v1293
    %vm1316 = vweird.f32 %v1310
    %vm1317 = vmor %vm1315, %vm1316
    %v1318 = vsel %vm1317, %v1310, %v1314
    %v1319 = vand.u32 2147483647, %v1293
    %vm1320 = vcmp.eq.f32.partialorder %v1319, 8.507059e+37
    %v1321 = vand.u32 %v1293, 2147483648
    %v1322 = vor.u32 1.1754944e-38, %v1321
    %v1323 = vsel %vm1320, %v1322, %v1318
    %v1324 = vmul.f32 1.0, %v1323
    %v1325 = vrcp.pop %v1294
    %v1326 = vmul.f32 %v1294, %v1325
    %v1327 = vsub.f32 1.0, %v1326
    %v1328 = vmul.f32 %v1325, %v1327
    %v1329 = vadd.f32 %v1325, %v1328
    %vm1330 = vweird.f32 %v1294
    %vm1331 = vweird.f32 %v1325
    %vm1332 = vmor %vm1330, %vm1331
    %v1333 = vsel %vm1332, %v1325, %v1329
    %v1334 = vand.u32 2147483647, %v1294
    %vm1335 = vcmp.eq.f32.partialorder %v1334, 8.507059e+37
    %v1336 = vand.u32 %v1294, 2147483648
    %v1337 = vor.u32 1.1754944e-38, %v1336
    %v1338 = vsel %vm1335, %v1337, %v1333
    %v1339 = vmul.f32 1.0, %v1338
    %v1340 = vtanh.pop %v1280
    %v1341 = vmul.f32 %v1324, %v1050
    %v1342 = vmul.f32 %v1309, %v1340
    %v1343 = vadd.f32 %v1341, %v1342
    %v1344 = vtanh.pop %v1343
    %v1345 = vmul.f32 %v1339, %v1344
    %v1346 = vpack.c.bf16 %v44, %v44
    %v1347 = vld [vmem:[%s3] sm:$0xff]
    %v1348 = vld [vmem:[%s3 + $0x8] sm:$0xff]
    %v1349 = vld [vmem:[%s3 + $0x10] sm:$0xff]
    %v1350 = vld [vmem:[%s3 + $0x18] sm:$0xff]
    %v1351 = vld [vmem:[%s3 + $0x20] sm:$0xff]
    %v1352 = vld [vmem:[%s3 + $0x28] sm:$0xff]
    %v1353 = vld [vmem:[%s3 + $0x30] sm:$0xff]
    %v1354 = vld [vmem:[%s3 + $0x38] sm:$0xff]
    %v1355 = vld [vmem:[%s3 + $0x40] sm:$0xff]
    %v1356 = vld [vmem:[%s3 + $0x48] sm:$0xff]
    %v1357 = vld [vmem:[%s3 + $0x50] sm:$0xff]
    %v1358 = vld [vmem:[%s3 + $0x58] sm:$0xff]
    %v1359 = vld [vmem:[%s3 + $0x60] sm:$0xff]
    %v1360 = vld [vmem:[%s3 + $0x68] sm:$0xff]
    %v1361 = vld [vmem:[%s3 + $0x70] sm:$0xff]
    %v1362 = vld [vmem:[%s3 + $0x78] sm:$0xff]
    %v1363 = vld [vmem:[%s3 + $0x80] sm:$0xff]
    %v1364 = vld [vmem:[%s3 + $0x88] sm:$0xff]
    %v1365 = vld [vmem:[%s3 + $0x90] sm:$0xff]
    %v1366 = vld [vmem:[%s3 + $0x98] sm:$0xff]
    %v1367 = vld [vmem:[%s3 + $0xa0] sm:$0xff]
    %v1368 = vld [vmem:[%s3 + $0xa8] sm:$0xff]
    %v1369 = vld [vmem:[%s3 + $0xb0] sm:$0xff]
    %v1370 = vld [vmem:[%s3 + $0xb8] sm:$0xff]
    %v1371 = vld [vmem:[%s3 + $0xc0] sm:$0xff]
    %v1372 = vld [vmem:[%s3 + $0xc8] sm:$0xff]
    %v1373 = vld [vmem:[%s3 + $0xd0] sm:$0xff]
    %v1374 = vld [vmem:[%s3 + $0xd8] sm:$0xff]
    %v1375 = vld [vmem:[%s3 + $0xe0] sm:$0xff]
    %v1376 = vld [vmem:[%s3 + $0xe8] sm:$0xff]
    %v1377 = vld [vmem:[%s3 + $0xf0] sm:$0xff]
    %v1378 = vld [vmem:[%s3 + $0xf8] sm:$0xff]
    %v1379 = vld [vmem:[%s3 + $0x100] sm:$0xff]
    %v1380 = vld [vmem:[%s3 + $0x108] sm:$0xff]
    %v1381 = vld [vmem:[%s3 + $0x110] sm:$0xff]
    %v1382 = vld [vmem:[%s3 + $0x118] sm:$0xff]
    %v1383 = vld [vmem:[%s3 + $0x120] sm:$0xff]
    %v1384 = vld [vmem:[%s3 + $0x128] sm:$0xff]
    %v1385 = vld [vmem:[%s3 + $0x130] sm:$0xff]
    %v1386 = vld [vmem:[%s3 + $0x138] sm:$0xff]
    %v1387 = vld [vmem:[%s3 + $0x140] sm:$0xff]
    %v1388 = vld [vmem:[%s3 + $0x148] sm:$0xff]
    %v1389 = vld [vmem:[%s3 + $0x150] sm:$0xff]
    %v1390 = vld [vmem:[%s3 + $0x158] sm:$0xff]
    %v1391 = vld [vmem:[%s3 + $0x160] sm:$0xff]
    %v1392 = vld [vmem:[%s3 + $0x168] sm:$0xff]
    %v1393 = vld [vmem:[%s3 + $0x170] sm:$0xff]
    %v1394 = vld [vmem:[%s3 + $0x178] sm:$0xff]
    %v1395 = vld [vmem:[%s3 + $0x180] sm:$0xff]
    %v1396 = vld [vmem:[%s3 + $0x188] sm:$0xff]
    %v1397 = vld [vmem:[%s3 + $0x190] sm:$0xff]
    %v1398 = vld [vmem:[%s3 + $0x198] sm:$0xff]
    %v1399 = vld [vmem:[%s3 + $0x1a0] sm:$0xff]
    %v1400 = vld [vmem:[%s3 + $0x1a8] sm:$0xff]
    %v1401 = vld [vmem:[%s3 + $0x1b0] sm:$0xff]
    %v1402 = vld [vmem:[%s3 + $0x1b8] sm:$0xff]
    %v1403 = vld [vmem:[%s3 + $0x1c0] sm:$0xff]
    %v1404 = vld [vmem:[%s3 + $0x1c8] sm:$0xff]
    %v1405 = vld [vmem:[%s3 + $0x1d0] sm:$0xff]
    %v1406 = vld [vmem:[%s3 + $0x1d8] sm:$0xff]
    %v1407 = vld [vmem:[%s3 + $0x1e0] sm:$0xff]
    %v1408 = vld [vmem:[%s3 + $0x1e8] sm:$0xff]
    %v1409 = vld [vmem:[%s3 + $0x1f0] sm:$0xff]
    %v1410 = vld [vmem:[%s3 + $0x1f8] sm:$0xff]
    %v1411 = vld [vmem:[%s5] sm:$0xf]
    %v1413 = vperm.slane %v1411, 0
    %v1414 = vperm.slane %v1411, 1
    %v1415 = vperm.slane %v1411, 2
    %v1416 = vperm.slane %v1411, 3
    %v1485 = vunpack.c.l.b16 %v1347
    %v1486 = vunpack.c.h.b16 %v1347
    %v1487 = vunpack.c.l.b16 %v1348
    %v1488 = vunpack.c.h.b16 %v1348
    %v1489 = vunpack.c.l.b16 %v1349
    %v1490 = vunpack.c.h.b16 %v1349
    %v1491 = vunpack.c.l.b16 %v1350
    %v1492 = vunpack.c.h.b16 %v1350
    %v1493 = vunpack.c.l.b16 %v1351
    %v1494 = vunpack.c.h.b16 %v1351
    %v1495 = vunpack.c.l.b16 %v1352
    %v1496 = vunpack.c.h.b16 %v1352
    %v1497 = vunpack.c.l.b16 %v1353
    %v1498 = vunpack.c.h.b16 %v1353
    %v1499 = vunpack.c.l.b16 %v1354
    %v1500 = vunpack.c.h.b16 %v1354
    %v1501 = vunpack.c.l.b16 %v1355
    %v1502 = vunpack.c.h.b16 %v1355
    %v1503 = vunpack.c.l.b16 %v1356
    %v1504 = vunpack.c.h.b16 %v1356
    %v1505 = vunpack.c.l.b16 %v1357
    %v1506 = vunpack.c.h.b16 %v1357
    %v1507 = vunpack.c.l.b16 %v1358
    %v1508 = vunpack.c.h.b16 %v1358
    %v1509 = vunpack.c.l.b16 %v1359
    %v1510 = vunpack.c.h.b16 %v1359
    %v1511 = vunpack.c.l.b16 %v1360
    %v1512 = vunpack.c.h.b16 %v1360
    %v1513 = vunpack.c.l.b16 %v1361
    %v1514 = vunpack.c.h.b16 %v1361
    %v1515 = vunpack.c.l.b16 %v1362
    %v1516 = vunpack.c.h.b16 %v1362
    %v1517 = vunpack.c.l.b16 %v1363
    %v1518 = vunpack.c.h.b16 %v1363
    %v1519 = vunpack.c.l.b16 %v1364
    %v1520 = vunpack.c.h.b16 %v1364
    %v1521 = vunpack.c.l.b16 %v1365
    %v1522 = vunpack.c.h.b16 %v1365
    %v1523 = vunpack.c.l.b16 %v1366
    %v1524 = vunpack.c.h.b16 %v1366
    %v1525 = vunpack.c.l.b16 %v1367
    %v1526 = vunpack.c.h.b16 %v1367
    %v1527 = vunpack.c.l.b16 %v1368
    %v1528 = vunpack.c.h.b16 %v1368
    %v1529 = vunpack.c.l.b16 %v1369
    %v1530 = vunpack.c.h.b16 %v1369
    %v1531 = vunpack.c.l.b16 %v1370
    %v1532 = vunpack.c.h.b16 %v1370
    %v1533 = vunpack.c.l.b16 %v1371
    %v1534 = vunpack.c.h.b16 %v1371
    %v1535 = vunpack.c.l.b16 %v1372
    %v1536 = vunpack.c.h.b16 %v1372
    %v1537 = vunpack.c.l.b16 %v1373
    %v1538 = vunpack.c.h.b16 %v1373
    %v1539 = vunpack.c.l.b16 %v1374
    %v1540 = vunpack.c.h.b16 %v1374
    %v1541 = vunpack.c.l.b16 %v1375
    %v1542 = vunpack.c.h.b16 %v1375
    %v1543 = vunpack.c.l.b16 %v1376
    %v1544 = vunpack.c.h.b16 %v1376
    %v1545 = vunpack.c.l.b16 %v1377
    %v1546 = vunpack.c.h.b16 %v1377
    %v1547 = vunpack.c.l.b16 %v1378
    %v1548 = vunpack.c.h.b16 %v1378
    %v1549 = vunpack.c.l.b16 %v1379
    %v1550 = vunpack.c.h.b16 %v1379
    %v1551 = vunpack.c.l.b16 %v1380
    %v1552 = vunpack.c.h.b16 %v1380
    %v1553 = vunpack.c.l.b16 %v1381
    %v1554 = vunpack.c.h.b16 %v1381
    %v1555 = vunpack.c.l.b16 %v1382
    %v1556 = vunpack.c.h.b16 %v1382
    %v1557 = vunpack.c.l.b16 %v1383
    %v1558 = vunpack.c.h.b16 %v1383
    %v1559 = vunpack.c.l.b16 %v1384
    %v1560 = vunpack.c.h.b16 %v1384
    %v1561 = vunpack.c.l.b16 %v1385
    %v1562 = vunpack.c.h.b16 %v1385
    %v1563 = vunpack.c.l.b16 %v1386
    %v1564 = vunpack.c.h.b16 %v1386
    %v1565 = vunpack.c.l.b16 %v1387
    %v1566 = vunpack.c.h.b16 %v1387
    %v1567 = vunpack.c.l.b16 %v1388
    %v1568 = vunpack.c.h.b16 %v1388
    %v1569 = vunpack.c.l.b16 %v1389
    %v1570 = vunpack.c.h.b16 %v1389
    %v1571 = vunpack.c.l.b16 %v1390
    %v1572 = vunpack.c.h.b16 %v1390
    %v1573 = vunpack.c.l.b16 %v1391
    %v1574 = vunpack.c.h.b16 %v1391
    %v1575 = vunpack.c.l.b16 %v1392
    %v1576 = vunpack.c.h.b16 %v1392
    %v1577 = vunpack.c.l.b16 %v1393
    %v1578 = vunpack.c.h.b16 %v1393
    %v1579 = vunpack.c.l.b16 %v1394
    %v1580 = vunpack.c.h.b16 %v1394
    %v1581 = vunpack.c.l.b16 %v1395
    %v1582 = vunpack.c.h.b16 %v1395
    %v1583 = vunpack.c.l.b16 %v1396
    %v1584 = vunpack.c.h.b16 %v1396
    %v1585 = vunpack.c.l.b16 %v1397
    %v1586 = vunpack.c.h.b16 %v1397
    %v1587 = vunpack.c.l.b16 %v1398
    %v1588 = vunpack.c.h.b16 %v1398
    %v1589 = vunpack.c.l.b16 %v1399
    %v1590 = vunpack.c.h.b16 %v1399
    %v1591 = vunpack.c.l.b16 %v1400
    %v1592 = vunpack.c.h.b16 %v1400
    %v1593 = vunpack.c.l.b16 %v1401
    %v1594 = vunpack.c.h.b16 %v1401
    %v1595 = vunpack.c.l.b16 %v1402
    %v1596 = vunpack.c.h.b16 %v1402
    %v1597 = vunpack.c.l.b16 %v1403
    %v1598 = vunpack.c.h.b16 %v1403
    %v1599 = vunpack.c.l.b16 %v1404
    %v1600 = vunpack.c.h.b16 %v1404
    %v1601 = vunpack.c.l.b16 %v1405
    %v1602 = vunpack.c.h.b16 %v1405
    %v1603 = vunpack.c.l.b16 %v1406
    %v1604 = vunpack.c.h.b16 %v1406
    %v1605 = vunpack.c.l.b16 %v1407
    %v1606 = vunpack.c.h.b16 %v1407
    %v1607 = vunpack.c.l.b16 %v1408
    %v1608 = vunpack.c.h.b16 %v1408
    %v1609 = vunpack.c.l.b16 %v1409
    %v1610 = vunpack.c.h.b16 %v1409
    %v1611 = vunpack.c.l.b16 %v1410
    %v1612 = vunpack.c.h.b16 %v1410
    %v1613 = vpack.c.b16 %v1489, %v1485
    %v1614 = vpack.c.b16 %v1490, %v1486
    %v1615 = vpack.c.b16 %v1491, %v1487
    %v1616 = vpack.c.b16 %v1492, %v1488
    %v1617 = vpack.c.b16 %v1497, %v1493
    %v1618 = vpack.c.b16 %v1498, %v1494
    %v1619 = vpack.c.b16 %v1499, %v1495
    %v1620 = vpack.c.b16 %v1500, %v1496
    %v1621 = vpack.c.b16 %v1505, %v1501
    %v1622 = vpack.c.b16 %v1506, %v1502
    %v1623 = vpack.c.b16 %v1507, %v1503
    %v1624 = vpack.c.b16 %v1508, %v1504
    %v1625 = vpack.c.b16 %v1513, %v1509
    %v1626 = vpack.c.b16 %v1514, %v1510
    %v1627 = vpack.c.b16 %v1515, %v1511
    %v1628 = vpack.c.b16 %v1516, %v1512
    %v1629 = vpack.c.b16 %v1521, %v1517
    %v1630 = vpack.c.b16 %v1522, %v1518
    %v1631 = vpack.c.b16 %v1523, %v1519
    %v1632 = vpack.c.b16 %v1524, %v1520
    %v1633 = vpack.c.b16 %v1529, %v1525
    %v1634 = vpack.c.b16 %v1530, %v1526
    %v1635 = vpack.c.b16 %v1531, %v1527
    %v1636 = vpack.c.b16 %v1532, %v1528
    %v1637 = vpack.c.b16 %v1537, %v1533
    %v1638 = vpack.c.b16 %v1538, %v1534
    %v1639 = vpack.c.b16 %v1539, %v1535
    %v1640 = vpack.c.b16 %v1540, %v1536
    %v1641 = vpack.c.b16 %v1545, %v1541
    %v1642 = vpack.c.b16 %v1546, %v1542
    %v1643 = vpack.c.b16 %v1547, %v1543
    %v1644 = vpack.c.b16 %v1548, %v1544
    %v1645 = vpack.c.b16 %v1553, %v1549
    %v1646 = vpack.c.b16 %v1554, %v1550
    %v1647 = vpack.c.b16 %v1555, %v1551
    %v1648 = vpack.c.b16 %v1556, %v1552
    %v1649 = vpack.c.b16 %v1561, %v1557
    %v1650 = vpack.c.b16 %v1562, %v1558
    %v1651 = vpack.c.b16 %v1563, %v1559
    %v1652 = vpack.c.b16 %v1564, %v1560
    %v1653 = vpack.c.b16 %v1569, %v1565
    %v1654 = vpack.c.b16 %v1570, %v1566
    %v1655 = vpack.c.b16 %v1571, %v1567
    %v1656 = vpack.c.b16 %v1572, %v1568
    %v1657 = vpack.c.b16 %v1577, %v1573
    %v1658 = vpack.c.b16 %v1578, %v1574
    %v1659 = vpack.c.b16 %v1579, %v1575
    %v1660 = vpack.c.b16 %v1580, %v1576
    %v1661 = vpack.c.b16 %v1585, %v1581
    %v1662 = vpack.c.b16 %v1586, %v1582
    %v1663 = vpack.c.b16 %v1587, %v1583
    %v1664 = vpack.c.b16 %v1588, %v1584
    %v1665 = vpack.c.b16 %v1593, %v1589
    %v1666 = vpack.c.b16 %v1594, %v1590
    %v1667 = vpack.c.b16 %v1595, %v1591
    %v1668 = vpack.c.b16 %v1596, %v1592
    %v1669 = vpack.c.b16 %v1601, %v1597
    %v1670 = vpack.c.b16 %v1602, %v1598
    %v1671 = vpack.c.b16 %v1603, %v1599
    %v1672 = vpack.c.b16 %v1604, %v1600
    %v1673 = vpack.c.b16 %v1609, %v1605
    %v1674 = vpack.c.b16 %v1610, %v1606
    %v1675 = vpack.c.b16 %v1611, %v1607
    %v1676 = vpack.c.b16 %v1612, %v1608
    %1741 = vmatpush.bf16.msra.mxu0 %v1641
    %1742 = vmatpush.bf16.msra.mxu0 %v1637
    %1743 = vmatpush.bf16.msra.mxu0 %v1633
    %1744 = vmatpush.bf16.msra.mxu0 %v1629
    %1745 = vmatpush.bf16.msra.mxu0 %v1625
    %1746 = vmatpush.bf16.msra.mxu0 %v1621
    %1747 = vmatpush.bf16.msra.mxu0 %v1617
    %1748 = vmatpush.bf16.msra.mxu0 %v1613
    %1749 = vmatmul.bf16.gmra.mxu0 %v1178
    %v1750 = vpop.f32.mrf.mxu0
    %v1751 = vadd.f32 %v1413, %v1750
    %v1752 = vpop.f32.mrf.mxu0
    %1753 = vdwg.mxu0
    %1754 = vmatpush.bf16.msra.mxu0 %v1673
    %1755 = vmatpush.bf16.msra.mxu0 %v1669
    %1756 = vmatpush.bf16.msra.mxu0 %v1665
    %1757 = vmatpush.bf16.msra.mxu0 %v1661
    %1758 = vmatpush.bf16.msra.mxu0 %v1657
    %1759 = vmatpush.bf16.msra.mxu0 %v1653
    %1760 = vmatpush.bf16.msra.mxu0 %v1649
    %1761 = vmatpush.bf16.msra.mxu0 %v1645
    %1762 = vmatmul.bf16.gmra.mxu0 %v1346
    %v1763 = vpop.f32.mrf.mxu0
    %v1764 = vadd.f32 %v1751, %v1763
    %v1765 = vpop.f32.mrf.mxu0
    %1766 = vdwg.mxu0
    %1767 = vmatpush.bf16.msra.mxu0 %v1642
    %1768 = vmatpush.bf16.msra.mxu0 %v1638
    %1769 = vmatpush.bf16.msra.mxu0 %v1634
    %1770 = vmatpush.bf16.msra.mxu0 %v1630
    %1771 = vmatpush.bf16.msra.mxu0 %v1626
    %1772 = vmatpush.bf16.msra.mxu0 %v1622
    %1773 = vmatpush.bf16.msra.mxu0 %v1618
    %1774 = vmatpush.bf16.msra.mxu0 %v1614
    %1775 = vmatmul.bf16.gmra.mxu0 %v1178
    %v1776 = vpop.f32.mrf.mxu0
    %v1777 = vadd.f32 %v1414, %v1776
    %v1778 = vpop.f32.mrf.mxu0
    %1779 = vdwg.mxu0
    %1780 = vmatpush.bf16.msra.mxu0 %v1674
    %1781 = vmatpush.bf16.msra.mxu0 %v1670
    %1782 = vmatpush.bf16.msra.mxu0 %v1666
    %1783 = vmatpush.bf16.msra.mxu0 %v1662
    %1784 = vmatpush.bf16.msra.mxu0 %v1658
    %1785 = vmatpush.bf16.msra.mxu0 %v1654
    %1786 = vmatpush.bf16.msra.mxu0 %v1650
    %1787 = vmatpush.bf16.msra.mxu0 %v1646
    %1788 = vmatmul.bf16.gmra.mxu0 %v1346
    %v1789 = vpop.f32.mrf.mxu0
    %v1790 = vadd.f32 %v1777, %v1789
    %v1791 = vpop.f32.mrf.mxu0
    %1792 = vdwg.mxu0
    %1793 = vmatpush.bf16.msra.mxu0 %v1643
    %1794 = vmatpush.bf16.msra.mxu0 %v1639
    %1795 = vmatpush.bf16.msra.mxu0 %v1635
    %1796 = vmatpush.bf16.msra.mxu0 %v1631
    %1797 = vmatpush.bf16.msra.mxu0 %v1627
    %1798 = vmatpush.bf16.msra.mxu0 %v1623
    %1799 = vmatpush.bf16.msra.mxu0 %v1619
    %1800 = vmatpush.bf16.msra.mxu0 %v1615
    %1801 = vmatmul.bf16.gmra.mxu0 %v1178
    %v1802 = vpop.f32.mrf.mxu0
    %v1803 = vadd.f32 %v1415, %v1802
    %v1804 = vpop.f32.mrf.mxu0
    %1805 = vdwg.mxu0
    %1806 = vmatpush.bf16.msra.mxu0 %v1675
    %1807 = vmatpush.bf16.msra.mxu0 %v1671
    %1808 = vmatpush.bf16.msra.mxu0 %v1667
    %1809 = vmatpush.bf16.msra.mxu0 %v1663
    %1810 = vmatpush.bf16.msra.mxu0 %v1659
    %1811 = vmatpush.bf16.msra.mxu0 %v1655
    %1812 = vmatpush.bf16.msra.mxu0 %v1651
    %1813 = vmatpush.bf16.msra.mxu0 %v1647
    %1814 = vmatmul.bf16.gmra.mxu0 %v1346
    %v1815 = vpop.f32.mrf.mxu0
    %v1816 = vadd.f32 %v1803, %v1815
    %v1817 = vpop.f32.mrf.mxu0
    %1818 = vdwg.mxu0
    %1819 = vmatpush.bf16.msra.mxu0 %v1644
    %1820 = vmatpush.bf16.msra.mxu0 %v1640
    %1821 = vmatpush.bf16.msra.mxu0 %v1636
    %1822 = vmatpush.bf16.msra.mxu0 %v1632
    %1823 = vmatpush.bf16.msra.mxu0 %v1628
    %1824 = vmatpush.bf16.msra.mxu0 %v1624
    %1825 = vmatpush.bf16.msra.mxu0 %v1620
    %1826 = vmatpush.bf16.msra.mxu0 %v1616
    %1827 = vmatmul.bf16.gmra.mxu0 %v1178
    %v1828 = vpop.f32.mrf.mxu0
    %v1829 = vadd.f32 %v1416, %v1828
    %v1830 = vpop.f32.mrf.mxu0
    %1831 = vdwg.mxu0
    %1832 = vmatpush.bf16.msra.mxu0 %v1676
    %1833 = vmatpush.bf16.msra.mxu0 %v1672
    %1834 = vmatpush.bf16.msra.mxu0 %v1668
    %1835 = vmatpush.bf16.msra.mxu0 %v1664
    %1836 = vmatpush.bf16.msra.mxu0 %v1660
    %1837 = vmatpush.bf16.msra.mxu0 %v1656
    %1838 = vmatpush.bf16.msra.mxu0 %v1652
    %1839 = vmatpush.bf16.msra.mxu0 %v1648
    %1840 = vmatmul.bf16.gmra.mxu0 %v1346
    %v1841 = vpop.f32.mrf.mxu0
    %v1842 = vadd.f32 %v1829, %v1841
    %v1843 = vpop.f32.mrf.mxu0
    %1844 = vdwg.mxu0
    %v1845 = vxor.u32 %v1764, 2147483648
    %v1846 = vxor.u32 %v1790, 2147483648
    %v1847 = vxor.u32 %v1816, 2147483648
    %v1848 = vmul.f32 %v1845, 1.442695
    %v1849 = vpow.pop %v1848
    %v1850 = vmul.f32 %v1846, 1.442695
    %v1851 = vpow.pop %v1850
    %v1852 = vmul.f32 %v1847, 1.442695
    %v1853 = vpow.pop %v1852
    %v1854 = vadd.f32 %v1849, 1.0
    %v1855 = vadd.f32 %v1851, 1.0
    %v1856 = vadd.f32 %v1853, 1.0
    %v1857 = vrcp.pop %v1854
    %v1858 = vmul.f32 %v1854, %v1857
    %v1859 = vsub.f32 1.0, %v1858
    %v1860 = vmul.f32 %v1857, %v1859
    %v1861 = vadd.f32 %v1857, %v1860
    %vm1862 = vweird.f32 %v1854
    %vm1863 = vweird.f32 %v1857
    %vm1864 = vmor %vm1862, %vm1863
    %v1865 = vsel %vm1864, %v1857, %v1861
    %v1866 = vand.u32 2147483647, %v1854
    %vm1867 = vcmp.eq.f32.partialorder %v1866, 8.507059e+37
    %v1868 = vand.u32 %v1854, 2147483648
    %v1869 = vor.u32 1.1754944e-38, %v1868
    %v1870 = vsel %vm1867, %v1869, %v1865
    %v1871 = vmul.f32 1.0, %v1870
    %v1872 = vrcp.pop %v1855
    %v1873 = vmul.f32 %v1855, %v1872
    %v1874 = vsub.f32 1.0, %v1873
    %v1875 = vmul.f32 %v1872, %v1874
    %v1876 = vadd.f32 %v1872, %v1875
    %vm1877 = vweird.f32 %v1855
    %vm1878 = vweird.f32 %v1872
    %vm1879 = vmor %vm1877, %vm1878
    %v1880 = vsel %vm1879, %v1872, %v1876
    %v1881 = vand.u32 2147483647, %v1855
    %vm1882 = vcmp.eq.f32.partialorder %v1881, 8.507059e+37
    %v1883 = vand.u32 %v1855, 2147483648
    %v1884 = vor.u32 1.1754944e-38, %v1883
    %v1885 = vsel %vm1882, %v1884, %v1880
    %v1886 = vmul.f32 1.0, %v1885
    %v1887 = vrcp.pop %v1856
    %v1888 = vmul.f32 %v1856, %v1887
    %v1889 = vsub.f32 1.0, %v1888
    %v1890 = vmul.f32 %v1887, %v1889
    %v1891 = vadd.f32 %v1887, %v1890
    %vm1892 = vweird.f32 %v1856
    %vm1893 = vweird.f32 %v1887
    %vm1894 = vmor %vm1892, %vm1893
    %v1895 = vsel %vm1894, %v1887, %v1891
    %v1896 = vand.u32 2147483647, %v1856
    %vm1897 = vcmp.eq.f32.partialorder %v1896, 8.507059e+37
    %v1898 = vand.u32 %v1856, 2147483648
    %v1899 = vor.u32 1.1754944e-38, %v1898
    %v1900 = vsel %vm1897, %v1899, %v1895
    %v1901 = vmul.f32 1.0, %v1900
    %v1902 = vtanh.pop %v1842
    %v1903 = vmul.f32 %v1886, %v49
    %v1904 = vmul.f32 %v1871, %v1902
    %v1905 = vadd.f32 %v1903, %v1904
    %v1906 = vtanh.pop %v1905
    %v1907 = vmul.f32 %v1901, %v1906
    %s1908 = scalar_lea.vmem %s0, 96
    %v1909 = vld [vmem:[%s1908] sm:$0xff]
    %v1910 = vld [vmem:[%s1908 + $0x8] sm:$0xff]
    %v1911 = vld [vmem:[%s1908 + $0x10] sm:$0xff]
    %v1912 = vld [vmem:[%s1908 + $0x18] sm:$0xff]
    %v1913 = vpack.c.bf16 %v1177, %v1177
    %1914 = vmatpush.bf16.msra.mxu0 %v211
    %1915 = vmatpush.bf16.msra.mxu0 %v207
    %1916 = vmatpush.bf16.msra.mxu0 %v203
    %1917 = vmatpush.bf16.msra.mxu0 %v199
    %1918 = vmatpush.bf16.msra.mxu0 %v195
    %1919 = vmatpush.bf16.msra.mxu0 %v191
    %1920 = vmatpush.bf16.msra.mxu0 %v187
    %1921 = vmatpush.bf16.msra.mxu0 %v183
    %1922 = vmatmul.bf16.gmra.mxu0 %v1913
    %v1923 = vpop.f32.mrf.mxu0
    %v1924 = vadd.f32 0.0, %v1923
    %v1925 = vpop.f32.mrf.mxu0
    %1926 = vdwg.mxu0
    %1927 = vmatpush.bf16.msra.mxu0 %v212
    %1928 = vmatpush.bf16.msra.mxu0 %v208
    %1929 = vmatpush.bf16.msra.mxu0 %v204
    %1930 = vmatpush.bf16.msra.mxu0 %v200
    %1931 = vmatpush.bf16.msra.mxu0 %v196
    %1932 = vmatpush.bf16.msra.mxu0 %v192
    %1933 = vmatpush.bf16.msra.mxu0 %v188
    %1934 = vmatpush.bf16.msra.mxu0 %v184
    %1935 = vmatmul.bf16.gmra.mxu0 %v1913
    %v1936 = vpop.f32.mrf.mxu0
    %v1937 = vadd.f32 0.0, %v1936
    %v1938 = vpop.f32.mrf.mxu0
    %1939 = vdwg.mxu0
    %1940 = vmatpush.bf16.msra.mxu0 %v213
    %1941 = vmatpush.bf16.msra.mxu0 %v209
    %1942 = vmatpush.bf16.msra.mxu0 %v205
    %1943 = vmatpush.bf16.msra.mxu0 %v201
    %1944 = vmatpush.bf16.msra.mxu0 %v197
    %1945 = vmatpush.bf16.msra.mxu0 %v193
    %1946 = vmatpush.bf16.msra.mxu0 %v189
    %1947 = vmatpush.bf16.msra.mxu0 %v185
    %1948 = vmatmul.bf16.gmra.mxu0 %v1913
    %v1949 = vpop.f32.mrf.mxu0
    %v1950 = vadd.f32 0.0, %v1949
    %v1951 = vpop.f32.mrf.mxu0
    %1952 = vdwg.mxu0
    %1953 = vmatpush.bf16.msra.mxu0 %v214
    %1954 = vmatpush.bf16.msra.mxu0 %v210
    %1955 = vmatpush.bf16.msra.mxu0 %v206
    %1956 = vmatpush.bf16.msra.mxu0 %v202
    %1957 = vmatpush.bf16.msra.mxu0 %v198
    %1958 = vmatpush.bf16.msra.mxu0 %v194
    %1959 = vmatpush.bf16.msra.mxu0 %v190
    %1960 = vmatpush.bf16.msra.mxu0 %v186
    %1961 = vmatmul.bf16.gmra.mxu0 %v1913
    %v1962 = vpop.f32.mrf.mxu0
    %v1963 = vadd.f32 0.0, %v1962
    %v1964 = vpop.f32.mrf.mxu0
    %1965 = vdwg.mxu0
    %v1966 = vadd.f32 %v1909, %v1924
    %v1967 = vadd.f32 %v1910, %v1937
    %v1968 = vadd.f32 %v1911, %v1950
    %v1969 = vadd.f32 %v1912, %v1963
    %v1970 = vxor.u32 %v1966, 2147483648
    %v1971 = vxor.u32 %v1967, 2147483648
    %v1972 = vxor.u32 %v1968, 2147483648
    %v1973 = vmul.f32 %v1970, 1.442695
    %v1974 = vpow.pop %v1973
    %v1975 = vmul.f32 %v1971, 1.442695
    %v1976 = vpow.pop %v1975
    %v1977 = vmul.f32 %v1972, 1.442695
    %v1978 = vpow.pop %v1977
    %v1979 = vadd.f32 %v1974, 1.0
    %v1980 = vadd.f32 %v1976, 1.0
    %v1981 = vadd.f32 %v1978, 1.0
    %v1982 = vrcp.pop %v1979
    %v1983 = vmul.f32 %v1979, %v1982
    %v1984 = vsub.f32 1.0, %v1983
    %v1985 = vmul.f32 %v1982, %v1984
    %v1986 = vadd.f32 %v1982, %v1985
    %vm1987 = vweird.f32 %v1979
    %vm1988 = vweird.f32 %v1982
    %vm1989 = vmor %vm1987, %vm1988
    %v1990 = vsel %vm1989, %v1982, %v1986
    %v1991 = vand.u32 2147483647, %v1979
    %vm1992 = vcmp.eq.f32.partialorder %v1991, 8.507059e+37
    %v1993 = vand.u32 %v1979, 2147483648
    %v1994 = vor.u32 1.1754944e-38, %v1993
    %v1995 = vsel %vm1992, %v1994, %v1990
    %v1996 = vmul.f32 1.0, %v1995
    %v1997 = vrcp.pop %v1980
    %v1998 = vmul.f32 %v1980, %v1997
    %v1999 = vsub.f32 1.0, %v1998
    %v2000 = vmul.f32 %v1997, %v1999
    %v2001 = vadd.f32 %v1997, %v2000
    %vm2002 = vweird.f32 %v1980
    %vm2003 = vweird.f32 %v1997
    %vm2004 = vmor %vm2002, %vm2003
    %v2005 = vsel %vm2004, %v1997, %v2001
    %v2006 = vand.u32 2147483647, %v1980
    %vm2007 = vcmp.eq.f32.partialorder %v2006, 8.507059e+37
    %v2008 = vand.u32 %v1980, 2147483648
    %v2009 = vor.u32 1.1754944e-38, %v2008
    %v2010 = vsel %vm2007, %v2009, %v2005
    %v2011 = vmul.f32 1.0, %v2010
    %v2012 = vrcp.pop %v1981
    %v2013 = vmul.f32 %v1981, %v2012
    %v2014 = vsub.f32 1.0, %v2013
    %v2015 = vmul.f32 %v2012, %v2014
    %v2016 = vadd.f32 %v2012, %v2015
    %vm2017 = vweird.f32 %v1981
    %vm2018 = vweird.f32 %v2012
    %vm2019 = vmor %vm2017, %vm2018
    %v2020 = vsel %vm2019, %v2012, %v2016
    %v2021 = vand.u32 2147483647, %v1981
    %vm2022 = vcmp.eq.f32.partialorder %v2021, 8.507059e+37
    %v2023 = vand.u32 %v1981, 2147483648
    %v2024 = vor.u32 1.1754944e-38, %v2023
    %v2025 = vsel %vm2022, %v2024, %v2020
    %v2026 = vmul.f32 1.0, %v2025
    %v2027 = vtanh.pop %v1969
    %v2028 = vmul.f32 %v2011, %v1175
    %v2029 = vmul.f32 %v1996, %v2027
    %v2030 = vadd.f32 %v2028, %v2029
    %v2031 = vtanh.pop %v2030
    %v2032 = vmul.f32 %v2026, %v2031
    %v2033 = vpack.c.bf16 %v1345, %v1345
    %2034 = vmatpush.bf16.msra.mxu0 %v786
    %2035 = vmatpush.bf16.msra.mxu0 %v782
    %2036 = vmatpush.bf16.msra.mxu0 %v778
    %2037 = vmatpush.bf16.msra.mxu0 %v774
    %2038 = vmatpush.bf16.msra.mxu0 %v770
    %2039 = vmatpush.bf16.msra.mxu0 %v766
    %2040 = vmatpush.bf16.msra.mxu0 %v762
    %2041 = vmatpush.bf16.msra.mxu0 %v758
    %2042 = vmatmul.bf16.gmra.mxu0 %v1913
    %v2043 = vpop.f32.mrf.mxu0
    %v2044 = vadd.f32 %v558, %v2043
    %v2045 = vpop.f32.mrf.mxu0
    %2046 = vdwg.mxu0
    %2047 = vmatpush.bf16.msra.mxu0 %v818
    %2048 = vmatpush.bf16.msra.mxu0 %v814
    %2049 = vmatpush.bf16.msra.mxu0 %v810
    %2050 = vmatpush.bf16.msra.mxu0 %v806
    %2051 = vmatpush.bf16.msra.mxu0 %v802
    %2052 = vmatpush.bf16.msra.mxu0 %v798
    %2053 = vmatpush.bf16.msra.mxu0 %v794
    %2054 = vmatpush.bf16.msra.mxu0 %v790
    %2055 = vmatmul.bf16.gmra.mxu0 %v2033
    %v2056 = vpop.f32.mrf.mxu0
    %v2057 = vadd.f32 %v2044, %v2056
    %v2058 = vpop.f32.mrf.mxu0
    %2059 = vdwg.mxu0
    %2060 = vmatpush.bf16.msra.mxu0 %v787
    %2061 = vmatpush.bf16.msra.mxu0 %v783
    %2062 = vmatpush.bf16.msra.mxu0 %v779
    %2063 = vmatpush.bf16.msra.mxu0 %v775
    %2064 = vmatpush.bf16.msra.mxu0 %v771
    %2065 = vmatpush.bf16.msra.mxu0 %v767
    %2066 = vmatpush.bf16.msra.mxu0 %v763
    %2067 = vmatpush.bf16.msra.mxu0 %v759
    %2068 = vmatmul.bf16.gmra.mxu0 %v1913
    %v2069 = vpop.f32.mrf.mxu0
    %v2070 = vadd.f32 %v559, %v2069
    %v2071 = vpop.f32.mrf.mxu0
    %2072 = vdwg.mxu0
    %2073 = vmatpush.bf16.msra.mxu0 %v819
    %2074 = vmatpush.bf16.msra.mxu0 %v815
    %2075 = vmatpush.bf16.msra.mxu0 %v811
    %2076 = vmatpush.bf16.msra.mxu0 %v807
    %2077 = vmatpush.bf16.msra.mxu0 %v803
    %2078 = vmatpush.bf16.msra.mxu0 %v799
    %2079 = vmatpush.bf16.msra.mxu0 %v795
    %2080 = vmatpush.bf16.msra.mxu0 %v791
    %2081 = vmatmul.bf16.gmra.mxu0 %v2033
    %v2082 = vpop.f32.mrf.mxu0
    %v2083 = vadd.f32 %v2070, %v2082
    %v2084 = vpop.f32.mrf.mxu0
    %2085 = vdwg.mxu0
    %2086 = vmatpush.bf16.msra.mxu0 %v788
    %2087 = vmatpush.bf16.msra.mxu0 %v784
    %2088 = vmatpush.bf16.msra.mxu0 %v780
    %2089 = vmatpush.bf16.msra.mxu0 %v776
    %2090 = vmatpush.bf16.msra.mxu0 %v772
    %2091 = vmatpush.bf16.msra.mxu0 %v768
    %2092 = vmatpush.bf16.msra.mxu0 %v764
    %2093 = vmatpush.bf16.msra.mxu0 %v760
    %2094 = vmatmul.bf16.gmra.mxu0 %v1913
    %v2095 = vpop.f32.mrf.mxu0
    %v2096 = vadd.f32 %v560, %v2095
    %v2097 = vpop.f32.mrf.mxu0
    %2098 = vdwg.mxu0
    %2099 = vmatpush.bf16.msra.mxu0 %v820
    %2100 = vmatpush.bf16.msra.mxu0 %v816
    %2101 = vmatpush.bf16.msra.mxu0 %v812
    %2102 = vmatpush.bf16.msra.mxu0 %v808
    %2103 = vmatpush.bf16.msra.mxu0 %v804
    %2104 = vmatpush.bf16.msra.mxu0 %v800
    %2105 = vmatpush.bf16.msra.mxu0 %v796
    %2106 = vmatpush.bf16.msra.mxu0 %v792
    %2107 = vmatmul.bf16.gmra.mxu0 %v2033
    %v2108 = vpop.f32.mrf.mxu0
    %v2109 = vadd.f32 %v2096, %v2108
    %v2110 = vpop.f32.mrf.mxu0
    %2111 = vdwg.mxu0
    %2112 = vmatpush.bf16.msra.mxu0 %v789
    %2113 = vmatpush.bf16.msra.mxu0 %v785
    %2114 = vmatpush.bf16.msra.mxu0 %v781
    %2115 = vmatpush.bf16.msra.mxu0 %v777
    %2116 = vmatpush.bf16.msra.mxu0 %v773
    %2117 = vmatpush.bf16.msra.mxu0 %v769
    %2118 = vmatpush.bf16.msra.mxu0 %v765
    %2119 = vmatpush.bf16.msra.mxu0 %v761
    %2120 = vmatmul.bf16.gmra.mxu0 %v1913
    %v2121 = vpop.f32.mrf.mxu0
    %v2122 = vadd.f32 %v561, %v2121
    %v2123 = vpop.f32.mrf.mxu0
    %2124 = vdwg.mxu0
    %2125 = vmatpush.bf16.msra.mxu0 %v821
    %2126 = vmatpush.bf16.msra.mxu0 %v817
    %2127 = vmatpush.bf16.msra.mxu0 %v813
    %2128 = vmatpush.bf16.msra.mxu0 %v809
    %2129 = vmatpush.bf16.msra.mxu0 %v805
    %2130 = vmatpush.bf16.msra.mxu0 %v801
    %2131 = vmatpush.bf16.msra.mxu0 %v797
    %2132 = vmatpush.bf16.msra.mxu0 %v793
    %2133 = vmatmul.bf16.gmra.mxu0 %v2033
    %v2134 = vpop.f32.mrf.mxu0
    %v2135 = vadd.f32 %v2122, %v2134
    %v2136 = vpop.f32.mrf.mxu0
    %2137 = vdwg.mxu0
    %v2138 = vxor.u32 %v2057, 2147483648
    %v2139 = vxor.u32 %v2083, 2147483648
    %v2140 = vxor.u32 %v2109, 2147483648
    %v2141 = vmul.f32 %v2138, 1.442695
    %v2142 = vpow.pop %v2141
    %v2143 = vmul.f32 %v2139, 1.442695
    %v2144 = vpow.pop %v2143
    %v2145 = vmul.f32 %v2140, 1.442695
    %v2146 = vpow.pop %v2145
    %v2147 = vadd.f32 %v2142, 1.0
    %v2148 = vadd.f32 %v2144, 1.0
    %v2149 = vadd.f32 %v2146, 1.0
    %v2150 = vrcp.pop %v2147
    %v2151 = vmul.f32 %v2147, %v2150
    %v2152 = vsub.f32 1.0, %v2151
    %v2153 = vmul.f32 %v2150, %v2152
    %v2154 = vadd.f32 %v2150, %v2153
    %vm2155 = vweird.f32 %v2147
    %vm2156 = vweird.f32 %v2150
    %vm2157 = vmor %vm2155, %vm2156
    %v2158 = vsel %vm2157, %v2150, %v2154
    %v2159 = vand.u32 2147483647, %v2147
    %vm2160 = vcmp.eq.f32.partialorder %v2159, 8.507059e+37
    %v2161 = vand.u32 %v2147, 2147483648
    %v2162 = vor.u32 1.1754944e-38, %v2161
    %v2163 = vsel %vm2160, %v2162, %v2158
    %v2164 = vmul.f32 1.0, %v2163
    %v2165 = vrcp.pop %v2148
    %v2166 = vmul.f32 %v2148, %v2165
    %v2167 = vsub.f32 1.0, %v2166
    %v2168 = vmul.f32 %v2165, %v2167
    %v2169 = vadd.f32 %v2165, %v2168
    %vm2170 = vweird.f32 %v2148
    %vm2171 = vweird.f32 %v2165
    %vm2172 = vmor %vm2170, %vm2171
    %v2173 = vsel %vm2172, %v2165, %v2169
    %v2174 = vand.u32 2147483647, %v2148
    %vm2175 = vcmp.eq.f32.partialorder %v2174, 8.507059e+37
    %v2176 = vand.u32 %v2148, 2147483648
    %v2177 = vor.u32 1.1754944e-38, %v2176
    %v2178 = vsel %vm2175, %v2177, %v2173
    %v2179 = vmul.f32 1.0, %v2178
    %v2180 = vrcp.pop %v2149
    %v2181 = vmul.f32 %v2149, %v2180
    %v2182 = vsub.f32 1.0, %v2181
    %v2183 = vmul.f32 %v2180, %v2182
    %v2184 = vadd.f32 %v2180, %v2183
    %vm2185 = vweird.f32 %v2149
    %vm2186 = vweird.f32 %v2180
    %vm2187 = vmor %vm2185, %vm2186
    %v2188 = vsel %vm2187, %v2180, %v2184
    %v2189 = vand.u32 2147483647, %v2149
    %vm2190 = vcmp.eq.f32.partialorder %v2189, 8.507059e+37
    %v2191 = vand.u32 %v2149, 2147483648
    %v2192 = vor.u32 1.1754944e-38, %v2191
    %v2193 = vsel %vm2190, %v2192, %v2188
    %v2194 = vmul.f32 1.0, %v2193
    %v2195 = vtanh.pop %v2135
    %v2196 = vmul.f32 %v2179, %v1343
    %v2197 = vmul.f32 %v2164, %v2195
    %v2198 = vadd.f32 %v2196, %v2197
    %v2199 = vtanh.pop %v2198
    %v2200 = vmul.f32 %v2194, %v2199
    %v2201 = vpack.c.bf16 %v1907, %v1907
    %2202 = vmatpush.bf16.msra.mxu0 %v1641
    %2203 = vmatpush.bf16.msra.mxu0 %v1637
    %2204 = vmatpush.bf16.msra.mxu0 %v1633
    %2205 = vmatpush.bf16.msra.mxu0 %v1629
    %2206 = vmatpush.bf16.msra.mxu0 %v1625
    %2207 = vmatpush.bf16.msra.mxu0 %v1621
    %2208 = vmatpush.bf16.msra.mxu0 %v1617
    %2209 = vmatpush.bf16.msra.mxu0 %v1613
    %2210 = vmatmul.bf16.gmra.mxu0 %v2033
    %v2211 = vpop.f32.mrf.mxu0
    %v2212 = vadd.f32 %v1413, %v2211
    %v2213 = vpop.f32.mrf.mxu0
    %2214 = vdwg.mxu0
    %2215 = vmatpush.bf16.msra.mxu0 %v1673
    %2216 = vmatpush.bf16.msra.mxu0 %v1669
    %2217 = vmatpush.bf16.msra.mxu0 %v1665
    %2218 = vmatpush.bf16.msra.mxu0 %v1661
    %2219 = vmatpush.bf16.msra.mxu0 %v1657
    %2220 = vmatpush.bf16.msra.mxu0 %v1653
    %2221 = vmatpush.bf16.msra.mxu0 %v1649
    %2222 = vmatpush.bf16.msra.mxu0 %v1645
    %2223 = vmatmul.bf16.gmra.mxu0 %v2201
    %v2224 = vpop.f32.mrf.mxu0
    %v2225 = vadd.f32 %v2212, %v2224
    %v2226 = vpop.f32.mrf.mxu0
    %2227 = vdwg.mxu0
    %2228 = vmatpush.bf16.msra.mxu0 %v1642
    %2229 = vmatpush.bf16.msra.mxu0 %v1638
    %2230 = vmatpush.bf16.msra.mxu0 %v1634
    %2231 = vmatpush.bf16.msra.mxu0 %v1630
    %2232 = vmatpush.bf16.msra.mxu0 %v1626
    %2233 = vmatpush.bf16.msra.mxu0 %v1622
    %2234 = vmatpush.bf16.msra.mxu0 %v1618
    %2235 = vmatpush.bf16.msra.mxu0 %v1614
    %2236 = vmatmul.bf16.gmra.mxu0 %v2033
    %v2237 = vpop.f32.mrf.mxu0
    %v2238 = vadd.f32 %v1414, %v2237
    %v2239 = vpop.f32.mrf.mxu0
    %2240 = vdwg.mxu0
    %2241 = vmatpush.bf16.msra.mxu0 %v1674
    %2242 = vmatpush.bf16.msra.mxu0 %v1670
    %2243 = vmatpush.bf16.msra.mxu0 %v1666
    %2244 = vmatpush.bf16.msra.mxu0 %v1662
    %2245 = vmatpush.bf16.msra.mxu0 %v1658
    %2246 = vmatpush.bf16.msra.mxu0 %v1654
    %2247 = vmatpush.bf16.msra.mxu0 %v1650
    %2248 = vmatpush.bf16.msra.mxu0 %v1646
    %2249 = vmatmul.bf16.gmra.mxu0 %v2201
    %v2250 = vpop.f32.mrf.mxu0
    %v2251 = vadd.f32 %v2238, %v2250
    %v2252 = vpop.f32.mrf.mxu0
    %2253 = vdwg.mxu0
    %2254 = vmatpush.bf16.msra.mxu0 %v1643
    %2255 = vmatpush.bf16.msra.mxu0 %v1639
    %2256 = vmatpush.bf16.msra.mxu0 %v1635
    %2257 = vmatpush.bf16.msra.mxu0 %v1631
    %2258 = vmatpush.bf16.msra.mxu0 %v1627
    %2259 = vmatpush.bf16.msra.mxu0 %v1623
    %2260 = vmatpush.bf16.msra.mxu0 %v1619
    %2261 = vmatpush.bf16.msra.mxu0 %v1615
    %2262 = vmatmul.bf16.gmra.mxu0 %v2033
    %v2263 = vpop.f32.mrf.mxu0
    %v2264 = vadd.f32 %v1415, %v2263
    %v2265 = vpop.f32.mrf.mxu0
    %2266 = vdwg.mxu0
    %2267 = vmatpush.bf16.msra.mxu0 %v1675
    %2268 = vmatpush.bf16.msra.mxu0 %v1671
    %2269 = vmatpush.bf16.msra.mxu0 %v1667
    %2270 = vmatpush.bf16.msra.mxu0 %v1663
    %2271 = vmatpush.bf16.msra.mxu0 %v1659
    %2272 = vmatpush.bf16.msra.mxu0 %v1655
    %2273 = vmatpush.bf16.msra.mxu0 %v1651
    %2274 = vmatpush.bf16.msra.mxu0 %v1647
    %2275 = vmatmul.bf16.gmra.mxu0 %v2201
    %v2276 = vpop.f32.mrf.mxu0
    %v2277 = vadd.f32 %v2264, %v2276
    %v2278 = vpop.f32.mrf.mxu0
    %2279 = vdwg.mxu0
    %2280 = vmatpush.bf16.msra.mxu0 %v1644
    %2281 = vmatpush.bf16.msra.mxu0 %v1640
    %2282 = vmatpush.bf16.msra.mxu0 %v1636
    %2283 = vmatpush.bf16.msra.mxu0 %v1632
    %2284 = vmatpush.bf16.msra.mxu0 %v1628
    %2285 = vmatpush.bf16.msra.mxu0 %v1624
    %2286 = vmatpush.bf16.msra.mxu0 %v1620
    %2287 = vmatpush.bf16.msra.mxu0 %v1616
    %2288 = vmatmul.bf16.gmra.mxu0 %v2033
    %v2289 = vpop.f32.mrf.mxu0
    %v2290 = vadd.f32 %v1416, %v2289
    %v2291 = vpop.f32.mrf.mxu0
    %2292 = vdwg.mxu0
    %2293 = vmatpush.bf16.msra.mxu0 %v1676
    %2294 = vmatpush.bf16.msra.mxu0 %v1672
    %2295 = vmatpush.bf16.msra.mxu0 %v1668
    %2296 = vmatpush.bf16.msra.mxu0 %v1664
    %2297 = vmatpush.bf16.msra.mxu0 %v1660
    %2298 = vmatpush.bf16.msra.mxu0 %v1656
    %2299 = vmatpush.bf16.msra.mxu0 %v1652
    %2300 = vmatpush.bf16.msra.mxu0 %v1648
    %2301 = vmatmul.bf16.gmra.mxu0 %v2201
    %v2302 = vpop.f32.mrf.mxu0
    %v2303 = vadd.f32 %v2290, %v2302
    %v2304 = vpop.f32.mrf.mxu0
    %2305 = vdwg.mxu0
    %v2306 = vxor.u32 %v2225, 2147483648
    %v2307 = vxor.u32 %v2251, 2147483648
    %v2308 = vxor.u32 %v2277, 2147483648
    %v2309 = vmul.f32 %v2306, 1.442695
    %v2310 = vpow.pop %v2309
    %v2311 = vmul.f32 %v2307, 1.442695
    %v2312 = vpow.pop %v2311
    %v2313 = vmul.f32 %v2308, 1.442695
    %v2314 = vpow.pop %v2313
    %v2315 = vadd.f32 %v2310, 1.0
    %v2316 = vadd.f32 %v2312, 1.0
    %v2317 = vadd.f32 %v2314, 1.0
    %v2318 = vrcp.pop %v2315
    %v2319 = vmul.f32 %v2315, %v2318
    %v2320 = vsub.f32 1.0, %v2319
    %v2321 = vmul.f32 %v2318, %v2320
    %v2322 = vadd.f32 %v2318, %v2321
    %vm2323 = vweird.f32 %v2315
    %vm2324 = vweird.f32 %v2318
    %vm2325 = vmor %vm2323, %vm2324
    %v2326 = vsel %vm2325, %v2318, %v2322
    %v2327 = vand.u32 2147483647, %v2315
    %vm2328 = vcmp.eq.f32.partialorder %v2327, 8.507059e+37
    %v2329 = vand.u32 %v2315, 2147483648
    %v2330 = vor.u32 1.1754944e-38, %v2329
    %v2331 = vsel %vm2328, %v2330, %v2326
    %v2332 = vmul.f32 1.0, %v2331
    %v2333 = vrcp.pop %v2316
    %v2334 = vmul.f32 %v2316, %v2333
    %v2335 = vsub.f32 1.0, %v2334
    %v2336 = vmul.f32 %v2333, %v2335
    %v2337 = vadd.f32 %v2333, %v2336
    %vm2338 = vweird.f32 %v2316
    %vm2339 = vweird.f32 %v2333
    %vm2340 = vmor %vm2338, %vm2339
    %v2341 = vsel %vm2340, %v2333, %v2337
    %v2342 = vand.u32 2147483647, %v2316
    %vm2343 = vcmp.eq.f32.partialorder %v2342, 8.507059e+37
    %v2344 = vand.u32 %v2316, 2147483648
    %v2345 = vor.u32 1.1754944e-38, %v2344
    %v2346 = vsel %vm2343, %v2345, %v2341
    %v2347 = vmul.f32 1.0, %v2346
    %v2348 = vrcp.pop %v2317
    %v2349 = vmul.f32 %v2317, %v2348
    %v2350 = vsub.f32 1.0, %v2349
    %v2351 = vmul.f32 %v2348, %v2350
    %v2352 = vadd.f32 %v2348, %v2351
    %vm2353 = vweird.f32 %v2317
    %vm2354 = vweird.f32 %v2348
    %vm2355 = vmor %vm2353, %vm2354
    %v2356 = vsel %vm2355, %v2348, %v2352
    %v2357 = vand.u32 2147483647, %v2317
    %vm2358 = vcmp.eq.f32.partialorder %v2357, 8.507059e+37
    %v2359 = vand.u32 %v2317, 2147483648
    %v2360 = vor.u32 1.1754944e-38, %v2359
    %v2361 = vsel %vm2358, %v2360, %v2356
    %v2362 = vmul.f32 1.0, %v2361
    %v2363 = vtanh.pop %v2303
    %v2364 = vmul.f32 %v2347, %v1905
    %v2365 = vmul.f32 %v2332, %v2363
    %v2366 = vadd.f32 %v2364, %v2365
    %v2367 = vtanh.pop %v2366
    %v2368 = vmul.f32 %v2362, %v2367
    %s2369 = scalar_lea.vmem %s0, 128
    %v2370 = vld [vmem:[%s2369] sm:$0xff]
    %v2371 = vld [vmem:[%s2369 + $0x8] sm:$0xff]
    %v2372 = vld [vmem:[%s2369 + $0x10] sm:$0xff]
    %v2373 = vld [vmem:[%s2369 + $0x18] sm:$0xff]
    %v2374 = vpack.c.bf16 %v2032, %v2032
    %2375 = vmatpush.bf16.msra.mxu0 %v211
    %2376 = vmatpush.bf16.msra.mxu0 %v207
    %2377 = vmatpush.bf16.msra.mxu0 %v203
    %2378 = vmatpush.bf16.msra.mxu0 %v199
    %2379 = vmatpush.bf16.msra.mxu0 %v195
    %2380 = vmatpush.bf16.msra.mxu0 %v191
    %2381 = vmatpush.bf16.msra.mxu0 %v187
    %2382 = vmatpush.bf16.msra.mxu0 %v183
    %2383 = vmatmul.bf16.gmra.mxu0 %v2374
    %v2384 = vpop.f32.mrf.mxu0
    %v2385 = vadd.f32 0.0, %v2384
    %v2386 = vpop.f32.mrf.mxu0
    %2387 = vdwg.mxu0
    %2388 = vmatpush.bf16.msra.mxu0 %v212
    %2389 = vmatpush.bf16.msra.mxu0 %v208
    %2390 = vmatpush.bf16.msra.mxu0 %v204
    %2391 = vmatpush.bf16.msra.mxu0 %v200
    %2392 = vmatpush.bf16.msra.mxu0 %v196
    %2393 = vmatpush.bf16.msra.mxu0 %v192
    %2394 = vmatpush.bf16.msra.mxu0 %v188
    %2395 = vmatpush.bf16.msra.mxu0 %v184
    %2396 = vmatmul.bf16.gmra.mxu0 %v2374
    %v2397 = vpop.f32.mrf.mxu0
    %v2398 = vadd.f32 0.0, %v2397
    %v2399 = vpop.f32.mrf.mxu0
    %2400 = vdwg.mxu0
    %2401 = vmatpush.bf16.msra.mxu0 %v213
    %2402 = vmatpush.bf16.msra.mxu0 %v209
    %2403 = vmatpush.bf16.msra.mxu0 %v205
    %2404 = vmatpush.bf16.msra.mxu0 %v201
    %2405 = vmatpush.bf16.msra.mxu0 %v197
    %2406 = vmatpush.bf16.msra.mxu0 %v193
    %2407 = vmatpush.bf16.msra.mxu0 %v189
    %2408 = vmatpush.bf16.msra.mxu0 %v185
    %2409 = vmatmul.bf16.gmra.mxu0 %v2374
    %v2410 = vpop.f32.mrf.mxu0
    %v2411 = vadd.f32 0.0, %v2410
    %v2412 = vpop.f32.mrf.mxu0
    %2413 = vdwg.mxu0
    %2414 = vmatpush.bf16.msra.mxu0 %v214
    %2415 = vmatpush.bf16.msra.mxu0 %v210
    %2416 = vmatpush.bf16.msra.mxu0 %v206
    %2417 = vmatpush.bf16.msra.mxu0 %v202
    %2418 = vmatpush.bf16.msra.mxu0 %v198
    %2419 = vmatpush.bf16.msra.mxu0 %v194
    %2420 = vmatpush.bf16.msra.mxu0 %v190
    %2421 = vmatpush.bf16.msra.mxu0 %v186
    %2422 = vmatmul.bf16.gmra.mxu0 %v2374
    %v2423 = vpop.f32.mrf.mxu0
    %v2424 = vadd.f32 0.0, %v2423
    %v2425 = vpop.f32.mrf.mxu0
    %2426 = vdwg.mxu0
    %v2427 = vadd.f32 %v2370, %v2385
    %v2428 = vadd.f32 %v2371, %v2398
    %v2429 = vadd.f32 %v2372, %v2411
    %v2430 = vadd.f32 %v2373, %v2424
    %v2431 = vxor.u32 %v2427, 2147483648
    %v2432 = vxor.u32 %v2428, 2147483648
    %v2433 = vxor.u32 %v2429, 2147483648
    %v2434 = vmul.f32 %v2431, 1.442695
    %v2435 = vpow.pop %v2434
    %v2436 = vmul.f32 %v2432, 1.442695
    %v2437 = vpow.pop %v2436
    %v2438 = vmul.f32 %v2433, 1.442695
    %v2439 = vpow.pop %v2438
    %v2440 = vadd.f32 %v2435, 1.0
    %v2441 = vadd.f32 %v2437, 1.0
    %v2442 = vadd.f32 %v2439, 1.0
    %v2443 = vrcp.pop %v2440
    %v2444 = vmul.f32 %v2440, %v2443
    %v2445 = vsub.f32 1.0, %v2444
    %v2446 = vmul.f32 %v2443, %v2445
    %v2447 = vadd.f32 %v2443, %v2446
    %vm2448 = vweird.f32 %v2440
    %vm2449 = vweird.f32 %v2443
    %vm2450 = vmor %vm2448, %vm2449
    %v2451 = vsel %vm2450, %v2443, %v2447
    %v2452 = vand.u32 2147483647, %v2440
    %vm2453 = vcmp.eq.f32.partialorder %v2452, 8.507059e+37
    %v2454 = vand.u32 %v2440, 2147483648
    %v2455 = vor.u32 1.1754944e-38, %v2454
    %v2456 = vsel %vm2453, %v2455, %v2451
    %v2457 = vmul.f32 1.0, %v2456
    %v2458 = vrcp.pop %v2441
    %v2459 = vmul.f32 %v2441, %v2458
    %v2460 = vsub.f32 1.0, %v2459
    %v2461 = vmul.f32 %v2458, %v2460
    %v2462 = vadd.f32 %v2458, %v2461
    %vm2463 = vweird.f32 %v2441
    %vm2464 = vweird.f32 %v2458
    %vm2465 = vmor %vm2463, %vm2464
    %v2466 = vsel %vm2465, %v2458, %v2462
    %v2467 = vand.u32 2147483647, %v2441
    %vm2468 = vcmp.eq.f32.partialorder %v2467, 8.507059e+37
    %v2469 = vand.u32 %v2441, 2147483648
    %v2470 = vor.u32 1.1754944e-38, %v2469
    %v2471 = vsel %vm2468, %v2470, %v2466
    %v2472 = vmul.f32 1.0, %v2471
    %v2473 = vrcp.pop %v2442
    %v2474 = vmul.f32 %v2442, %v2473
    %v2475 = vsub.f32 1.0, %v2474
    %v2476 = vmul.f32 %v2473, %v2475
    %v2477 = vadd.f32 %v2473, %v2476
    %vm2478 = vweird.f32 %v2442
    %vm2479 = vweird.f32 %v2473
    %vm2480 = vmor %vm2478, %vm2479
    %v2481 = vsel %vm2480, %v2473, %v2477
    %v2482 = vand.u32 2147483647, %v2442
    %vm2483 = vcmp.eq.f32.partialorder %v2482, 8.507059e+37
    %v2484 = vand.u32 %v2442, 2147483648
    %v2485 = vor.u32 1.1754944e-38, %v2484
    %v2486 = vsel %vm2483, %v2485, %v2481
    %v2487 = vmul.f32 1.0, %v2486
    %v2488 = vtanh.pop %v2430
    %v2489 = vmul.f32 %v2472, %v2030
    %v2490 = vmul.f32 %v2457, %v2488
    %v2491 = vadd.f32 %v2489, %v2490
    %v2492 = vtanh.pop %v2491
    %v2493 = vmul.f32 %v2487, %v2492
    %v2494 = vpack.c.bf16 %v2200, %v2200
    %2495 = vmatpush.bf16.msra.mxu0 %v786
    %2496 = vmatpush.bf16.msra.mxu0 %v782
    %2497 = vmatpush.bf16.msra.mxu0 %v778
    %2498 = vmatpush.bf16.msra.mxu0 %v774
    %2499 = vmatpush.bf16.msra.mxu0 %v770
    %2500 = vmatpush.bf16.msra.mxu0 %v766
    %2501 = vmatpush.bf16.msra.mxu0 %v762
    %2502 = vmatpush.bf16.msra.mxu0 %v758
    %2503 = vmatmul.bf16.gmra.mxu0 %v2374
    %v2504 = vpop.f32.mrf.mxu0
    %v2505 = vadd.f32 %v558, %v2504
    %v2506 = vpop.f32.mrf.mxu0
    %2507 = vdwg.mxu0
    %2508 = vmatpush.bf16.msra.mxu0 %v818
    %2509 = vmatpush.bf16.msra.mxu0 %v814
    %2510 = vmatpush.bf16.msra.mxu0 %v810
    %2511 = vmatpush.bf16.msra.mxu0 %v806
    %2512 = vmatpush.bf16.msra.mxu0 %v802
    %2513 = vmatpush.bf16.msra.mxu0 %v798
    %2514 = vmatpush.bf16.msra.mxu0 %v794
    %2515 = vmatpush.bf16.msra.mxu0 %v790
    %2516 = vmatmul.bf16.gmra.mxu0 %v2494
    %v2517 = vpop.f32.mrf.mxu0
    %v2518 = vadd.f32 %v2505, %v2517
    %v2519 = vpop.f32.mrf.mxu0
    %2520 = vdwg.mxu0
    %2521 = vmatpush.bf16.msra.mxu0 %v787
    %2522 = vmatpush.bf16.msra.mxu0 %v783
    %2523 = vmatpush.bf16.msra.mxu0 %v779
    %2524 = vmatpush.bf16.msra.mxu0 %v775
    %2525 = vmatpush.bf16.msra.mxu0 %v771
    %2526 = vmatpush.bf16.msra.mxu0 %v767
    %2527 = vmatpush.bf16.msra.mxu0 %v763
    %2528 = vmatpush.bf16.msra.mxu0 %v759
    %2529 = vmatmul.bf16.gmra.mxu0 %v2374
    %v2530 = vpop.f32.mrf.mxu0
    %v2531 = vadd.f32 %v559, %v2530
    %v2532 = vpop.f32.mrf.mxu0
    %2533 = vdwg.mxu0
    %2534 = vmatpush.bf16.msra.mxu0 %v819
    %2535 = vmatpush.bf16.msra.mxu0 %v815
    %2536 = vmatpush.bf16.msra.mxu0 %v811
    %2537 = vmatpush.bf16.msra.mxu0 %v807
    %2538 = vmatpush.bf16.msra.mxu0 %v803
    %2539 = vmatpush.bf16.msra.mxu0 %v799
    %2540 = vmatpush.bf16.msra.mxu0 %v795
    %2541 = vmatpush.bf16.msra.mxu0 %v791
    %2542 = vmatmul.bf16.gmra.mxu0 %v2494
    %v2543 = vpop.f32.mrf.mxu0
    %v2544 = vadd.f32 %v2531, %v2543
    %v2545 = vpop.f32.mrf.mxu0
    %2546 = vdwg.mxu0
    %2547 = vmatpush.bf16.msra.mxu0 %v788
    %2548 = vmatpush.bf16.msra.mxu0 %v784
    %2549 = vmatpush.bf16.msra.mxu0 %v780
    %2550 = vmatpush.bf16.msra.mxu0 %v776
    %2551 = vmatpush.bf16.msra.mxu0 %v772
    %2552 = vmatpush.bf16.msra.mxu0 %v768
    %2553 = vmatpush.bf16.msra.mxu0 %v764
    %2554 = vmatpush.bf16.msra.mxu0 %v760
    %2555 = vmatmul.bf16.gmra.mxu0 %v2374
    %v2556 = vpop.f32.mrf.mxu0
    %v2557 = vadd.f32 %v560, %v2556
    %v2558 = vpop.f32.mrf.mxu0
    %2559 = vdwg.mxu0
    %2560 = vmatpush.bf16.msra.mxu0 %v820
    %2561 = vmatpush.bf16.msra.mxu0 %v816
    %2562 = vmatpush.bf16.msra.mxu0 %v812
    %2563 = vmatpush.bf16.msra.mxu0 %v808
    %2564 = vmatpush.bf16.msra.mxu0 %v804
    %2565 = vmatpush.bf16.msra.mxu0 %v800
    %2566 = vmatpush.bf16.msra.mxu0 %v796
    %2567 = vmatpush.bf16.msra.mxu0 %v792
    %2568 = vmatmul.bf16.gmra.mxu0 %v2494
    %v2569 = vpop.f32.mrf.mxu0
    %v2570 = vadd.f32 %v2557, %v2569
    %v2571 = vpop.f32.mrf.mxu0
    %2572 = vdwg.mxu0
    %2573 = vmatpush.bf16.msra.mxu0 %v789
    %2574 = vmatpush.bf16.msra.mxu0 %v785
    %2575 = vmatpush.bf16.msra.mxu0 %v781
    %2576 = vmatpush.bf16.msra.mxu0 %v777
    %2577 = vmatpush.bf16.msra.mxu0 %v773
    %2578 = vmatpush.bf16.msra.mxu0 %v769
    %2579 = vmatpush.bf16.msra.mxu0 %v765
    %2580 = vmatpush.bf16.msra.mxu0 %v761
    %2581 = vmatmul.bf16.gmra.mxu0 %v2374
    %v2582 = vpop.f32.mrf.mxu0
    %v2583 = vadd.f32 %v561, %v2582
    %v2584 = vpop.f32.mrf.mxu0
    %2585 = vdwg.mxu0
    %2586 = vmatpush.bf16.msra.mxu0 %v821
    %2587 = vmatpush.bf16.msra.mxu0 %v817
    %2588 = vmatpush.bf16.msra.mxu0 %v813
    %2589 = vmatpush.bf16.msra.mxu0 %v809
    %2590 = vmatpush.bf16.msra.mxu0 %v805
    %2591 = vmatpush.bf16.msra.mxu0 %v801
    %2592 = vmatpush.bf16.msra.mxu0 %v797
    %2593 = vmatpush.bf16.msra.mxu0 %v793
    %2594 = vmatmul.bf16.gmra.mxu0 %v2494
    %v2595 = vpop.f32.mrf.mxu0
    %v2596 = vadd.f32 %v2583, %v2595
    %v2597 = vpop.f32.mrf.mxu0
    %2598 = vdwg.mxu0
    %v2599 = vxor.u32 %v2518, 2147483648
    %v2600 = vxor.u32 %v2544, 2147483648
    %v2601 = vxor.u32 %v2570, 2147483648
    %v2602 = vmul.f32 %v2599, 1.442695
    %v2603 = vpow.pop %v2602
    %v2604 = vmul.f32 %v2600, 1.442695
    %v2605 = vpow.pop %v2604
    %v2606 = vmul.f32 %v2601, 1.442695
    %v2607 = vpow.pop %v2606
    %v2608 = vadd.f32 %v2603, 1.0
    %v2609 = vadd.f32 %v2605, 1.0
    %v2610 = vadd.f32 %v2607, 1.0
    %v2611 = vrcp.pop %v2608
    %v2612 = vmul.f32 %v2608, %v2611
    %v2613 = vsub.f32 1.0, %v2612
    %v2614 = vmul.f32 %v2611, %v2613
    %v2615 = vadd.f32 %v2611, %v2614
    %vm2616 = vweird.f32 %v2608
    %vm2617 = vweird.f32 %v2611
    %vm2618 = vmor %vm2616, %vm2617
    %v2619 = vsel %vm2618, %v2611, %v2615
    %v2620 = vand.u32 2147483647, %v2608
    %vm2621 = vcmp.eq.f32.partialorder %v2620, 8.507059e+37
    %v2622 = vand.u32 %v2608, 2147483648
    %v2623 = vor.u32 1.1754944e-38, %v2622
    %v2624 = vsel %vm2621, %v2623, %v2619
    %v2625 = vmul.f32 1.0, %v2624
    %v2626 = vrcp.pop %v2609
    %v2627 = vmul.f32 %v2609, %v2626
    %v2628 = vsub.f32 1.0, %v2627
    %v2629 = vmul.f32 %v2626, %v2628
    %v2630 = vadd.f32 %v2626, %v2629
    %vm2631 = vweird.f32 %v2609
    %vm2632 = vweird.f32 %v2626
    %vm2633 = vmor %vm2631, %vm2632
    %v2634 = vsel %vm2633, %v2626, %v2630
    %v2635 = vand.u32 2147483647, %v2609
    %vm2636 = vcmp.eq.f32.partialorder %v2635, 8.507059e+37
    %v2637 = vand.u32 %v2609, 2147483648
    %v2638 = vor.u32 1.1754944e-38, %v2637
    %v2639 = vsel %vm2636, %v2638, %v2634
    %v2640 = vmul.f32 1.0, %v2639
    %v2641 = vrcp.pop %v2610
    %v2642 = vmul.f32 %v2610, %v2641
    %v2643 = vsub.f32 1.0, %v2642
    %v2644 = vmul.f32 %v2641, %v2643
    %v2645 = vadd.f32 %v2641, %v2644
    %vm2646 = vweird.f32 %v2610
    %vm2647 = vweird.f32 %v2641
    %vm2648 = vmor %vm2646, %vm2647
    %v2649 = vsel %vm2648, %v2641, %v2645
    %v2650 = vand.u32 2147483647, %v2610
    %vm2651 = vcmp.eq.f32.partialorder %v2650, 8.507059e+37
    %v2652 = vand.u32 %v2610, 2147483648
    %v2653 = vor.u32 1.1754944e-38, %v2652
    %v2654 = vsel %vm2651, %v2653, %v2649
    %v2655 = vmul.f32 1.0, %v2654
    %v2656 = vtanh.pop %v2596
    %v2657 = vmul.f32 %v2640, %v2198
    %v2658 = vmul.f32 %v2625, %v2656
    %v2659 = vadd.f32 %v2657, %v2658
    %v2660 = vtanh.pop %v2659
    %v2661 = vmul.f32 %v2655, %v2660
    %v2662 = vpack.c.bf16 %v2368, %v2368
    %2663 = vmatpush.bf16.msra.mxu0 %v1641
    %2664 = vmatpush.bf16.msra.mxu0 %v1637
    %2665 = vmatpush.bf16.msra.mxu0 %v1633
    %2666 = vmatpush.bf16.msra.mxu0 %v1629
    %2667 = vmatpush.bf16.msra.mxu0 %v1625
    %2668 = vmatpush.bf16.msra.mxu0 %v1621
    %2669 = vmatpush.bf16.msra.mxu0 %v1617
    %2670 = vmatpush.bf16.msra.mxu0 %v1613
    %2671 = vmatmul.bf16.gmra.mxu0 %v2494
    %v2672 = vpop.f32.mrf.mxu0
    %v2673 = vadd.f32 %v1413, %v2672
    %v2674 = vpop.f32.mrf.mxu0
    %2675 = vdwg.mxu0
    %2676 = vmatpush.bf16.msra.mxu0 %v1673
    %2677 = vmatpush.bf16.msra.mxu0 %v1669
    %2678 = vmatpush.bf16.msra.mxu0 %v1665
    %2679 = vmatpush.bf16.msra.mxu0 %v1661
    %2680 = vmatpush.bf16.msra.mxu0 %v1657
    %2681 = vmatpush.bf16.msra.mxu0 %v1653
    %2682 = vmatpush.bf16.msra.mxu0 %v1649
    %2683 = vmatpush.bf16.msra.mxu0 %v1645
    %2684 = vmatmul.bf16.gmra.mxu0 %v2662
    %v2685 = vpop.f32.mrf.mxu0
    %v2686 = vadd.f32 %v2673, %v2685
    %v2687 = vpop.f32.mrf.mxu0
    %2688 = vdwg.mxu0
    %2689 = vmatpush.bf16.msra.mxu0 %v1642
    %2690 = vmatpush.bf16.msra.mxu0 %v1638
    %2691 = vmatpush.bf16.msra.mxu0 %v1634
    %2692 = vmatpush.bf16.msra.mxu0 %v1630
    %2693 = vmatpush.bf16.msra.mxu0 %v1626
    %2694 = vmatpush.bf16.msra.mxu0 %v1622
    %2695 = vmatpush.bf16.msra.mxu0 %v1618
    %2696 = vmatpush.bf16.msra.mxu0 %v1614
    %2697 = vmatmul.bf16.gmra.mxu0 %v2494
    %v2698 = vpop.f32.mrf.mxu0
    %v2699 = vadd.f32 %v1414, %v2698
    %v2700 = vpop.f32.mrf.mxu0
    %2701 = vdwg.mxu0
    %2702 = vmatpush.bf16.msra.mxu0 %v1674
    %2703 = vmatpush.bf16.msra.mxu0 %v1670
    %2704 = vmatpush.bf16.msra.mxu0 %v1666
    %2705 = vmatpush.bf16.msra.mxu0 %v1662
    %2706 = vmatpush.bf16.msra.mxu0 %v1658
    %2707 = vmatpush.bf16.msra.mxu0 %v1654
    %2708 = vmatpush.bf16.msra.mxu0 %v1650
    %2709 = vmatpush.bf16.msra.mxu0 %v1646
    %2710 = vmatmul.bf16.gmra.mxu0 %v2662
    %v2711 = vpop.f32.mrf.mxu0
    %v2712 = vadd.f32 %v2699, %v2711
    %v2713 = vpop.f32.mrf.mxu0
    %2714 = vdwg.mxu0
    %2715 = vmatpush.bf16.msra.mxu0 %v1643
    %2716 = vmatpush.bf16.msra.mxu0 %v1639
    %2717 = vmatpush.bf16.msra.mxu0 %v1635
    %2718 = vmatpush.bf16.msra.mxu0 %v1631
    %2719 = vmatpush.bf16.msra.mxu0 %v1627
    %2720 = vmatpush.bf16.msra.mxu0 %v1623
    %2721 = vmatpush.bf16.msra.mxu0 %v1619
    %2722 = vmatpush.bf16.msra.mxu0 %v1615
    %2723 = vmatmul.bf16.gmra.mxu0 %v2494
    %v2724 = vpop.f32.mrf.mxu0
    %v2725 = vadd.f32 %v1415, %v2724
    %v2726 = vpop.f32.mrf.mxu0
    %2727 = vdwg.mxu0
    %2728 = vmatpush.bf16.msra.mxu0 %v1675
    %2729 = vmatpush.bf16.msra.mxu0 %v1671
    %2730 = vmatpush.bf16.msra.mxu0 %v1667
    %2731 = vmatpush.bf16.msra.mxu0 %v1663
    %2732 = vmatpush.bf16.msra.mxu0 %v1659
    %2733 = vmatpush.bf16.msra.mxu0 %v1655
    %2734 = vmatpush.bf16.msra.mxu0 %v1651
    %2735 = vmatpush.bf16.msra.mxu0 %v1647
    %2736 = vmatmul.bf16.gmra.mxu0 %v2662
    %v2737 = vpop.f32.mrf.mxu0
    %v2738 = vadd.f32 %v2725, %v2737
    %v2739 = vpop.f32.mrf.mxu0
    %2740 = vdwg.mxu0
    %2741 = vmatpush.bf16.msra.mxu0 %v1644
    %2742 = vmatpush.bf16.msra.mxu0 %v1640
    %2743 = vmatpush.bf16.msra.mxu0 %v1636
    %2744 = vmatpush.bf16.msra.mxu0 %v1632
    %2745 = vmatpush.bf16.msra.mxu0 %v1628
    %2746 = vmatpush.bf16.msra.mxu0 %v1624
    %2747 = vmatpush.bf16.msra.mxu0 %v1620
    %2748 = vmatpush.bf16.msra.mxu0 %v1616
    %2749 = vmatmul.bf16.gmra.mxu0 %v2494
    %v2750 = vpop.f32.mrf.mxu0
    %v2751 = vadd.f32 %v1416, %v2750
    %v2752 = vpop.f32.mrf.mxu0
    %2753 = vdwg.mxu0
    %2754 = vmatpush.bf16.msra.mxu0 %v1676
    %2755 = vmatpush.bf16.msra.mxu0 %v1672
    %2756 = vmatpush.bf16.msra.mxu0 %v1668
    %2757 = vmatpush.bf16.msra.mxu0 %v1664
    %2758 = vmatpush.bf16.msra.mxu0 %v1660
    %2759 = vmatpush.bf16.msra.mxu0 %v1656
    %2760 = vmatpush.bf16.msra.mxu0 %v1652
    %2761 = vmatpush.bf16.msra.mxu0 %v1648
    %2762 = vmatmul.bf16.gmra.mxu0 %v2662
    %v2763 = vpop.f32.mrf.mxu0
    %v2764 = vadd.f32 %v2751, %v2763
    %v2765 = vpop.f32.mrf.mxu0
    %2766 = vdwg.mxu0
    %v2767 = vxor.u32 %v2686, 2147483648
    %v2768 = vxor.u32 %v2712, 2147483648
    %v2769 = vxor.u32 %v2738, 2147483648
    %v2770 = vmul.f32 %v2767, 1.442695
    %v2771 = vpow.pop %v2770
    %v2772 = vmul.f32 %v2768, 1.442695
    %v2773 = vpow.pop %v2772
    %v2774 = vmul.f32 %v2769, 1.442695
    %v2775 = vpow.pop %v2774
    %v2776 = vadd.f32 %v2771, 1.0
    %v2777 = vadd.f32 %v2773, 1.0
    %v2778 = vadd.f32 %v2775, 1.0
    %v2779 = vrcp.pop %v2776
    %v2780 = vmul.f32 %v2776, %v2779
    %v2781 = vsub.f32 1.0, %v2780
    %v2782 = vmul.f32 %v2779, %v2781
    %v2783 = vadd.f32 %v2779, %v2782
    %vm2784 = vweird.f32 %v2776
    %vm2785 = vweird.f32 %v2779
    %vm2786 = vmor %vm2784, %vm2785
    %v2787 = vsel %vm2786, %v2779, %v2783
    %v2788 = vand.u32 2147483647, %v2776
    %vm2789 = vcmp.eq.f32.partialorder %v2788, 8.507059e+37
    %v2790 = vand.u32 %v2776, 2147483648
    %v2791 = vor.u32 1.1754944e-38, %v2790
    %v2792 = vsel %vm2789, %v2791, %v2787
    %v2793 = vmul.f32 1.0, %v2792
    %v2794 = vrcp.pop %v2777
    %v2795 = vmul.f32 %v2777, %v2794
    %v2796 = vsub.f32 1.0, %v2795
    %v2797 = vmul.f32 %v2794, %v2796
    %v2798 = vadd.f32 %v2794, %v2797
    %vm2799 = vweird.f32 %v2777
    %vm2800 = vweird.f32 %v2794
    %vm2801 = vmor %vm2799, %vm2800
    %v2802 = vsel %vm2801, %v2794, %v2798
    %v2803 = vand.u32 2147483647, %v2777
    %vm2804 = vcmp.eq.f32.partialorder %v2803, 8.507059e+37
    %v2805 = vand.u32 %v2777, 2147483648
    %v2806 = vor.u32 1.1754944e-38, %v2805
    %v2807 = vsel %vm2804, %v2806, %v2802
    %v2808 = vmul.f32 1.0, %v2807
    %v2809 = vrcp.pop %v2778
    %v2810 = vmul.f32 %v2778, %v2809
    %v2811 = vsub.f32 1.0, %v2810
    %v2812 = vmul.f32 %v2809, %v2811
    %v2813 = vadd.f32 %v2809, %v2812
    %vm2814 = vweird.f32 %v2778
    %vm2815 = vweird.f32 %v2809
    %vm2816 = vmor %vm2814, %vm2815
    %v2817 = vsel %vm2816, %v2809, %v2813
    %v2818 = vand.u32 2147483647, %v2778
    %vm2819 = vcmp.eq.f32.partialorder %v2818, 8.507059e+37
    %v2820 = vand.u32 %v2778, 2147483648
    %v2821 = vor.u32 1.1754944e-38, %v2820
    %v2822 = vsel %vm2819, %v2821, %v2817
    %v2823 = vmul.f32 1.0, %v2822
    %v2824 = vtanh.pop %v2764
    %v2825 = vmul.f32 %v2808, %v2366
    %v2826 = vmul.f32 %v2793, %v2824
    %v2827 = vadd.f32 %v2825, %v2826
    %v2828 = vtanh.pop %v2827
    %v2829 = vmul.f32 %v2823, %v2828
    %s2830 = scalar_lea.vmem %s0, 160
    %v2831 = vld [vmem:[%s2830] sm:$0xff]
    %v2832 = vld [vmem:[%s2830 + $0x8] sm:$0xff]
    %v2833 = vld [vmem:[%s2830 + $0x10] sm:$0xff]
    %v2834 = vld [vmem:[%s2830 + $0x18] sm:$0xff]
    %v2835 = vpack.c.bf16 %v2493, %v2493
    %2836 = vmatpush.bf16.msra.mxu0 %v211
    %2837 = vmatpush.bf16.msra.mxu0 %v207
    %2838 = vmatpush.bf16.msra.mxu0 %v203
    %2839 = vmatpush.bf16.msra.mxu0 %v199
    %2840 = vmatpush.bf16.msra.mxu0 %v195
    %2841 = vmatpush.bf16.msra.mxu0 %v191
    %2842 = vmatpush.bf16.msra.mxu0 %v187
    %2843 = vmatpush.bf16.msra.mxu0 %v183
    %2844 = vmatmul.bf16.gmra.mxu0 %v2835
    %v2845 = vpop.f32.mrf.mxu0
    %v2846 = vadd.f32 0.0, %v2845
    %v2847 = vpop.f32.mrf.mxu0
    %2848 = vdwg.mxu0
    %2849 = vmatpush.bf16.msra.mxu0 %v212
    %2850 = vmatpush.bf16.msra.mxu0 %v208
    %2851 = vmatpush.bf16.msra.mxu0 %v204
    %2852 = vmatpush.bf16.msra.mxu0 %v200
    %2853 = vmatpush.bf16.msra.mxu0 %v196
    %2854 = vmatpush.bf16.msra.mxu0 %v192
    %2855 = vmatpush.bf16.msra.mxu0 %v188
    %2856 = vmatpush.bf16.msra.mxu0 %v184
    %2857 = vmatmul.bf16.gmra.mxu0 %v2835
    %v2858 = vpop.f32.mrf.mxu0
    %v2859 = vadd.f32 0.0, %v2858
    %v2860 = vpop.f32.mrf.mxu0
    %2861 = vdwg.mxu0
    %2862 = vmatpush.bf16.msra.mxu0 %v213
    %2863 = vmatpush.bf16.msra.mxu0 %v209
    %2864 = vmatpush.bf16.msra.mxu0 %v205
    %2865 = vmatpush.bf16.msra.mxu0 %v201
    %2866 = vmatpush.bf16.msra.mxu0 %v197
    %2867 = vmatpush.bf16.msra.mxu0 %v193
    %2868 = vmatpush.bf16.msra.mxu0 %v189
    %2869 = vmatpush.bf16.msra.mxu0 %v185
    %2870 = vmatmul.bf16.gmra.mxu0 %v2835
    %v2871 = vpop.f32.mrf.mxu0
    %v2872 = vadd.f32 0.0, %v2871
    %v2873 = vpop.f32.mrf.mxu0
    %2874 = vdwg.mxu0
    %2875 = vmatpush.bf16.msra.mxu0 %v214
    %2876 = vmatpush.bf16.msra.mxu0 %v210
    %2877 = vmatpush.bf16.msra.mxu0 %v206
    %2878 = vmatpush.bf16.msra.mxu0 %v202
    %2879 = vmatpush.bf16.msra.mxu0 %v198
    %2880 = vmatpush.bf16.msra.mxu0 %v194
    %2881 = vmatpush.bf16.msra.mxu0 %v190
    %2882 = vmatpush.bf16.msra.mxu0 %v186
    %2883 = vmatmul.bf16.gmra.mxu0 %v2835
    %v2884 = vpop.f32.mrf.mxu0
    %v2885 = vadd.f32 0.0, %v2884
    %v2886 = vpop.f32.mrf.mxu0
    %2887 = vdwg.mxu0
    %v2888 = vadd.f32 %v2831, %v2846
    %v2889 = vadd.f32 %v2832, %v2859
    %v2890 = vadd.f32 %v2833, %v2872
    %v2891 = vadd.f32 %v2834, %v2885
    %v2892 = vxor.u32 %v2888, 2147483648
    %v2893 = vxor.u32 %v2889, 2147483648
    %v2894 = vxor.u32 %v2890, 2147483648
    %v2895 = vmul.f32 %v2892, 1.442695
    %v2896 = vpow.pop %v2895
    %v2897 = vmul.f32 %v2893, 1.442695
    %v2898 = vpow.pop %v2897
    %v2899 = vmul.f32 %v2894, 1.442695
    %v2900 = vpow.pop %v2899
    %v2901 = vadd.f32 %v2896, 1.0
    %v2902 = vadd.f32 %v2898, 1.0
    %v2903 = vadd.f32 %v2900, 1.0
    %v2904 = vrcp.pop %v2901
    %v2905 = vmul.f32 %v2901, %v2904
    %v2906 = vsub.f32 1.0, %v2905
    %v2907 = vmul.f32 %v2904, %v2906
    %v2908 = vadd.f32 %v2904, %v2907
    %vm2909 = vweird.f32 %v2901
    %vm2910 = vweird.f32 %v2904
    %vm2911 = vmor %vm2909, %vm2910
    %v2912 = vsel %vm2911, %v2904, %v2908
    %v2913 = vand.u32 2147483647, %v2901
    %vm2914 = vcmp.eq.f32.partialorder %v2913, 8.507059e+37
    %v2915 = vand.u32 %v2901, 2147483648
    %v2916 = vor.u32 1.1754944e-38, %v2915
    %v2917 = vsel %vm2914, %v2916, %v2912
    %v2918 = vmul.f32 1.0, %v2917
    %v2919 = vrcp.pop %v2902
    %v2920 = vmul.f32 %v2902, %v2919
    %v2921 = vsub.f32 1.0, %v2920
    %v2922 = vmul.f32 %v2919, %v2921
    %v2923 = vadd.f32 %v2919, %v2922
    %vm2924 = vweird.f32 %v2902
    %vm2925 = vweird.f32 %v2919
    %vm2926 = vmor %vm2924, %vm2925
    %v2927 = vsel %vm2926, %v2919, %v2923
    %v2928 = vand.u32 2147483647, %v2902
    %vm2929 = vcmp.eq.f32.partialorder %v2928, 8.507059e+37
    %v2930 = vand.u32 %v2902, 2147483648
    %v2931 = vor.u32 1.1754944e-38, %v2930
    %v2932 = vsel %vm2929, %v2931, %v2927
    %v2933 = vmul.f32 1.0, %v2932
    %v2934 = vrcp.pop %v2903
    %v2935 = vmul.f32 %v2903, %v2934
    %v2936 = vsub.f32 1.0, %v2935
    %v2937 = vmul.f32 %v2934, %v2936
    %v2938 = vadd.f32 %v2934, %v2937
    %vm2939 = vweird.f32 %v2903
    %vm2940 = vweird.f32 %v2934
    %vm2941 = vmor %vm2939, %vm2940
    %v2942 = vsel %vm2941, %v2934, %v2938
    %v2943 = vand.u32 2147483647, %v2903
    %vm2944 = vcmp.eq.f32.partialorder %v2943, 8.507059e+37
    %v2945 = vand.u32 %v2903, 2147483648
    %v2946 = vor.u32 1.1754944e-38, %v2945
    %v2947 = vsel %vm2944, %v2946, %v2942
    %v2948 = vmul.f32 1.0, %v2947
    %v2949 = vtanh.pop %v2891
    %v2950 = vmul.f32 %v2933, %v2491
    %v2951 = vmul.f32 %v2918, %v2949
    %v2952 = vadd.f32 %v2950, %v2951
    %v2953 = vtanh.pop %v2952
    %v2954 = vmul.f32 %v2948, %v2953
    %v2955 = vpack.c.bf16 %v2661, %v2661
    %2956 = vmatpush.bf16.msra.mxu0 %v786
    %2957 = vmatpush.bf16.msra.mxu0 %v782
    %2958 = vmatpush.bf16.msra.mxu0 %v778
    %2959 = vmatpush.bf16.msra.mxu0 %v774
    %2960 = vmatpush.bf16.msra.mxu0 %v770
    %2961 = vmatpush.bf16.msra.mxu0 %v766
    %2962 = vmatpush.bf16.msra.mxu0 %v762
    %2963 = vmatpush.bf16.msra.mxu0 %v758
    %2964 = vmatmul.bf16.gmra.mxu0 %v2835
    %v2965 = vpop.f32.mrf.mxu0
    %v2966 = vadd.f32 %v558, %v2965
    %v2967 = vpop.f32.mrf.mxu0
    %2968 = vdwg.mxu0
    %2969 = vmatpush.bf16.msra.mxu0 %v818
    %2970 = vmatpush.bf16.msra.mxu0 %v814
    %2971 = vmatpush.bf16.msra.mxu0 %v810
    %2972 = vmatpush.bf16.msra.mxu0 %v806
    %2973 = vmatpush.bf16.msra.mxu0 %v802
    %2974 = vmatpush.bf16.msra.mxu0 %v798
    %2975 = vmatpush.bf16.msra.mxu0 %v794
    %2976 = vmatpush.bf16.msra.mxu0 %v790
    %2977 = vmatmul.bf16.gmra.mxu0 %v2955
    %v2978 = vpop.f32.mrf.mxu0
    %v2979 = vadd.f32 %v2966, %v2978
    %v2980 = vpop.f32.mrf.mxu0
    %2981 = vdwg.mxu0
    %2982 = vmatpush.bf16.msra.mxu0 %v787
    %2983 = vmatpush.bf16.msra.mxu0 %v783
    %2984 = vmatpush.bf16.msra.mxu0 %v779
    %2985 = vmatpush.bf16.msra.mxu0 %v775
    %2986 = vmatpush.bf16.msra.mxu0 %v771
    %2987 = vmatpush.bf16.msra.mxu0 %v767
    %2988 = vmatpush.bf16.msra.mxu0 %v763
    %2989 = vmatpush.bf16.msra.mxu0 %v759
    %2990 = vmatmul.bf16.gmra.mxu0 %v2835
    %v2991 = vpop.f32.mrf.mxu0
    %v2992 = vadd.f32 %v559, %v2991
    %v2993 = vpop.f32.mrf.mxu0
    %2994 = vdwg.mxu0
    %2995 = vmatpush.bf16.msra.mxu0 %v819
    %2996 = vmatpush.bf16.msra.mxu0 %v815
    %2997 = vmatpush.bf16.msra.mxu0 %v811
    %2998 = vmatpush.bf16.msra.mxu0 %v807
    %2999 = vmatpush.bf16.msra.mxu0 %v803
    %3000 = vmatpush.bf16.msra.mxu0 %v799
    %3001 = vmatpush.bf16.msra.mxu0 %v795
    %3002 = vmatpush.bf16.msra.mxu0 %v791
    %3003 = vmatmul.bf16.gmra.mxu0 %v2955
    %v3004 = vpop.f32.mrf.mxu0
    %v3005 = vadd.f32 %v2992, %v3004
    %v3006 = vpop.f32.mrf.mxu0
    %3007 = vdwg.mxu0
    %3008 = vmatpush.bf16.msra.mxu0 %v788
    %3009 = vmatpush.bf16.msra.mxu0 %v784
    %3010 = vmatpush.bf16.msra.mxu0 %v780
    %3011 = vmatpush.bf16.msra.mxu0 %v776
    %3012 = vmatpush.bf16.msra.mxu0 %v772
    %3013 = vmatpush.bf16.msra.mxu0 %v768
    %3014 = vmatpush.bf16.msra.mxu0 %v764
    %3015 = vmatpush.bf16.msra.mxu0 %v760
    %3016 = vmatmul.bf16.gmra.mxu0 %v2835
    %v3017 = vpop.f32.mrf.mxu0
    %v3018 = vadd.f32 %v560, %v3017
    %v3019 = vpop.f32.mrf.mxu0
    %3020 = vdwg.mxu0
    %3021 = vmatpush.bf16.msra.mxu0 %v820
    %3022 = vmatpush.bf16.msra.mxu0 %v816
    %3023 = vmatpush.bf16.msra.mxu0 %v812
    %3024 = vmatpush.bf16.msra.mxu0 %v808
    %3025 = vmatpush.bf16.msra.mxu0 %v804
    %3026 = vmatpush.bf16.msra.mxu0 %v800
    %3027 = vmatpush.bf16.msra.mxu0 %v796
    %3028 = vmatpush.bf16.msra.mxu0 %v792
    %3029 = vmatmul.bf16.gmra.mxu0 %v2955
    %v3030 = vpop.f32.mrf.mxu0
    %v3031 = vadd.f32 %v3018, %v3030
    %v3032 = vpop.f32.mrf.mxu0
    %3033 = vdwg.mxu0
    %3034 = vmatpush.bf16.msra.mxu0 %v789
    %3035 = vmatpush.bf16.msra.mxu0 %v785
    %3036 = vmatpush.bf16.msra.mxu0 %v781
    %3037 = vmatpush.bf16.msra.mxu0 %v777
    %3038 = vmatpush.bf16.msra.mxu0 %v773
    %3039 = vmatpush.bf16.msra.mxu0 %v769
    %3040 = vmatpush.bf16.msra.mxu0 %v765
    %3041 = vmatpush.bf16.msra.mxu0 %v761
    %3042 = vmatmul.bf16.gmra.mxu0 %v2835
    %v3043 = vpop.f32.mrf.mxu0
    %v3044 = vadd.f32 %v561, %v3043
    %v3045 = vpop.f32.mrf.mxu0
    %3046 = vdwg.mxu0
    %3047 = vmatpush.bf16.msra.mxu0 %v821
    %3048 = vmatpush.bf16.msra.mxu0 %v817
    %3049 = vmatpush.bf16.msra.mxu0 %v813
    %3050 = vmatpush.bf16.msra.mxu0 %v809
    %3051 = vmatpush.bf16.msra.mxu0 %v805
    %3052 = vmatpush.bf16.msra.mxu0 %v801
    %3053 = vmatpush.bf16.msra.mxu0 %v797
    %3054 = vmatpush.bf16.msra.mxu0 %v793
    %3055 = vmatmul.bf16.gmra.mxu0 %v2955
    %v3056 = vpop.f32.mrf.mxu0
    %v3057 = vadd.f32 %v3044, %v3056
    %v3058 = vpop.f32.mrf.mxu0
    %3059 = vdwg.mxu0
    %v3060 = vxor.u32 %v2979, 2147483648
    %v3061 = vxor.u32 %v3005, 2147483648
    %v3062 = vxor.u32 %v3031, 2147483648
    %v3063 = vmul.f32 %v3060, 1.442695
    %v3064 = vpow.pop %v3063
    %v3065 = vmul.f32 %v3061, 1.442695
    %v3066 = vpow.pop %v3065
    %v3067 = vmul.f32 %v3062, 1.442695
    %v3068 = vpow.pop %v3067
    %v3069 = vadd.f32 %v3064, 1.0
    %v3070 = vadd.f32 %v3066, 1.0
    %v3071 = vadd.f32 %v3068, 1.0
    %v3072 = vrcp.pop %v3069
    %v3073 = vmul.f32 %v3069, %v3072
    %v3074 = vsub.f32 1.0, %v3073
    %v3075 = vmul.f32 %v3072, %v3074
    %v3076 = vadd.f32 %v3072, %v3075
    %vm3077 = vweird.f32 %v3069
    %vm3078 = vweird.f32 %v3072
    %vm3079 = vmor %vm3077, %vm3078
    %v3080 = vsel %vm3079, %v3072, %v3076
    %v3081 = vand.u32 2147483647, %v3069
    %vm3082 = vcmp.eq.f32.partialorder %v3081, 8.507059e+37
    %v3083 = vand.u32 %v3069, 2147483648
    %v3084 = vor.u32 1.1754944e-38, %v3083
    %v3085 = vsel %vm3082, %v3084, %v3080
    %v3086 = vmul.f32 1.0, %v3085
    %v3087 = vrcp.pop %v3070
    %v3088 = vmul.f32 %v3070, %v3087
    %v3089 = vsub.f32 1.0, %v3088
    %v3090 = vmul.f32 %v3087, %v3089
    %v3091 = vadd.f32 %v3087, %v3090
    %vm3092 = vweird.f32 %v3070
    %vm3093 = vweird.f32 %v3087
    %vm3094 = vmor %vm3092, %vm3093
    %v3095 = vsel %vm3094, %v3087, %v3091
    %v3096 = vand.u32 2147483647, %v3070
    %vm3097 = vcmp.eq.f32.partialorder %v3096, 8.507059e+37
    %v3098 = vand.u32 %v3070, 2147483648
    %v3099 = vor.u32 1.1754944e-38, %v3098
    %v3100 = vsel %vm3097, %v3099, %v3095
    %v3101 = vmul.f32 1.0, %v3100
    %v3102 = vrcp.pop %v3071
    %v3103 = vmul.f32 %v3071, %v3102
    %v3104 = vsub.f32 1.0, %v3103
    %v3105 = vmul.f32 %v3102, %v3104
    %v3106 = vadd.f32 %v3102, %v3105
    %vm3107 = vweird.f32 %v3071
    %vm3108 = vweird.f32 %v3102
    %vm3109 = vmor %vm3107, %vm3108
    %v3110 = vsel %vm3109, %v3102, %v3106
    %v3111 = vand.u32 2147483647, %v3071
    %vm3112 = vcmp.eq.f32.partialorder %v3111, 8.507059e+37
    %v3113 = vand.u32 %v3071, 2147483648
    %v3114 = vor.u32 1.1754944e-38, %v3113
    %v3115 = vsel %vm3112, %v3114, %v3110
    %v3116 = vmul.f32 1.0, %v3115
    %v3117 = vtanh.pop %v3057
    %v3118 = vmul.f32 %v3101, %v2659
    %v3119 = vmul.f32 %v3086, %v3117
    %v3120 = vadd.f32 %v3118, %v3119
    %v3121 = vtanh.pop %v3120
    %v3122 = vmul.f32 %v3116, %v3121
    %v3123 = vpack.c.bf16 %v2829, %v2829
    %3124 = vmatpush.bf16.msra.mxu0 %v1641
    %3125 = vmatpush.bf16.msra.mxu0 %v1637
    %3126 = vmatpush.bf16.msra.mxu0 %v1633
    %3127 = vmatpush.bf16.msra.mxu0 %v1629
    %3128 = vmatpush.bf16.msra.mxu0 %v1625
    %3129 = vmatpush.bf16.msra.mxu0 %v1621
    %3130 = vmatpush.bf16.msra.mxu0 %v1617
    %3131 = vmatpush.bf16.msra.mxu0 %v1613
    %3132 = vmatmul.bf16.gmra.mxu0 %v2955
    %v3133 = vpop.f32.mrf.mxu0
    %v3134 = vadd.f32 %v1413, %v3133
    %v3135 = vpop.f32.mrf.mxu0
    %3136 = vdwg.mxu0
    %3137 = vmatpush.bf16.msra.mxu0 %v1673
    %3138 = vmatpush.bf16.msra.mxu0 %v1669
    %3139 = vmatpush.bf16.msra.mxu0 %v1665
    %3140 = vmatpush.bf16.msra.mxu0 %v1661
    %3141 = vmatpush.bf16.msra.mxu0 %v1657
    %3142 = vmatpush.bf16.msra.mxu0 %v1653
    %3143 = vmatpush.bf16.msra.mxu0 %v1649
    %3144 = vmatpush.bf16.msra.mxu0 %v1645
    %3145 = vmatmul.bf16.gmra.mxu0 %v3123
    %v3146 = vpop.f32.mrf.mxu0
    %v3147 = vadd.f32 %v3134, %v3146
    %v3148 = vpop.f32.mrf.mxu0
    %3149 = vdwg.mxu0
    %3150 = vmatpush.bf16.msra.mxu0 %v1642
    %3151 = vmatpush.bf16.msra.mxu0 %v1638
    %3152 = vmatpush.bf16.msra.mxu0 %v1634
    %3153 = vmatpush.bf16.msra.mxu0 %v1630
    %3154 = vmatpush.bf16.msra.mxu0 %v1626
    %3155 = vmatpush.bf16.msra.mxu0 %v1622
    %3156 = vmatpush.bf16.msra.mxu0 %v1618
    %3157 = vmatpush.bf16.msra.mxu0 %v1614
    %3158 = vmatmul.bf16.gmra.mxu0 %v2955
    %v3159 = vpop.f32.mrf.mxu0
    %v3160 = vadd.f32 %v1414, %v3159
    %v3161 = vpop.f32.mrf.mxu0
    %3162 = vdwg.mxu0
    %3163 = vmatpush.bf16.msra.mxu0 %v1674
    %3164 = vmatpush.bf16.msra.mxu0 %v1670
    %3165 = vmatpush.bf16.msra.mxu0 %v1666
    %3166 = vmatpush.bf16.msra.mxu0 %v1662
    %3167 = vmatpush.bf16.msra.mxu0 %v1658
    %3168 = vmatpush.bf16.msra.mxu0 %v1654
    %3169 = vmatpush.bf16.msra.mxu0 %v1650
    %3170 = vmatpush.bf16.msra.mxu0 %v1646
    %3171 = vmatmul.bf16.gmra.mxu0 %v3123
    %v3172 = vpop.f32.mrf.mxu0
    %v3173 = vadd.f32 %v3160, %v3172
    %v3174 = vpop.f32.mrf.mxu0
    %3175 = vdwg.mxu0
    %3176 = vmatpush.bf16.msra.mxu0 %v1643
    %3177 = vmatpush.bf16.msra.mxu0 %v1639
    %3178 = vmatpush.bf16.msra.mxu0 %v1635
    %3179 = vmatpush.bf16.msra.mxu0 %v1631
    %3180 = vmatpush.bf16.msra.mxu0 %v1627
    %3181 = vmatpush.bf16.msra.mxu0 %v1623
    %3182 = vmatpush.bf16.msra.mxu0 %v1619
    %3183 = vmatpush.bf16.msra.mxu0 %v1615
    %3184 = vmatmul.bf16.gmra.mxu0 %v2955
    %v3185 = vpop.f32.mrf.mxu0
    %v3186 = vadd.f32 %v1415, %v3185
    %v3187 = vpop.f32.mrf.mxu0
    %3188 = vdwg.mxu0
    %3189 = vmatpush.bf16.msra.mxu0 %v1675
    %3190 = vmatpush.bf16.msra.mxu0 %v1671
    %3191 = vmatpush.bf16.msra.mxu0 %v1667
    %3192 = vmatpush.bf16.msra.mxu0 %v1663
    %3193 = vmatpush.bf16.msra.mxu0 %v1659
    %3194 = vmatpush.bf16.msra.mxu0 %v1655
    %3195 = vmatpush.bf16.msra.mxu0 %v1651
    %3196 = vmatpush.bf16.msra.mxu0 %v1647
    %3197 = vmatmul.bf16.gmra.mxu0 %v3123
    %v3198 = vpop.f32.mrf.mxu0
    %v3199 = vadd.f32 %v3186, %v3198
    %v3200 = vpop.f32.mrf.mxu0
    %3201 = vdwg.mxu0
    %3202 = vmatpush.bf16.msra.mxu0 %v1644
    %3203 = vmatpush.bf16.msra.mxu0 %v1640
    %3204 = vmatpush.bf16.msra.mxu0 %v1636
    %3205 = vmatpush.bf16.msra.mxu0 %v1632
    %3206 = vmatpush.bf16.msra.mxu0 %v1628
    %3207 = vmatpush.bf16.msra.mxu0 %v1624
    %3208 = vmatpush.bf16.msra.mxu0 %v1620
    %3209 = vmatpush.bf16.msra.mxu0 %v1616
    %3210 = vmatmul.bf16.gmra.mxu0 %v2955
    %v3211 = vpop.f32.mrf.mxu0
    %v3212 = vadd.f32 %v1416, %v3211
    %v3213 = vpop.f32.mrf.mxu0
    %3214 = vdwg.mxu0
    %3215 = vmatpush.bf16.msra.mxu0 %v1676
    %3216 = vmatpush.bf16.msra.mxu0 %v1672
    %3217 = vmatpush.bf16.msra.mxu0 %v1668
    %3218 = vmatpush.bf16.msra.mxu0 %v1664
    %3219 = vmatpush.bf16.msra.mxu0 %v1660
    %3220 = vmatpush.bf16.msra.mxu0 %v1656
    %3221 = vmatpush.bf16.msra.mxu0 %v1652
    %3222 = vmatpush.bf16.msra.mxu0 %v1648
    %3223 = vmatmul.bf16.gmra.mxu0 %v3123
    %v3224 = vpop.f32.mrf.mxu0
    %v3225 = vadd.f32 %v3212, %v3224
    %v3226 = vpop.f32.mrf.mxu0
    %3227 = vdwg.mxu0
    %v3228 = vxor.u32 %v3147, 2147483648
    %v3229 = vxor.u32 %v3173, 2147483648
    %v3230 = vxor.u32 %v3199, 2147483648
    %v3231 = vmul.f32 %v3228, 1.442695
    %v3232 = vpow.pop %v3231
    %v3233 = vmul.f32 %v3229, 1.442695
    %v3234 = vpow.pop %v3233
    %v3235 = vmul.f32 %v3230, 1.442695
    %v3236 = vpow.pop %v3235
    %v3237 = vadd.f32 %v3232, 1.0
    %v3238 = vadd.f32 %v3234, 1.0
    %v3239 = vadd.f32 %v3236, 1.0
    %v3240 = vrcp.pop %v3237
    %v3241 = vmul.f32 %v3237, %v3240
    %v3242 = vsub.f32 1.0, %v3241
    %v3243 = vmul.f32 %v3240, %v3242
    %v3244 = vadd.f32 %v3240, %v3243
    %vm3245 = vweird.f32 %v3237
    %vm3246 = vweird.f32 %v3240
    %vm3247 = vmor %vm3245, %vm3246
    %v3248 = vsel %vm3247, %v3240, %v3244
    %v3249 = vand.u32 2147483647, %v3237
    %vm3250 = vcmp.eq.f32.partialorder %v3249, 8.507059e+37
    %v3251 = vand.u32 %v3237, 2147483648
    %v3252 = vor.u32 1.1754944e-38, %v3251
    %v3253 = vsel %vm3250, %v3252, %v3248
    %v3254 = vmul.f32 1.0, %v3253
    %v3255 = vrcp.pop %v3238
    %v3256 = vmul.f32 %v3238, %v3255
    %v3257 = vsub.f32 1.0, %v3256
    %v3258 = vmul.f32 %v3255, %v3257
    %v3259 = vadd.f32 %v3255, %v3258
    %vm3260 = vweird.f32 %v3238
    %vm3261 = vweird.f32 %v3255
    %vm3262 = vmor %vm3260, %vm3261
    %v3263 = vsel %vm3262, %v3255, %v3259
    %v3264 = vand.u32 2147483647, %v3238
    %vm3265 = vcmp.eq.f32.partialorder %v3264, 8.507059e+37
    %v3266 = vand.u32 %v3238, 2147483648
    %v3267 = vor.u32 1.1754944e-38, %v3266
    %v3268 = vsel %vm3265, %v3267, %v3263
    %v3269 = vmul.f32 1.0, %v3268
    %v3270 = vrcp.pop %v3239
    %v3271 = vmul.f32 %v3239, %v3270
    %v3272 = vsub.f32 1.0, %v3271
    %v3273 = vmul.f32 %v3270, %v3272
    %v3274 = vadd.f32 %v3270, %v3273
    %vm3275 = vweird.f32 %v3239
    %vm3276 = vweird.f32 %v3270
    %vm3277 = vmor %vm3275, %vm3276
    %v3278 = vsel %vm3277, %v3270, %v3274
    %v3279 = vand.u32 2147483647, %v3239
    %vm3280 = vcmp.eq.f32.partialorder %v3279, 8.507059e+37
    %v3281 = vand.u32 %v3239, 2147483648
    %v3282 = vor.u32 1.1754944e-38, %v3281
    %v3283 = vsel %vm3280, %v3282, %v3278
    %v3284 = vmul.f32 1.0, %v3283
    %v3285 = vtanh.pop %v3225
    %v3286 = vmul.f32 %v3269, %v2827
    %v3287 = vmul.f32 %v3254, %v3285
    %v3288 = vadd.f32 %v3286, %v3287
    %v3289 = vtanh.pop %v3288
    %v3290 = vmul.f32 %v3284, %v3289
    %s3291 = scalar_lea.vmem %s0, 192
    %v3292 = vld [vmem:[%s3291] sm:$0xff]
    %v3293 = vld [vmem:[%s3291 + $0x8] sm:$0xff]
    %v3294 = vld [vmem:[%s3291 + $0x10] sm:$0xff]
    %v3295 = vld [vmem:[%s3291 + $0x18] sm:$0xff]
    %v3296 = vpack.c.bf16 %v2954, %v2954
    %3297 = vmatpush.bf16.msra.mxu0 %v211
    %3298 = vmatpush.bf16.msra.mxu0 %v207
    %3299 = vmatpush.bf16.msra.mxu0 %v203
    %3300 = vmatpush.bf16.msra.mxu0 %v199
    %3301 = vmatpush.bf16.msra.mxu0 %v195
    %3302 = vmatpush.bf16.msra.mxu0 %v191
    %3303 = vmatpush.bf16.msra.mxu0 %v187
    %3304 = vmatpush.bf16.msra.mxu0 %v183
    %3305 = vmatmul.bf16.gmra.mxu0 %v3296
    %v3306 = vpop.f32.mrf.mxu0
    %v3307 = vadd.f32 0.0, %v3306
    %v3308 = vpop.f32.mrf.mxu0
    %3309 = vdwg.mxu0
    %3310 = vmatpush.bf16.msra.mxu0 %v212
    %3311 = vmatpush.bf16.msra.mxu0 %v208
    %3312 = vmatpush.bf16.msra.mxu0 %v204
    %3313 = vmatpush.bf16.msra.mxu0 %v200
    %3314 = vmatpush.bf16.msra.mxu0 %v196
    %3315 = vmatpush.bf16.msra.mxu0 %v192
    %3316 = vmatpush.bf16.msra.mxu0 %v188
    %3317 = vmatpush.bf16.msra.mxu0 %v184
    %3318 = vmatmul.bf16.gmra.mxu0 %v3296
    %v3319 = vpop.f32.mrf.mxu0
    %v3320 = vadd.f32 0.0, %v3319
    %v3321 = vpop.f32.mrf.mxu0
    %3322 = vdwg.mxu0
    %3323 = vmatpush.bf16.msra.mxu0 %v213
    %3324 = vmatpush.bf16.msra.mxu0 %v209
    %3325 = vmatpush.bf16.msra.mxu0 %v205
    %3326 = vmatpush.bf16.msra.mxu0 %v201
    %3327 = vmatpush.bf16.msra.mxu0 %v197
    %3328 = vmatpush.bf16.msra.mxu0 %v193
    %3329 = vmatpush.bf16.msra.mxu0 %v189
    %3330 = vmatpush.bf16.msra.mxu0 %v185
    %3331 = vmatmul.bf16.gmra.mxu0 %v3296
    %v3332 = vpop.f32.mrf.mxu0
    %v3333 = vadd.f32 0.0, %v3332
    %v3334 = vpop.f32.mrf.mxu0
    %3335 = vdwg.mxu0
    %3336 = vmatpush.bf16.msra.mxu0 %v214
    %3337 = vmatpush.bf16.msra.mxu0 %v210
    %3338 = vmatpush.bf16.msra.mxu0 %v206
    %3339 = vmatpush.bf16.msra.mxu0 %v202
    %3340 = vmatpush.bf16.msra.mxu0 %v198
    %3341 = vmatpush.bf16.msra.mxu0 %v194
    %3342 = vmatpush.bf16.msra.mxu0 %v190
    %3343 = vmatpush.bf16.msra.mxu0 %v186
    %3344 = vmatmul.bf16.gmra.mxu0 %v3296
    %v3345 = vpop.f32.mrf.mxu0
    %v3346 = vadd.f32 0.0, %v3345
    %v3347 = vpop.f32.mrf.mxu0
    %3348 = vdwg.mxu0
    %v3349 = vadd.f32 %v3292, %v3307
    %v3350 = vadd.f32 %v3293, %v3320
    %v3351 = vadd.f32 %v3294, %v3333
    %v3352 = vadd.f32 %v3295, %v3346
    %v3353 = vxor.u32 %v3349, 2147483648
    %v3354 = vxor.u32 %v3350, 2147483648
    %v3355 = vxor.u32 %v3351, 2147483648
    %v3356 = vmul.f32 %v3353, 1.442695
    %v3357 = vpow.pop %v3356
    %v3358 = vmul.f32 %v3354, 1.442695
    %v3359 = vpow.pop %v3358
    %v3360 = vmul.f32 %v3355, 1.442695
    %v3361 = vpow.pop %v3360
    %v3362 = vadd.f32 %v3357, 1.0
    %v3363 = vadd.f32 %v3359, 1.0
    %v3364 = vadd.f32 %v3361, 1.0
    %v3365 = vrcp.pop %v3362
    %v3366 = vmul.f32 %v3362, %v3365
    %v3367 = vsub.f32 1.0, %v3366
    %v3368 = vmul.f32 %v3365, %v3367
    %v3369 = vadd.f32 %v3365, %v3368
    %vm3370 = vweird.f32 %v3362
    %vm3371 = vweird.f32 %v3365
    %vm3372 = vmor %vm3370, %vm3371
    %v3373 = vsel %vm3372, %v3365, %v3369
    %v3374 = vand.u32 2147483647, %v3362
    %vm3375 = vcmp.eq.f32.partialorder %v3374, 8.507059e+37
    %v3376 = vand.u32 %v3362, 2147483648
    %v3377 = vor.u32 1.1754944e-38, %v3376
    %v3378 = vsel %vm3375, %v3377, %v3373
    %v3379 = vmul.f32 1.0, %v3378
    %v3380 = vrcp.pop %v3363
    %v3381 = vmul.f32 %v3363, %v3380
    %v3382 = vsub.f32 1.0, %v3381
    %v3383 = vmul.f32 %v3380, %v3382
    %v3384 = vadd.f32 %v3380, %v3383
    %vm3385 = vweird.f32 %v3363
    %vm3386 = vweird.f32 %v3380
    %vm3387 = vmor %vm3385, %vm3386
    %v3388 = vsel %vm3387, %v3380, %v3384
    %v3389 = vand.u32 2147483647, %v3363
    %vm3390 = vcmp.eq.f32.partialorder %v3389, 8.507059e+37
    %v3391 = vand.u32 %v3363, 2147483648
    %v3392 = vor.u32 1.1754944e-38, %v3391
    %v3393 = vsel %vm3390, %v3392, %v3388
    %v3394 = vmul.f32 1.0, %v3393
    %v3395 = vrcp.pop %v3364
    %v3396 = vmul.f32 %v3364, %v3395
    %v3397 = vsub.f32 1.0, %v3396
    %v3398 = vmul.f32 %v3395, %v3397
    %v3399 = vadd.f32 %v3395, %v3398
    %vm3400 = vweird.f32 %v3364
    %vm3401 = vweird.f32 %v3395
    %vm3402 = vmor %vm3400, %vm3401
    %v3403 = vsel %vm3402, %v3395, %v3399
    %v3404 = vand.u32 2147483647, %v3364
    %vm3405 = vcmp.eq.f32.partialorder %v3404, 8.507059e+37
    %v3406 = vand.u32 %v3364, 2147483648
    %v3407 = vor.u32 1.1754944e-38, %v3406
    %v3408 = vsel %vm3405, %v3407, %v3403
    %v3409 = vmul.f32 1.0, %v3408
    %v3410 = vtanh.pop %v3352
    %v3411 = vmul.f32 %v3394, %v2952
    %v3412 = vmul.f32 %v3379, %v3410
    %v3413 = vadd.f32 %v3411, %v3412
    %v3414 = vtanh.pop %v3413
    %v3415 = vmul.f32 %v3409, %v3414
    %v3416 = vpack.c.bf16 %v3122, %v3122
    %3417 = vmatpush.bf16.msra.mxu0 %v786
    %3418 = vmatpush.bf16.msra.mxu0 %v782
    %3419 = vmatpush.bf16.msra.mxu0 %v778
    %3420 = vmatpush.bf16.msra.mxu0 %v774
    %3421 = vmatpush.bf16.msra.mxu0 %v770
    %3422 = vmatpush.bf16.msra.mxu0 %v766
    %3423 = vmatpush.bf16.msra.mxu0 %v762
    %3424 = vmatpush.bf16.msra.mxu0 %v758
    %3425 = vmatmul.bf16.gmra.mxu0 %v3296
    %v3426 = vpop.f32.mrf.mxu0
    %v3427 = vadd.f32 %v558, %v3426
    %v3428 = vpop.f32.mrf.mxu0
    %3429 = vdwg.mxu0
    %3430 = vmatpush.bf16.msra.mxu0 %v818
    %3431 = vmatpush.bf16.msra.mxu0 %v814
    %3432 = vmatpush.bf16.msra.mxu0 %v810
    %3433 = vmatpush.bf16.msra.mxu0 %v806
    %3434 = vmatpush.bf16.msra.mxu0 %v802
    %3435 = vmatpush.bf16.msra.mxu0 %v798
    %3436 = vmatpush.bf16.msra.mxu0 %v794
    %3437 = vmatpush.bf16.msra.mxu0 %v790
    %3438 = vmatmul.bf16.gmra.mxu0 %v3416
    %v3439 = vpop.f32.mrf.mxu0
    %v3440 = vadd.f32 %v3427, %v3439
    %v3441 = vpop.f32.mrf.mxu0
    %3442 = vdwg.mxu0
    %3443 = vmatpush.bf16.msra.mxu0 %v787
    %3444 = vmatpush.bf16.msra.mxu0 %v783
    %3445 = vmatpush.bf16.msra.mxu0 %v779
    %3446 = vmatpush.bf16.msra.mxu0 %v775
    %3447 = vmatpush.bf16.msra.mxu0 %v771
    %3448 = vmatpush.bf16.msra.mxu0 %v767
    %3449 = vmatpush.bf16.msra.mxu0 %v763
    %3450 = vmatpush.bf16.msra.mxu0 %v759
    %3451 = vmatmul.bf16.gmra.mxu0 %v3296
    %v3452 = vpop.f32.mrf.mxu0
    %v3453 = vadd.f32 %v559, %v3452
    %v3454 = vpop.f32.mrf.mxu0
    %3455 = vdwg.mxu0
    %3456 = vmatpush.bf16.msra.mxu0 %v819
    %3457 = vmatpush.bf16.msra.mxu0 %v815
    %3458 = vmatpush.bf16.msra.mxu0 %v811
    %3459 = vmatpush.bf16.msra.mxu0 %v807
    %3460 = vmatpush.bf16.msra.mxu0 %v803
    %3461 = vmatpush.bf16.msra.mxu0 %v799
    %3462 = vmatpush.bf16.msra.mxu0 %v795
    %3463 = vmatpush.bf16.msra.mxu0 %v791
    %3464 = vmatmul.bf16.gmra.mxu0 %v3416
    %v3465 = vpop.f32.mrf.mxu0
    %v3466 = vadd.f32 %v3453, %v3465
    %v3467 = vpop.f32.mrf.mxu0
    %3468 = vdwg.mxu0
    %3469 = vmatpush.bf16.msra.mxu0 %v788
    %3470 = vmatpush.bf16.msra.mxu0 %v784
    %3471 = vmatpush.bf16.msra.mxu0 %v780
    %3472 = vmatpush.bf16.msra.mxu0 %v776
    %3473 = vmatpush.bf16.msra.mxu0 %v772
    %3474 = vmatpush.bf16.msra.mxu0 %v768
    %3475 = vmatpush.bf16.msra.mxu0 %v764
    %3476 = vmatpush.bf16.msra.mxu0 %v760
    %3477 = vmatmul.bf16.gmra.mxu0 %v3296
    %v3478 = vpop.f32.mrf.mxu0
    %v3479 = vadd.f32 %v560, %v3478
    %v3480 = vpop.f32.mrf.mxu0
    %3481 = vdwg.mxu0
    %3482 = vmatpush.bf16.msra.mxu0 %v820
    %3483 = vmatpush.bf16.msra.mxu0 %v816
    %3484 = vmatpush.bf16.msra.mxu0 %v812
    %3485 = vmatpush.bf16.msra.mxu0 %v808
    %3486 = vmatpush.bf16.msra.mxu0 %v804
    %3487 = vmatpush.bf16.msra.mxu0 %v800
    %3488 = vmatpush.bf16.msra.mxu0 %v796
    %3489 = vmatpush.bf16.msra.mxu0 %v792
    %3490 = vmatmul.bf16.gmra.mxu0 %v3416
    %v3491 = vpop.f32.mrf.mxu0
    %v3492 = vadd.f32 %v3479, %v3491
    %v3493 = vpop.f32.mrf.mxu0
    %3494 = vdwg.mxu0
    %3495 = vmatpush.bf16.msra.mxu0 %v789
    %3496 = vmatpush.bf16.msra.mxu0 %v785
    %3497 = vmatpush.bf16.msra.mxu0 %v781
    %3498 = vmatpush.bf16.msra.mxu0 %v777
    %3499 = vmatpush.bf16.msra.mxu0 %v773
    %3500 = vmatpush.bf16.msra.mxu0 %v769
    %3501 = vmatpush.bf16.msra.mxu0 %v765
    %3502 = vmatpush.bf16.msra.mxu0 %v761
    %3503 = vmatmul.bf16.gmra.mxu0 %v3296
    %v3504 = vpop.f32.mrf.mxu0
    %v3505 = vadd.f32 %v561, %v3504
    %v3506 = vpop.f32.mrf.mxu0
    %3507 = vdwg.mxu0
    %3508 = vmatpush.bf16.msra.mxu0 %v821
    %3509 = vmatpush.bf16.msra.mxu0 %v817
    %3510 = vmatpush.bf16.msra.mxu0 %v813
    %3511 = vmatpush.bf16.msra.mxu0 %v809
    %3512 = vmatpush.bf16.msra.mxu0 %v805
    %3513 = vmatpush.bf16.msra.mxu0 %v801
    %3514 = vmatpush.bf16.msra.mxu0 %v797
    %3515 = vmatpush.bf16.msra.mxu0 %v793
    %3516 = vmatmul.bf16.gmra.mxu0 %v3416
    %v3517 = vpop.f32.mrf.mxu0
    %v3518 = vadd.f32 %v3505, %v3517
    %v3519 = vpop.f32.mrf.mxu0
    %3520 = vdwg.mxu0
    %v3521 = vxor.u32 %v3440, 2147483648
    %v3522 = vxor.u32 %v3466, 2147483648
    %v3523 = vxor.u32 %v3492, 2147483648
    %v3524 = vmul.f32 %v3521, 1.442695
    %v3525 = vpow.pop %v3524
    %v3526 = vmul.f32 %v3522, 1.442695
    %v3527 = vpow.pop %v3526
    %v3528 = vmul.f32 %v3523, 1.442695
    %v3529 = vpow.pop %v3528
    %v3530 = vadd.f32 %v3525, 1.0
    %v3531 = vadd.f32 %v3527, 1.0
    %v3532 = vadd.f32 %v3529, 1.0
    %v3533 = vrcp.pop %v3530
    %v3534 = vmul.f32 %v3530, %v3533
    %v3535 = vsub.f32 1.0, %v3534
    %v3536 = vmul.f32 %v3533, %v3535
    %v3537 = vadd.f32 %v3533, %v3536
    %vm3538 = vweird.f32 %v3530
    %vm3539 = vweird.f32 %v3533
    %vm3540 = vmor %vm3538, %vm3539
    %v3541 = vsel %vm3540, %v3533, %v3537
    %v3542 = vand.u32 2147483647, %v3530
    %vm3543 = vcmp.eq.f32.partialorder %v3542, 8.507059e+37
    %v3544 = vand.u32 %v3530, 2147483648
    %v3545 = vor.u32 1.1754944e-38, %v3544
    %v3546 = vsel %vm3543, %v3545, %v3541
    %v3547 = vmul.f32 1.0, %v3546
    %v3548 = vrcp.pop %v3531
    %v3549 = vmul.f32 %v3531, %v3548
    %v3550 = vsub.f32 1.0, %v3549
    %v3551 = vmul.f32 %v3548, %v3550
    %v3552 = vadd.f32 %v3548, %v3551
    %vm3553 = vweird.f32 %v3531
    %vm3554 = vweird.f32 %v3548
    %vm3555 = vmor %vm3553, %vm3554
    %v3556 = vsel %vm3555, %v3548, %v3552
    %v3557 = vand.u32 2147483647, %v3531
    %vm3558 = vcmp.eq.f32.partialorder %v3557, 8.507059e+37
    %v3559 = vand.u32 %v3531, 2147483648
    %v3560 = vor.u32 1.1754944e-38, %v3559
    %v3561 = vsel %vm3558, %v3560, %v3556
    %v3562 = vmul.f32 1.0, %v3561
    %v3563 = vrcp.pop %v3532
    %v3564 = vmul.f32 %v3532, %v3563
    %v3565 = vsub.f32 1.0, %v3564
    %v3566 = vmul.f32 %v3563, %v3565
    %v3567 = vadd.f32 %v3563, %v3566
    %vm3568 = vweird.f32 %v3532
    %vm3569 = vweird.f32 %v3563
    %vm3570 = vmor %vm3568, %vm3569
    %v3571 = vsel %vm3570, %v3563, %v3567
    %v3572 = vand.u32 2147483647, %v3532
    %vm3573 = vcmp.eq.f32.partialorder %v3572, 8.507059e+37
    %v3574 = vand.u32 %v3532, 2147483648
    %v3575 = vor.u32 1.1754944e-38, %v3574
    %v3576 = vsel %vm3573, %v3575, %v3571
    %v3577 = vmul.f32 1.0, %v3576
    %v3578 = vtanh.pop %v3518
    %v3579 = vmul.f32 %v3562, %v3120
    %v3580 = vmul.f32 %v3547, %v3578
    %v3581 = vadd.f32 %v3579, %v3580
    %v3582 = vtanh.pop %v3581
    %v3583 = vmul.f32 %v3577, %v3582
    %v3584 = vpack.c.bf16 %v3290, %v3290
    %3585 = vmatpush.bf16.msra.mxu0 %v1641
    %3586 = vmatpush.bf16.msra.mxu0 %v1637
    %3587 = vmatpush.bf16.msra.mxu0 %v1633
    %3588 = vmatpush.bf16.msra.mxu0 %v1629
    %3589 = vmatpush.bf16.msra.mxu0 %v1625
    %3590 = vmatpush.bf16.msra.mxu0 %v1621
    %3591 = vmatpush.bf16.msra.mxu0 %v1617
    %3592 = vmatpush.bf16.msra.mxu0 %v1613
    %3593 = vmatmul.bf16.gmra.mxu0 %v3416
    %v3594 = vpop.f32.mrf.mxu0
    %v3595 = vadd.f32 %v1413, %v3594
    %v3596 = vpop.f32.mrf.mxu0
    %3597 = vdwg.mxu0
    %3598 = vmatpush.bf16.msra.mxu0 %v1673
    %3599 = vmatpush.bf16.msra.mxu0 %v1669
    %3600 = vmatpush.bf16.msra.mxu0 %v1665
    %3601 = vmatpush.bf16.msra.mxu0 %v1661
    %3602 = vmatpush.bf16.msra.mxu0 %v1657
    %3603 = vmatpush.bf16.msra.mxu0 %v1653
    %3604 = vmatpush.bf16.msra.mxu0 %v1649
    %3605 = vmatpush.bf16.msra.mxu0 %v1645
    %3606 = vmatmul.bf16.gmra.mxu0 %v3584
    %v3607 = vpop.f32.mrf.mxu0
    %v3608 = vadd.f32 %v3595, %v3607
    %v3609 = vpop.f32.mrf.mxu0
    %3610 = vdwg.mxu0
    %3611 = vmatpush.bf16.msra.mxu0 %v1642
    %3612 = vmatpush.bf16.msra.mxu0 %v1638
    %3613 = vmatpush.bf16.msra.mxu0 %v1634
    %3614 = vmatpush.bf16.msra.mxu0 %v1630
    %3615 = vmatpush.bf16.msra.mxu0 %v1626
    %3616 = vmatpush.bf16.msra.mxu0 %v1622
    %3617 = vmatpush.bf16.msra.mxu0 %v1618
    %3618 = vmatpush.bf16.msra.mxu0 %v1614
    %3619 = vmatmul.bf16.gmra.mxu0 %v3416
    %v3620 = vpop.f32.mrf.mxu0
    %v3621 = vadd.f32 %v1414, %v3620
    %v3622 = vpop.f32.mrf.mxu0
    %3623 = vdwg.mxu0
    %3624 = vmatpush.bf16.msra.mxu0 %v1674
    %3625 = vmatpush.bf16.msra.mxu0 %v1670
    %3626 = vmatpush.bf16.msra.mxu0 %v1666
    %3627 = vmatpush.bf16.msra.mxu0 %v1662
    %3628 = vmatpush.bf16.msra.mxu0 %v1658
    %3629 = vmatpush.bf16.msra.mxu0 %v1654
    %3630 = vmatpush.bf16.msra.mxu0 %v1650
    %3631 = vmatpush.bf16.msra.mxu0 %v1646
    %3632 = vmatmul.bf16.gmra.mxu0 %v3584
    %v3633 = vpop.f32.mrf.mxu0
    %v3634 = vadd.f32 %v3621, %v3633
    %v3635 = vpop.f32.mrf.mxu0
    %3636 = vdwg.mxu0
    %3637 = vmatpush.bf16.msra.mxu0 %v1643
    %3638 = vmatpush.bf16.msra.mxu0 %v1639
    %3639 = vmatpush.bf16.msra.mxu0 %v1635
    %3640 = vmatpush.bf16.msra.mxu0 %v1631
    %3641 = vmatpush.bf16.msra.mxu0 %v1627
    %3642 = vmatpush.bf16.msra.mxu0 %v1623
    %3643 = vmatpush.bf16.msra.mxu0 %v1619
    %3644 = vmatpush.bf16.msra.mxu0 %v1615
    %3645 = vmatmul.bf16.gmra.mxu0 %v3416
    %v3646 = vpop.f32.mrf.mxu0
    %v3647 = vadd.f32 %v1415, %v3646
    %v3648 = vpop.f32.mrf.mxu0
    %3649 = vdwg.mxu0
    %3650 = vmatpush.bf16.msra.mxu0 %v1675
    %3651 = vmatpush.bf16.msra.mxu0 %v1671
    %3652 = vmatpush.bf16.msra.mxu0 %v1667
    %3653 = vmatpush.bf16.msra.mxu0 %v1663
    %3654 = vmatpush.bf16.msra.mxu0 %v1659
    %3655 = vmatpush.bf16.msra.mxu0 %v1655
    %3656 = vmatpush.bf16.msra.mxu0 %v1651
    %3657 = vmatpush.bf16.msra.mxu0 %v1647
    %3658 = vmatmul.bf16.gmra.mxu0 %v3584
    %v3659 = vpop.f32.mrf.mxu0
    %v3660 = vadd.f32 %v3647, %v3659
    %v3661 = vpop.f32.mrf.mxu0
    %3662 = vdwg.mxu0
    %3663 = vmatpush.bf16.msra.mxu0 %v1644
    %3664 = vmatpush.bf16.msra.mxu0 %v1640
    %3665 = vmatpush.bf16.msra.mxu0 %v1636
    %3666 = vmatpush.bf16.msra.mxu0 %v1632
    %3667 = vmatpush.bf16.msra.mxu0 %v1628
    %3668 = vmatpush.bf16.msra.mxu0 %v1624
    %3669 = vmatpush.bf16.msra.mxu0 %v1620
    %3670 = vmatpush.bf16.msra.mxu0 %v1616
    %3671 = vmatmul.bf16.gmra.mxu0 %v3416
    %v3672 = vpop.f32.mrf.mxu0
    %v3673 = vadd.f32 %v1416, %v3672
    %v3674 = vpop.f32.mrf.mxu0
    %3675 = vdwg.mxu0
    %3676 = vmatpush.bf16.msra.mxu0 %v1676
    %3677 = vmatpush.bf16.msra.mxu0 %v1672
    %3678 = vmatpush.bf16.msra.mxu0 %v1668
    %3679 = vmatpush.bf16.msra.mxu0 %v1664
    %3680 = vmatpush.bf16.msra.mxu0 %v1660
    %3681 = vmatpush.bf16.msra.mxu0 %v1656
    %3682 = vmatpush.bf16.msra.mxu0 %v1652
    %3683 = vmatpush.bf16.msra.mxu0 %v1648
    %3684 = vmatmul.bf16.gmra.mxu0 %v3584
    %v3685 = vpop.f32.mrf.mxu0
    %v3686 = vadd.f32 %v3673, %v3685
    %v3687 = vpop.f32.mrf.mxu0
    %3688 = vdwg.mxu0
    %v3689 = vxor.u32 %v3608, 2147483648
    %v3690 = vxor.u32 %v3634, 2147483648
    %v3691 = vxor.u32 %v3660, 2147483648
    %v3692 = vmul.f32 %v3689, 1.442695
    %v3693 = vpow.pop %v3692
    %v3694 = vmul.f32 %v3690, 1.442695
    %v3695 = vpow.pop %v3694
    %v3696 = vmul.f32 %v3691, 1.442695
    %v3697 = vpow.pop %v3696
    %v3698 = vadd.f32 %v3693, 1.0
    %v3699 = vadd.f32 %v3695, 1.0
    %v3700 = vadd.f32 %v3697, 1.0
    %v3701 = vrcp.pop %v3698
    %v3702 = vmul.f32 %v3698, %v3701
    %v3703 = vsub.f32 1.0, %v3702
    %v3704 = vmul.f32 %v3701, %v3703
    %v3705 = vadd.f32 %v3701, %v3704
    %vm3706 = vweird.f32 %v3698
    %vm3707 = vweird.f32 %v3701
    %vm3708 = vmor %vm3706, %vm3707
    %v3709 = vsel %vm3708, %v3701, %v3705
    %v3710 = vand.u32 2147483647, %v3698
    %vm3711 = vcmp.eq.f32.partialorder %v3710, 8.507059e+37
    %v3712 = vand.u32 %v3698, 2147483648
    %v3713 = vor.u32 1.1754944e-38, %v3712
    %v3714 = vsel %vm3711, %v3713, %v3709
    %v3715 = vmul.f32 1.0, %v3714
    %v3716 = vrcp.pop %v3699
    %v3717 = vmul.f32 %v3699, %v3716
    %v3718 = vsub.f32 1.0, %v3717
    %v3719 = vmul.f32 %v3716, %v3718
    %v3720 = vadd.f32 %v3716, %v3719
    %vm3721 = vweird.f32 %v3699
    %vm3722 = vweird.f32 %v3716
    %vm3723 = vmor %vm3721, %vm3722
    %v3724 = vsel %vm3723, %v3716, %v3720
    %v3725 = vand.u32 2147483647, %v3699
    %vm3726 = vcmp.eq.f32.partialorder %v3725, 8.507059e+37
    %v3727 = vand.u32 %v3699, 2147483648
    %v3728 = vor.u32 1.1754944e-38, %v3727
    %v3729 = vsel %vm3726, %v3728, %v3724
    %v3730 = vmul.f32 1.0, %v3729
    %v3731 = vrcp.pop %v3700
    %v3732 = vmul.f32 %v3700, %v3731
    %v3733 = vsub.f32 1.0, %v3732
    %v3734 = vmul.f32 %v3731, %v3733
    %v3735 = vadd.f32 %v3731, %v3734
    %vm3736 = vweird.f32 %v3700
    %vm3737 = vweird.f32 %v3731
    %vm3738 = vmor %vm3736, %vm3737
    %v3739 = vsel %vm3738, %v3731, %v3735
    %v3740 = vand.u32 2147483647, %v3700
    %vm3741 = vcmp.eq.f32.partialorder %v3740, 8.507059e+37
    %v3742 = vand.u32 %v3700, 2147483648
    %v3743 = vor.u32 1.1754944e-38, %v3742
    %v3744 = vsel %vm3741, %v3743, %v3739
    %v3745 = vmul.f32 1.0, %v3744
    %v3746 = vtanh.pop %v3686
    %v3747 = vmul.f32 %v3730, %v3288
    %v3748 = vmul.f32 %v3715, %v3746
    %v3749 = vadd.f32 %v3747, %v3748
    %v3750 = vtanh.pop %v3749
    %v3751 = vmul.f32 %v3745, %v3750
    %s3752 = scalar_lea.vmem %s0, 224
    %v3753 = vld [vmem:[%s3752] sm:$0xff]
    %v3754 = vld [vmem:[%s3752 + $0x8] sm:$0xff]
    %v3755 = vld [vmem:[%s3752 + $0x10] sm:$0xff]
    %v3756 = vld [vmem:[%s3752 + $0x18] sm:$0xff]
    %v3757 = vpack.c.bf16 %v3415, %v3415
    %3758 = vmatpush.bf16.msra.mxu0 %v211
    %3759 = vmatpush.bf16.msra.mxu0 %v207
    %3760 = vmatpush.bf16.msra.mxu0 %v203
    %3761 = vmatpush.bf16.msra.mxu0 %v199
    %3762 = vmatpush.bf16.msra.mxu0 %v195
    %3763 = vmatpush.bf16.msra.mxu0 %v191
    %3764 = vmatpush.bf16.msra.mxu0 %v187
    %3765 = vmatpush.bf16.msra.mxu0 %v183
    %3766 = vmatmul.bf16.gmra.mxu0 %v3757
    %v3767 = vpop.f32.mrf.mxu0
    %v3768 = vadd.f32 0.0, %v3767
    %v3769 = vpop.f32.mrf.mxu0
    %3770 = vdwg.mxu0
    %3771 = vmatpush.bf16.msra.mxu0 %v212
    %3772 = vmatpush.bf16.msra.mxu0 %v208
    %3773 = vmatpush.bf16.msra.mxu0 %v204
    %3774 = vmatpush.bf16.msra.mxu0 %v200
    %3775 = vmatpush.bf16.msra.mxu0 %v196
    %3776 = vmatpush.bf16.msra.mxu0 %v192
    %3777 = vmatpush.bf16.msra.mxu0 %v188
    %3778 = vmatpush.bf16.msra.mxu0 %v184
    %3779 = vmatmul.bf16.gmra.mxu0 %v3757
    %v3780 = vpop.f32.mrf.mxu0
    %v3781 = vadd.f32 0.0, %v3780
    %v3782 = vpop.f32.mrf.mxu0
    %3783 = vdwg.mxu0
    %3784 = vmatpush.bf16.msra.mxu0 %v213
    %3785 = vmatpush.bf16.msra.mxu0 %v209
    %3786 = vmatpush.bf16.msra.mxu0 %v205
    %3787 = vmatpush.bf16.msra.mxu0 %v201
    %3788 = vmatpush.bf16.msra.mxu0 %v197
    %3789 = vmatpush.bf16.msra.mxu0 %v193
    %3790 = vmatpush.bf16.msra.mxu0 %v189
    %3791 = vmatpush.bf16.msra.mxu0 %v185
    %3792 = vmatmul.bf16.gmra.mxu0 %v3757
    %v3793 = vpop.f32.mrf.mxu0
    %v3794 = vadd.f32 0.0, %v3793
    %v3795 = vpop.f32.mrf.mxu0
    %3796 = vdwg.mxu0
    %3797 = vmatpush.bf16.msra.mxu0 %v214
    %3798 = vmatpush.bf16.msra.mxu0 %v210
    %3799 = vmatpush.bf16.msra.mxu0 %v206
    %3800 = vmatpush.bf16.msra.mxu0 %v202
    %3801 = vmatpush.bf16.msra.mxu0 %v198
    %3802 = vmatpush.bf16.msra.mxu0 %v194
    %3803 = vmatpush.bf16.msra.mxu0 %v190
    %3804 = vmatpush.bf16.msra.mxu0 %v186
    %3805 = vmatmul.bf16.gmra.mxu0 %v3757
    %v3806 = vpop.f32.mrf.mxu0
    %v3807 = vadd.f32 0.0, %v3806
    %v3808 = vpop.f32.mrf.mxu0
    %3809 = vdwg.mxu0
    %v3810 = vadd.f32 %v3753, %v3768
    %v3811 = vadd.f32 %v3754, %v3781
    %v3812 = vadd.f32 %v3755, %v3794
    %v3813 = vadd.f32 %v3756, %v3807
    %v3814 = vxor.u32 %v3810, 2147483648
    %v3815 = vxor.u32 %v3811, 2147483648
    %v3816 = vxor.u32 %v3812, 2147483648
    %v3817 = vmul.f32 %v3814, 1.442695
    %v3818 = vpow.pop %v3817
    %v3819 = vmul.f32 %v3815, 1.442695
    %v3820 = vpow.pop %v3819
    %v3821 = vmul.f32 %v3816, 1.442695
    %v3822 = vpow.pop %v3821
    %v3823 = vadd.f32 %v3818, 1.0
    %v3824 = vadd.f32 %v3820, 1.0
    %v3825 = vadd.f32 %v3822, 1.0
    %v3826 = vrcp.pop %v3823
    %v3827 = vmul.f32 %v3823, %v3826
    %v3828 = vsub.f32 1.0, %v3827
    %v3829 = vmul.f32 %v3826, %v3828
    %v3830 = vadd.f32 %v3826, %v3829
    %vm3831 = vweird.f32 %v3823
    %vm3832 = vweird.f32 %v3826
    %vm3833 = vmor %vm3831, %vm3832
    %v3834 = vsel %vm3833, %v3826, %v3830
    %v3835 = vand.u32 2147483647, %v3823
    %vm3836 = vcmp.eq.f32.partialorder %v3835, 8.507059e+37
    %v3837 = vand.u32 %v3823, 2147483648
    %v3838 = vor.u32 1.1754944e-38, %v3837
    %v3839 = vsel %vm3836, %v3838, %v3834
    %v3840 = vmul.f32 1.0, %v3839
    %v3841 = vrcp.pop %v3824
    %v3842 = vmul.f32 %v3824, %v3841
    %v3843 = vsub.f32 1.0, %v3842
    %v3844 = vmul.f32 %v3841, %v3843
    %v3845 = vadd.f32 %v3841, %v3844
    %vm3846 = vweird.f32 %v3824
    %vm3847 = vweird.f32 %v3841
    %vm3848 = vmor %vm3846, %vm3847
    %v3849 = vsel %vm3848, %v3841, %v3845
    %v3850 = vand.u32 2147483647, %v3824
    %vm3851 = vcmp.eq.f32.partialorder %v3850, 8.507059e+37
    %v3852 = vand.u32 %v3824, 2147483648
    %v3853 = vor.u32 1.1754944e-38, %v3852
    %v3854 = vsel %vm3851, %v3853, %v3849
    %v3855 = vmul.f32 1.0, %v3854
    %v3856 = vrcp.pop %v3825
    %v3857 = vmul.f32 %v3825, %v3856
    %v3858 = vsub.f32 1.0, %v3857
    %v3859 = vmul.f32 %v3856, %v3858
    %v3860 = vadd.f32 %v3856, %v3859
    %vm3861 = vweird.f32 %v3825
    %vm3862 = vweird.f32 %v3856
    %vm3863 = vmor %vm3861, %vm3862
    %v3864 = vsel %vm3863, %v3856, %v3860
    %v3865 = vand.u32 2147483647, %v3825
    %vm3866 = vcmp.eq.f32.partialorder %v3865, 8.507059e+37
    %v3867 = vand.u32 %v3825, 2147483648
    %v3868 = vor.u32 1.1754944e-38, %v3867
    %v3869 = vsel %vm3866, %v3868, %v3864
    %v3870 = vmul.f32 1.0, %v3869
    %v3871 = vtanh.pop %v3813
    %v3872 = vmul.f32 %v3855, %v3413
    %v3873 = vmul.f32 %v3840, %v3871
    %v3874 = vadd.f32 %v3872, %v3873
    %v3875 = vtanh.pop %v3874
    %v3876 = vmul.f32 %v3870, %v3875
    %v3877 = vpack.c.bf16 %v3583, %v3583
    %3878 = vmatpush.bf16.msra.mxu0 %v786
    %3879 = vmatpush.bf16.msra.mxu0 %v782
    %3880 = vmatpush.bf16.msra.mxu0 %v778
    %3881 = vmatpush.bf16.msra.mxu0 %v774
    %3882 = vmatpush.bf16.msra.mxu0 %v770
    %3883 = vmatpush.bf16.msra.mxu0 %v766
    %3884 = vmatpush.bf16.msra.mxu0 %v762
    %3885 = vmatpush.bf16.msra.mxu0 %v758
    %3886 = vmatmul.bf16.gmra.mxu0 %v3757
    %v3887 = vpop.f32.mrf.mxu0
    %v3888 = vadd.f32 %v558, %v3887
    %v3889 = vpop.f32.mrf.mxu0
    %3890 = vdwg.mxu0
    %3891 = vmatpush.bf16.msra.mxu0 %v818
    %3892 = vmatpush.bf16.msra.mxu0 %v814
    %3893 = vmatpush.bf16.msra.mxu0 %v810
    %3894 = vmatpush.bf16.msra.mxu0 %v806
    %3895 = vmatpush.bf16.msra.mxu0 %v802
    %3896 = vmatpush.bf16.msra.mxu0 %v798
    %3897 = vmatpush.bf16.msra.mxu0 %v794
    %3898 = vmatpush.bf16.msra.mxu0 %v790
    %3899 = vmatmul.bf16.gmra.mxu0 %v3877
    %v3900 = vpop.f32.mrf.mxu0
    %v3901 = vadd.f32 %v3888, %v3900
    %v3902 = vpop.f32.mrf.mxu0
    %3903 = vdwg.mxu0
    %3904 = vmatpush.bf16.msra.mxu0 %v787
    %3905 = vmatpush.bf16.msra.mxu0 %v783
    %3906 = vmatpush.bf16.msra.mxu0 %v779
    %3907 = vmatpush.bf16.msra.mxu0 %v775
    %3908 = vmatpush.bf16.msra.mxu0 %v771
    %3909 = vmatpush.bf16.msra.mxu0 %v767
    %3910 = vmatpush.bf16.msra.mxu0 %v763
    %3911 = vmatpush.bf16.msra.mxu0 %v759
    %3912 = vmatmul.bf16.gmra.mxu0 %v3757
    %v3913 = vpop.f32.mrf.mxu0
    %v3914 = vadd.f32 %v559, %v3913
    %v3915 = vpop.f32.mrf.mxu0
    %3916 = vdwg.mxu0
    %3917 = vmatpush.bf16.msra.mxu0 %v819
    %3918 = vmatpush.bf16.msra.mxu0 %v815
    %3919 = vmatpush.bf16.msra.mxu0 %v811
    %3920 = vmatpush.bf16.msra.mxu0 %v807
    %3921 = vmatpush.bf16.msra.mxu0 %v803
    %3922 = vmatpush.bf16.msra.mxu0 %v799
    %3923 = vmatpush.bf16.msra.mxu0 %v795
    %3924 = vmatpush.bf16.msra.mxu0 %v791
    %3925 = vmatmul.bf16.gmra.mxu0 %v3877
    %v3926 = vpop.f32.mrf.mxu0
    %v3927 = vadd.f32 %v3914, %v3926
    %v3928 = vpop.f32.mrf.mxu0
    %3929 = vdwg.mxu0
    %3930 = vmatpush.bf16.msra.mxu0 %v788
    %3931 = vmatpush.bf16.msra.mxu0 %v784
    %3932 = vmatpush.bf16.msra.mxu0 %v780
    %3933 = vmatpush.bf16.msra.mxu0 %v776
    %3934 = vmatpush.bf16.msra.mxu0 %v772
    %3935 = vmatpush.bf16.msra.mxu0 %v768
    %3936 = vmatpush.bf16.msra.mxu0 %v764
    %3937 = vmatpush.bf16.msra.mxu0 %v760
    %3938 = vmatmul.bf16.gmra.mxu0 %v3757
    %v3939 = vpop.f32.mrf.mxu0
    %v3940 = vadd.f32 %v560, %v3939
    %v3941 = vpop.f32.mrf.mxu0
    %3942 = vdwg.mxu0
    %3943 = vmatpush.bf16.msra.mxu0 %v820
    %3944 = vmatpush.bf16.msra.mxu0 %v816
    %3945 = vmatpush.bf16.msra.mxu0 %v812
    %3946 = vmatpush.bf16.msra.mxu0 %v808
    %3947 = vmatpush.bf16.msra.mxu0 %v804
    %3948 = vmatpush.bf16.msra.mxu0 %v800
    %3949 = vmatpush.bf16.msra.mxu0 %v796
    %3950 = vmatpush.bf16.msra.mxu0 %v792
    %3951 = vmatmul.bf16.gmra.mxu0 %v3877
    %v3952 = vpop.f32.mrf.mxu0
    %v3953 = vadd.f32 %v3940, %v3952
    %v3954 = vpop.f32.mrf.mxu0
    %3955 = vdwg.mxu0
    %3956 = vmatpush.bf16.msra.mxu0 %v789
    %3957 = vmatpush.bf16.msra.mxu0 %v785
    %3958 = vmatpush.bf16.msra.mxu0 %v781
    %3959 = vmatpush.bf16.msra.mxu0 %v777
    %3960 = vmatpush.bf16.msra.mxu0 %v773
    %3961 = vmatpush.bf16.msra.mxu0 %v769
    %3962 = vmatpush.bf16.msra.mxu0 %v765
    %3963 = vmatpush.bf16.msra.mxu0 %v761
    %3964 = vmatmul.bf16.gmra.mxu0 %v3757
    %v3965 = vpop.f32.mrf.mxu0
    %v3966 = vadd.f32 %v561, %v3965
    %v3967 = vpop.f32.mrf.mxu0
    %3968 = vdwg.mxu0
    %3969 = vmatpush.bf16.msra.mxu0 %v821
    %3970 = vmatpush.bf16.msra.mxu0 %v817
    %3971 = vmatpush.bf16.msra.mxu0 %v813
    %3972 = vmatpush.bf16.msra.mxu0 %v809
    %3973 = vmatpush.bf16.msra.mxu0 %v805
    %3974 = vmatpush.bf16.msra.mxu0 %v801
    %3975 = vmatpush.bf16.msra.mxu0 %v797
    %3976 = vmatpush.bf16.msra.mxu0 %v793
    %3977 = vmatmul.bf16.gmra.mxu0 %v3877
    %v3978 = vpop.f32.mrf.mxu0
    %v3979 = vadd.f32 %v3966, %v3978
    %v3980 = vpop.f32.mrf.mxu0
    %3981 = vdwg.mxu0
    %v3982 = vxor.u32 %v3901, 2147483648
    %v3983 = vxor.u32 %v3927, 2147483648
    %v3984 = vxor.u32 %v3953, 2147483648
    %v3985 = vmul.f32 %v3982, 1.442695
    %v3986 = vpow.pop %v3985
    %v3987 = vmul.f32 %v3983, 1.442695
    %v3988 = vpow.pop %v3987
    %v3989 = vmul.f32 %v3984, 1.442695
    %v3990 = vpow.pop %v3989
    %v3991 = vadd.f32 %v3986, 1.0
    %v3992 = vadd.f32 %v3988, 1.0
    %v3993 = vadd.f32 %v3990, 1.0
    %v3994 = vrcp.pop %v3991
    %v3995 = vmul.f32 %v3991, %v3994
    %v3996 = vsub.f32 1.0, %v3995
    %v3997 = vmul.f32 %v3994, %v3996
    %v3998 = vadd.f32 %v3994, %v3997
    %vm3999 = vweird.f32 %v3991
    %vm4000 = vweird.f32 %v3994
    %vm4001 = vmor %vm3999, %vm4000
    %v4002 = vsel %vm4001, %v3994, %v3998
    %v4003 = vand.u32 2147483647, %v3991
    %vm4004 = vcmp.eq.f32.partialorder %v4003, 8.507059e+37
    %v4005 = vand.u32 %v3991, 2147483648
    %v4006 = vor.u32 1.1754944e-38, %v4005
    %v4007 = vsel %vm4004, %v4006, %v4002
    %v4008 = vmul.f32 1.0, %v4007
    %v4009 = vrcp.pop %v3992
    %v4010 = vmul.f32 %v3992, %v4009
    %v4011 = vsub.f32 1.0, %v4010
    %v4012 = vmul.f32 %v4009, %v4011
    %v4013 = vadd.f32 %v4009, %v4012
    %vm4014 = vweird.f32 %v3992
    %vm4015 = vweird.f32 %v4009
    %vm4016 = vmor %vm4014, %vm4015
    %v4017 = vsel %vm4016, %v4009, %v4013
    %v4018 = vand.u32 2147483647, %v3992
    %vm4019 = vcmp.eq.f32.partialorder %v4018, 8.507059e+37
    %v4020 = vand.u32 %v3992, 2147483648
    %v4021 = vor.u32 1.1754944e-38, %v4020
    %v4022 = vsel %vm4019, %v4021, %v4017
    %v4023 = vmul.f32 1.0, %v4022
    %v4024 = vrcp.pop %v3993
    %v4025 = vmul.f32 %v3993, %v4024
    %v4026 = vsub.f32 1.0, %v4025
    %v4027 = vmul.f32 %v4024, %v4026
    %v4028 = vadd.f32 %v4024, %v4027
    %vm4029 = vweird.f32 %v3993
    %vm4030 = vweird.f32 %v4024
    %vm4031 = vmor %vm4029, %vm4030
    %v4032 = vsel %vm4031, %v4024, %v4028
    %v4033 = vand.u32 2147483647, %v3993
    %vm4034 = vcmp.eq.f32.partialorder %v4033, 8.507059e+37
    %v4035 = vand.u32 %v3993, 2147483648
    %v4036 = vor.u32 1.1754944e-38, %v4035
    %v4037 = vsel %vm4034, %v4036, %v4032
    %v4038 = vmul.f32 1.0, %v4037
    %v4039 = vtanh.pop %v3979
    %v4040 = vmul.f32 %v4023, %v3581
    %v4041 = vmul.f32 %v4008, %v4039
    %v4042 = vadd.f32 %v4040, %v4041
    %v4043 = vtanh.pop %v4042
    %v4044 = vmul.f32 %v4038, %v4043
    %v4045 = vpack.c.bf16 %v3751, %v3751
    %4046 = vmatpush.bf16.msra.mxu0 %v1641
    %4047 = vmatpush.bf16.msra.mxu0 %v1637
    %4048 = vmatpush.bf16.msra.mxu0 %v1633
    %4049 = vmatpush.bf16.msra.mxu0 %v1629
    %4050 = vmatpush.bf16.msra.mxu0 %v1625
    %4051 = vmatpush.bf16.msra.mxu0 %v1621
    %4052 = vmatpush.bf16.msra.mxu0 %v1617
    %4053 = vmatpush.bf16.msra.mxu0 %v1613
    %4054 = vmatmul.bf16.gmra.mxu0 %v3877
    %v4055 = vpop.f32.mrf.mxu0
    %v4056 = vadd.f32 %v1413, %v4055
    %v4057 = vpop.f32.mrf.mxu0
    %4058 = vdwg.mxu0
    %4059 = vmatpush.bf16.msra.mxu0 %v1673
    %4060 = vmatpush.bf16.msra.mxu0 %v1669
    %4061 = vmatpush.bf16.msra.mxu0 %v1665
    %4062 = vmatpush.bf16.msra.mxu0 %v1661
    %4063 = vmatpush.bf16.msra.mxu0 %v1657
    %4064 = vmatpush.bf16.msra.mxu0 %v1653
    %4065 = vmatpush.bf16.msra.mxu0 %v1649
    %4066 = vmatpush.bf16.msra.mxu0 %v1645
    %4067 = vmatmul.bf16.gmra.mxu0 %v4045
    %v4068 = vpop.f32.mrf.mxu0
    %v4069 = vadd.f32 %v4056, %v4068
    %v4070 = vpop.f32.mrf.mxu0
    %4071 = vdwg.mxu0
    %4072 = vmatpush.bf16.msra.mxu0 %v1642
    %4073 = vmatpush.bf16.msra.mxu0 %v1638
    %4074 = vmatpush.bf16.msra.mxu0 %v1634
    %4075 = vmatpush.bf16.msra.mxu0 %v1630
    %4076 = vmatpush.bf16.msra.mxu0 %v1626
    %4077 = vmatpush.bf16.msra.mxu0 %v1622
    %4078 = vmatpush.bf16.msra.mxu0 %v1618
    %4079 = vmatpush.bf16.msra.mxu0 %v1614
    %4080 = vmatmul.bf16.gmra.mxu0 %v3877
    %v4081 = vpop.f32.mrf.mxu0
    %v4082 = vadd.f32 %v1414, %v4081
    %v4083 = vpop.f32.mrf.mxu0
    %4084 = vdwg.mxu0
    %4085 = vmatpush.bf16.msra.mxu0 %v1674
    %4086 = vmatpush.bf16.msra.mxu0 %v1670
    %4087 = vmatpush.bf16.msra.mxu0 %v1666
    %4088 = vmatpush.bf16.msra.mxu0 %v1662
    %4089 = vmatpush.bf16.msra.mxu0 %v1658
    %4090 = vmatpush.bf16.msra.mxu0 %v1654
    %4091 = vmatpush.bf16.msra.mxu0 %v1650
    %4092 = vmatpush.bf16.msra.mxu0 %v1646
    %4093 = vmatmul.bf16.gmra.mxu0 %v4045
    %v4094 = vpop.f32.mrf.mxu0
    %v4095 = vadd.f32 %v4082, %v4094
    %v4096 = vpop.f32.mrf.mxu0
    %4097 = vdwg.mxu0
    %4098 = vmatpush.bf16.msra.mxu0 %v1643
    %4099 = vmatpush.bf16.msra.mxu0 %v1639
    %4100 = vmatpush.bf16.msra.mxu0 %v1635
    %4101 = vmatpush.bf16.msra.mxu0 %v1631
    %4102 = vmatpush.bf16.msra.mxu0 %v1627
    %4103 = vmatpush.bf16.msra.mxu0 %v1623
    %4104 = vmatpush.bf16.msra.mxu0 %v1619
    %4105 = vmatpush.bf16.msra.mxu0 %v1615
    %4106 = vmatmul.bf16.gmra.mxu0 %v3877
    %v4107 = vpop.f32.mrf.mxu0
    %v4108 = vadd.f32 %v1415, %v4107
    %v4109 = vpop.f32.mrf.mxu0
    %4110 = vdwg.mxu0
    %4111 = vmatpush.bf16.msra.mxu0 %v1675
    %4112 = vmatpush.bf16.msra.mxu0 %v1671
    %4113 = vmatpush.bf16.msra.mxu0 %v1667
    %4114 = vmatpush.bf16.msra.mxu0 %v1663
    %4115 = vmatpush.bf16.msra.mxu0 %v1659
    %4116 = vmatpush.bf16.msra.mxu0 %v1655
    %4117 = vmatpush.bf16.msra.mxu0 %v1651
    %4118 = vmatpush.bf16.msra.mxu0 %v1647
    %4119 = vmatmul.bf16.gmra.mxu0 %v4045
    %v4120 = vpop.f32.mrf.mxu0
    %v4121 = vadd.f32 %v4108, %v4120
    %v4122 = vpop.f32.mrf.mxu0
    %4123 = vdwg.mxu0
    %4124 = vmatpush.bf16.msra.mxu0 %v1644
    %4125 = vmatpush.bf16.msra.mxu0 %v1640
    %4126 = vmatpush.bf16.msra.mxu0 %v1636
    %4127 = vmatpush.bf16.msra.mxu0 %v1632
    %4128 = vmatpush.bf16.msra.mxu0 %v1628
    %4129 = vmatpush.bf16.msra.mxu0 %v1624
    %4130 = vmatpush.bf16.msra.mxu0 %v1620
    %4131 = vmatpush.bf16.msra.mxu0 %v1616
    %4132 = vmatmul.bf16.gmra.mxu0 %v3877
    %v4133 = vpop.f32.mrf.mxu0
    %v4134 = vadd.f32 %v1416, %v4133
    %v4135 = vpop.f32.mrf.mxu0
    %4136 = vdwg.mxu0
    %4137 = vmatpush.bf16.msra.mxu0 %v1676
    %4138 = vmatpush.bf16.msra.mxu0 %v1672
    %4139 = vmatpush.bf16.msra.mxu0 %v1668
    %4140 = vmatpush.bf16.msra.mxu0 %v1664
    %4141 = vmatpush.bf16.msra.mxu0 %v1660
    %4142 = vmatpush.bf16.msra.mxu0 %v1656
    %4143 = vmatpush.bf16.msra.mxu0 %v1652
    %4144 = vmatpush.bf16.msra.mxu0 %v1648
    %4145 = vmatmul.bf16.gmra.mxu0 %v4045
    %v4146 = vpop.f32.mrf.mxu0
    %v4147 = vadd.f32 %v4134, %v4146
    %v4148 = vpop.f32.mrf.mxu0
    %4149 = vdwg.mxu0
    %v4150 = vxor.u32 %v4069, 2147483648
    %v4151 = vxor.u32 %v4095, 2147483648
    %v4152 = vxor.u32 %v4121, 2147483648
    %v4153 = vmul.f32 %v4150, 1.442695
    %v4154 = vpow.pop %v4153
    %v4155 = vmul.f32 %v4151, 1.442695
    %v4156 = vpow.pop %v4155
    %v4157 = vmul.f32 %v4152, 1.442695
    %v4158 = vpow.pop %v4157
    %v4159 = vadd.f32 %v4154, 1.0
    %v4160 = vadd.f32 %v4156, 1.0
    %v4161 = vadd.f32 %v4158, 1.0
    %v4162 = vrcp.pop %v4159
    %v4163 = vmul.f32 %v4159, %v4162
    %v4164 = vsub.f32 1.0, %v4163
    %v4165 = vmul.f32 %v4162, %v4164
    %v4166 = vadd.f32 %v4162, %v4165
    %vm4167 = vweird.f32 %v4159
    %vm4168 = vweird.f32 %v4162
    %vm4169 = vmor %vm4167, %vm4168
    %v4170 = vsel %vm4169, %v4162, %v4166
    %v4171 = vand.u32 2147483647, %v4159
    %vm4172 = vcmp.eq.f32.partialorder %v4171, 8.507059e+37
    %v4173 = vand.u32 %v4159, 2147483648
    %v4174 = vor.u32 1.1754944e-38, %v4173
    %v4175 = vsel %vm4172, %v4174, %v4170
    %v4176 = vmul.f32 1.0, %v4175
    %v4177 = vrcp.pop %v4160
    %v4178 = vmul.f32 %v4160, %v4177
    %v4179 = vsub.f32 1.0, %v4178
    %v4180 = vmul.f32 %v4177, %v4179
    %v4181 = vadd.f32 %v4177, %v4180
    %vm4182 = vweird.f32 %v4160
    %vm4183 = vweird.f32 %v4177
    %vm4184 = vmor %vm4182, %vm4183
    %v4185 = vsel %vm4184, %v4177, %v4181
    %v4186 = vand.u32 2147483647, %v4160
    %vm4187 = vcmp.eq.f32.partialorder %v4186, 8.507059e+37
    %v4188 = vand.u32 %v4160, 2147483648
    %v4189 = vor.u32 1.1754944e-38, %v4188
    %v4190 = vsel %vm4187, %v4189, %v4185
    %v4191 = vmul.f32 1.0, %v4190
    %v4192 = vrcp.pop %v4161
    %v4193 = vmul.f32 %v4161, %v4192
    %v4194 = vsub.f32 1.0, %v4193
    %v4195 = vmul.f32 %v4192, %v4194
    %v4196 = vadd.f32 %v4192, %v4195
    %vm4197 = vweird.f32 %v4161
    %vm4198 = vweird.f32 %v4192
    %vm4199 = vmor %vm4197, %vm4198
    %v4200 = vsel %vm4199, %v4192, %v4196
    %v4201 = vand.u32 2147483647, %v4161
    %vm4202 = vcmp.eq.f32.partialorder %v4201, 8.507059e+37
    %v4203 = vand.u32 %v4161, 2147483648
    %v4204 = vor.u32 1.1754944e-38, %v4203
    %v4205 = vsel %vm4202, %v4204, %v4200
    %v4206 = vmul.f32 1.0, %v4205
    %v4207 = vtanh.pop %v4147
    %v4208 = vmul.f32 %v4191, %v3749
    %v4209 = vmul.f32 %v4176, %v4207
    %v4210 = vadd.f32 %v4208, %v4209
    %v4211 = vtanh.pop %v4210
    %v4212 = vmul.f32 %v4206, %v4211
    %v4213 = vpack.c.bf16 %v3876, %v3876
    %v4214 = vpack.c.bf16 %v4044, %v4044
    %4215 = vmatpush.bf16.msra.mxu0 %v786
    %4216 = vmatpush.bf16.msra.mxu0 %v782
    %4217 = vmatpush.bf16.msra.mxu0 %v778
    %4218 = vmatpush.bf16.msra.mxu0 %v774
    %4219 = vmatpush.bf16.msra.mxu0 %v770
    %4220 = vmatpush.bf16.msra.mxu0 %v766
    %4221 = vmatpush.bf16.msra.mxu0 %v762
    %4222 = vmatpush.bf16.msra.mxu0 %v758
    %4223 = vmatmul.bf16.gmra.mxu0 %v4213
    %v4224 = vpop.f32.mrf.mxu0
    %v4225 = vadd.f32 %v558, %v4224
    %v4226 = vpop.f32.mrf.mxu0
    %4227 = vdwg.mxu0
    %4228 = vmatpush.bf16.msra.mxu0 %v818
    %4229 = vmatpush.bf16.msra.mxu0 %v814
    %4230 = vmatpush.bf16.msra.mxu0 %v810
    %4231 = vmatpush.bf16.msra.mxu0 %v806
    %4232 = vmatpush.bf16.msra.mxu0 %v802
    %4233 = vmatpush.bf16.msra.mxu0 %v798
    %4234 = vmatpush.bf16.msra.mxu0 %v794
    %4235 = vmatpush.bf16.msra.mxu0 %v790
    %4236 = vmatmul.bf16.gmra.mxu0 %v4214
    %v4237 = vpop.f32.mrf.mxu0
    %v4238 = vadd.f32 %v4225, %v4237
    %v4239 = vpop.f32.mrf.mxu0
    %4240 = vdwg.mxu0
    %4241 = vmatpush.bf16.msra.mxu0 %v787
    %4242 = vmatpush.bf16.msra.mxu0 %v783
    %4243 = vmatpush.bf16.msra.mxu0 %v779
    %4244 = vmatpush.bf16.msra.mxu0 %v775
    %4245 = vmatpush.bf16.msra.mxu0 %v771
    %4246 = vmatpush.bf16.msra.mxu0 %v767
    %4247 = vmatpush.bf16.msra.mxu0 %v763
    %4248 = vmatpush.bf16.msra.mxu0 %v759
    %4249 = vmatmul.bf16.gmra.mxu0 %v4213
    %v4250 = vpop.f32.mrf.mxu0
    %v4251 = vadd.f32 %v559, %v4250
    %v4252 = vpop.f32.mrf.mxu0
    %4253 = vdwg.mxu0
    %4254 = vmatpush.bf16.msra.mxu0 %v819
    %4255 = vmatpush.bf16.msra.mxu0 %v815
    %4256 = vmatpush.bf16.msra.mxu0 %v811
    %4257 = vmatpush.bf16.msra.mxu0 %v807
    %4258 = vmatpush.bf16.msra.mxu0 %v803
    %4259 = vmatpush.bf16.msra.mxu0 %v799
    %4260 = vmatpush.bf16.msra.mxu0 %v795
    %4261 = vmatpush.bf16.msra.mxu0 %v791
    %4262 = vmatmul.bf16.gmra.mxu0 %v4214
    %v4263 = vpop.f32.mrf.mxu0
    %v4264 = vadd.f32 %v4251, %v4263
    %v4265 = vpop.f32.mrf.mxu0
    %4266 = vdwg.mxu0
    %4267 = vmatpush.bf16.msra.mxu0 %v788
    %4268 = vmatpush.bf16.msra.mxu0 %v784
    %4269 = vmatpush.bf16.msra.mxu0 %v780
    %4270 = vmatpush.bf16.msra.mxu0 %v776
    %4271 = vmatpush.bf16.msra.mxu0 %v772
    %4272 = vmatpush.bf16.msra.mxu0 %v768
    %4273 = vmatpush.bf16.msra.mxu0 %v764
    %4274 = vmatpush.bf16.msra.mxu0 %v760
    %4275 = vmatmul.bf16.gmra.mxu0 %v4213
    %v4276 = vpop.f32.mrf.mxu0
    %v4277 = vadd.f32 %v560, %v4276
    %v4278 = vpop.f32.mrf.mxu0
    %4279 = vdwg.mxu0
    %4280 = vmatpush.bf16.msra.mxu0 %v820
    %4281 = vmatpush.bf16.msra.mxu0 %v816
    %4282 = vmatpush.bf16.msra.mxu0 %v812
    %4283 = vmatpush.bf16.msra.mxu0 %v808
    %4284 = vmatpush.bf16.msra.mxu0 %v804
    %4285 = vmatpush.bf16.msra.mxu0 %v800
    %4286 = vmatpush.bf16.msra.mxu0 %v796
    %4287 = vmatpush.bf16.msra.mxu0 %v792
    %4288 = vmatmul.bf16.gmra.mxu0 %v4214
    %v4289 = vpop.f32.mrf.mxu0
    %v4290 = vadd.f32 %v4277, %v4289
    %v4291 = vpop.f32.mrf.mxu0
    %4292 = vdwg.mxu0
    %4293 = vmatpush.bf16.msra.mxu0 %v789
    %4294 = vmatpush.bf16.msra.mxu0 %v785
    %4295 = vmatpush.bf16.msra.mxu0 %v781
    %4296 = vmatpush.bf16.msra.mxu0 %v777
    %4297 = vmatpush.bf16.msra.mxu0 %v773
    %4298 = vmatpush.bf16.msra.mxu0 %v769
    %4299 = vmatpush.bf16.msra.mxu0 %v765
    %4300 = vmatpush.bf16.msra.mxu0 %v761
    %4301 = vmatmul.bf16.gmra.mxu0 %v4213
    %v4302 = vpop.f32.mrf.mxu0
    %v4303 = vadd.f32 %v561, %v4302
    %v4304 = vpop.f32.mrf.mxu0
    %4305 = vdwg.mxu0
    %4306 = vmatpush.bf16.msra.mxu0 %v821
    %4307 = vmatpush.bf16.msra.mxu0 %v817
    %4308 = vmatpush.bf16.msra.mxu0 %v813
    %4309 = vmatpush.bf16.msra.mxu0 %v809
    %4310 = vmatpush.bf16.msra.mxu0 %v805
    %4311 = vmatpush.bf16.msra.mxu0 %v801
    %4312 = vmatpush.bf16.msra.mxu0 %v797
    %4313 = vmatpush.bf16.msra.mxu0 %v793
    %4314 = vmatmul.bf16.gmra.mxu0 %v4214
    %v4315 = vpop.f32.mrf.mxu0
    %v4316 = vadd.f32 %v4303, %v4315
    %v4317 = vpop.f32.mrf.mxu0
    %4318 = vdwg.mxu0
    %v4319 = vxor.u32 %v4238, 2147483648
    %v4320 = vxor.u32 %v4264, 2147483648
    %v4321 = vxor.u32 %v4290, 2147483648
    %v4322 = vmul.f32 %v4319, 1.442695
    %v4323 = vpow.pop %v4322
    %v4324 = vmul.f32 %v4320, 1.442695
    %v4325 = vpow.pop %v4324
    %v4326 = vmul.f32 %v4321, 1.442695
    %v4327 = vpow.pop %v4326
    %v4328 = vadd.f32 %v4323, 1.0
    %v4329 = vadd.f32 %v4325, 1.0
    %v4330 = vadd.f32 %v4327, 1.0
    %v4331 = vrcp.pop %v4328
    %v4332 = vmul.f32 %v4328, %v4331
    %v4333 = vsub.f32 1.0, %v4332
    %v4334 = vmul.f32 %v4331, %v4333
    %v4335 = vadd.f32 %v4331, %v4334
    %vm4336 = vweird.f32 %v4328
    %vm4337 = vweird.f32 %v4331
    %vm4338 = vmor %vm4336, %vm4337
    %v4339 = vsel %vm4338, %v4331, %v4335
    %v4340 = vand.u32 2147483647, %v4328
    %vm4341 = vcmp.eq.f32.partialorder %v4340, 8.507059e+37
    %v4342 = vand.u32 %v4328, 2147483648
    %v4343 = vor.u32 1.1754944e-38, %v4342
    %v4344 = vsel %vm4341, %v4343, %v4339
    %v4345 = vmul.f32 1.0, %v4344
    %v4346 = vrcp.pop %v4329
    %v4347 = vmul.f32 %v4329, %v4346
    %v4348 = vsub.f32 1.0, %v4347
    %v4349 = vmul.f32 %v4346, %v4348
    %v4350 = vadd.f32 %v4346, %v4349
    %vm4351 = vweird.f32 %v4329
    %vm4352 = vweird.f32 %v4346
    %vm4353 = vmor %vm4351, %vm4352
    %v4354 = vsel %vm4353, %v4346, %v4350
    %v4355 = vand.u32 2147483647, %v4329
    %vm4356 = vcmp.eq.f32.partialorder %v4355, 8.507059e+37
    %v4357 = vand.u32 %v4329, 2147483648
    %v4358 = vor.u32 1.1754944e-38, %v4357
    %v4359 = vsel %vm4356, %v4358, %v4354
    %v4360 = vmul.f32 1.0, %v4359
    %v4361 = vrcp.pop %v4330
    %v4362 = vmul.f32 %v4330, %v4361
    %v4363 = vsub.f32 1.0, %v4362
    %v4364 = vmul.f32 %v4361, %v4363
    %v4365 = vadd.f32 %v4361, %v4364
    %vm4366 = vweird.f32 %v4330
    %vm4367 = vweird.f32 %v4361
    %vm4368 = vmor %vm4366, %vm4367
    %v4369 = vsel %vm4368, %v4361, %v4365
    %v4370 = vand.u32 2147483647, %v4330
    %vm4371 = vcmp.eq.f32.partialorder %v4370, 8.507059e+37
    %v4372 = vand.u32 %v4330, 2147483648
    %v4373 = vor.u32 1.1754944e-38, %v4372
    %v4374 = vsel %vm4371, %v4373, %v4369
    %v4375 = vmul.f32 1.0, %v4374
    %v4376 = vtanh.pop %v4316
    %v4377 = vmul.f32 %v4360, %v4042
    %v4378 = vmul.f32 %v4345, %v4376
    %v4379 = vadd.f32 %v4377, %v4378
    %v4380 = vtanh.pop %v4379
    %v4381 = vmul.f32 %v4375, %v4380
    %v4382 = vpack.c.bf16 %v4212, %v4212
    %4383 = vmatpush.bf16.msra.mxu0 %v1641
    %4384 = vmatpush.bf16.msra.mxu0 %v1637
    %4385 = vmatpush.bf16.msra.mxu0 %v1633
    %4386 = vmatpush.bf16.msra.mxu0 %v1629
    %4387 = vmatpush.bf16.msra.mxu0 %v1625
    %4388 = vmatpush.bf16.msra.mxu0 %v1621
    %4389 = vmatpush.bf16.msra.mxu0 %v1617
    %4390 = vmatpush.bf16.msra.mxu0 %v1613
    %4391 = vmatmul.bf16.gmra.mxu0 %v4214
    %v4392 = vpop.f32.mrf.mxu0
    %v4393 = vadd.f32 %v1413, %v4392
    %v4394 = vpop.f32.mrf.mxu0
    %4395 = vdwg.mxu0
    %4396 = vmatpush.bf16.msra.mxu0 %v1673
    %4397 = vmatpush.bf16.msra.mxu0 %v1669
    %4398 = vmatpush.bf16.msra.mxu0 %v1665
    %4399 = vmatpush.bf16.msra.mxu0 %v1661
    %4400 = vmatpush.bf16.msra.mxu0 %v1657
    %4401 = vmatpush.bf16.msra.mxu0 %v1653
    %4402 = vmatpush.bf16.msra.mxu0 %v1649
    %4403 = vmatpush.bf16.msra.mxu0 %v1645
    %4404 = vmatmul.bf16.gmra.mxu0 %v4382
    %v4405 = vpop.f32.mrf.mxu0
    %v4406 = vadd.f32 %v4393, %v4405
    %v4407 = vpop.f32.mrf.mxu0
    %4408 = vdwg.mxu0
    %4409 = vmatpush.bf16.msra.mxu0 %v1642
    %4410 = vmatpush.bf16.msra.mxu0 %v1638
    %4411 = vmatpush.bf16.msra.mxu0 %v1634
    %4412 = vmatpush.bf16.msra.mxu0 %v1630
    %4413 = vmatpush.bf16.msra.mxu0 %v1626
    %4414 = vmatpush.bf16.msra.mxu0 %v1622
    %4415 = vmatpush.bf16.msra.mxu0 %v1618
    %4416 = vmatpush.bf16.msra.mxu0 %v1614
    %4417 = vmatmul.bf16.gmra.mxu0 %v4214
    %v4418 = vpop.f32.mrf.mxu0
    %v4419 = vadd.f32 %v1414, %v4418
    %v4420 = vpop.f32.mrf.mxu0
    %4421 = vdwg.mxu0
    %4422 = vmatpush.bf16.msra.mxu0 %v1674
    %4423 = vmatpush.bf16.msra.mxu0 %v1670
    %4424 = vmatpush.bf16.msra.mxu0 %v1666
    %4425 = vmatpush.bf16.msra.mxu0 %v1662
    %4426 = vmatpush.bf16.msra.mxu0 %v1658
    %4427 = vmatpush.bf16.msra.mxu0 %v1654
    %4428 = vmatpush.bf16.msra.mxu0 %v1650
    %4429 = vmatpush.bf16.msra.mxu0 %v1646
    %4430 = vmatmul.bf16.gmra.mxu0 %v4382
    %v4431 = vpop.f32.mrf.mxu0
    %v4432 = vadd.f32 %v4419, %v4431
    %v4433 = vpop.f32.mrf.mxu0
    %4434 = vdwg.mxu0
    %4435 = vmatpush.bf16.msra.mxu0 %v1643
    %4436 = vmatpush.bf16.msra.mxu0 %v1639
    %4437 = vmatpush.bf16.msra.mxu0 %v1635
    %4438 = vmatpush.bf16.msra.mxu0 %v1631
    %4439 = vmatpush.bf16.msra.mxu0 %v1627
    %4440 = vmatpush.bf16.msra.mxu0 %v1623
    %4441 = vmatpush.bf16.msra.mxu0 %v1619
    %4442 = vmatpush.bf16.msra.mxu0 %v1615
    %4443 = vmatmul.bf16.gmra.mxu0 %v4214
    %v4444 = vpop.f32.mrf.mxu0
    %v4445 = vadd.f32 %v1415, %v4444
    %v4446 = vpop.f32.mrf.mxu0
    %4447 = vdwg.mxu0
    %4448 = vmatpush.bf16.msra.mxu0 %v1675
    %4449 = vmatpush.bf16.msra.mxu0 %v1671
    %4450 = vmatpush.bf16.msra.mxu0 %v1667
    %4451 = vmatpush.bf16.msra.mxu0 %v1663
    %4452 = vmatpush.bf16.msra.mxu0 %v1659
    %4453 = vmatpush.bf16.msra.mxu0 %v1655
    %4454 = vmatpush.bf16.msra.mxu0 %v1651
    %4455 = vmatpush.bf16.msra.mxu0 %v1647
    %4456 = vmatmul.bf16.gmra.mxu0 %v4382
    %v4457 = vpop.f32.mrf.mxu0
    %v4458 = vadd.f32 %v4445, %v4457
    %v4459 = vpop.f32.mrf.mxu0
    %4460 = vdwg.mxu0
    %4461 = vmatpush.bf16.msra.mxu0 %v1644
    %4462 = vmatpush.bf16.msra.mxu0 %v1640
    %4463 = vmatpush.bf16.msra.mxu0 %v1636
    %4464 = vmatpush.bf16.msra.mxu0 %v1632
    %4465 = vmatpush.bf16.msra.mxu0 %v1628
    %4466 = vmatpush.bf16.msra.mxu0 %v1624
    %4467 = vmatpush.bf16.msra.mxu0 %v1620
    %4468 = vmatpush.bf16.msra.mxu0 %v1616
    %4469 = vmatmul.bf16.gmra.mxu0 %v4214
    %v4470 = vpop.f32.mrf.mxu0
    %v4471 = vadd.f32 %v1416, %v4470
    %v4472 = vpop.f32.mrf.mxu0
    %4473 = vdwg.mxu0
    %4474 = vmatpush.bf16.msra.mxu0 %v1676
    %4475 = vmatpush.bf16.msra.mxu0 %v1672
    %4476 = vmatpush.bf16.msra.mxu0 %v1668
    %4477 = vmatpush.bf16.msra.mxu0 %v1664
    %4478 = vmatpush.bf16.msra.mxu0 %v1660
    %4479 = vmatpush.bf16.msra.mxu0 %v1656
    %4480 = vmatpush.bf16.msra.mxu0 %v1652
    %4481 = vmatpush.bf16.msra.mxu0 %v1648
    %4482 = vmatmul.bf16.gmra.mxu0 %v4382
    %v4483 = vpop.f32.mrf.mxu0
    %v4484 = vadd.f32 %v4471, %v4483
    %v4485 = vpop.f32.mrf.mxu0
    %4486 = vdwg.mxu0
    %v4487 = vxor.u32 %v4406, 2147483648
    %v4488 = vxor.u32 %v4432, 2147483648
    %v4489 = vxor.u32 %v4458, 2147483648
    %v4490 = vmul.f32 %v4487, 1.442695
    %v4491 = vpow.pop %v4490
    %v4492 = vmul.f32 %v4488, 1.442695
    %v4493 = vpow.pop %v4492
    %v4494 = vmul.f32 %v4489, 1.442695
    %v4495 = vpow.pop %v4494
    %v4496 = vadd.f32 %v4491, 1.0
    %v4497 = vadd.f32 %v4493, 1.0
    %v4498 = vadd.f32 %v4495, 1.0
    %v4499 = vrcp.pop %v4496
    %v4500 = vmul.f32 %v4496, %v4499
    %v4501 = vsub.f32 1.0, %v4500
    %v4502 = vmul.f32 %v4499, %v4501
    %v4503 = vadd.f32 %v4499, %v4502
    %vm4504 = vweird.f32 %v4496
    %vm4505 = vweird.f32 %v4499
    %vm4506 = vmor %vm4504, %vm4505
    %v4507 = vsel %vm4506, %v4499, %v4503
    %v4508 = vand.u32 2147483647, %v4496
    %vm4509 = vcmp.eq.f32.partialorder %v4508, 8.507059e+37
    %v4510 = vand.u32 %v4496, 2147483648
    %v4511 = vor.u32 1.1754944e-38, %v4510
    %v4512 = vsel %vm4509, %v4511, %v4507
    %v4513 = vmul.f32 1.0, %v4512
    %v4514 = vrcp.pop %v4497
    %v4515 = vmul.f32 %v4497, %v4514
    %v4516 = vsub.f32 1.0, %v4515
    %v4517 = vmul.f32 %v4514, %v4516
    %v4518 = vadd.f32 %v4514, %v4517
    %vm4519 = vweird.f32 %v4497
    %vm4520 = vweird.f32 %v4514
    %vm4521 = vmor %vm4519, %vm4520
    %v4522 = vsel %vm4521, %v4514, %v4518
    %v4523 = vand.u32 2147483647, %v4497
    %vm4524 = vcmp.eq.f32.partialorder %v4523, 8.507059e+37
    %v4525 = vand.u32 %v4497, 2147483648
    %v4526 = vor.u32 1.1754944e-38, %v4525
    %v4527 = vsel %vm4524, %v4526, %v4522
    %v4528 = vmul.f32 1.0, %v4527
    %v4529 = vrcp.pop %v4498
    %v4530 = vmul.f32 %v4498, %v4529
    %v4531 = vsub.f32 1.0, %v4530
    %v4532 = vmul.f32 %v4529, %v4531
    %v4533 = vadd.f32 %v4529, %v4532
    %vm4534 = vweird.f32 %v4498
    %vm4535 = vweird.f32 %v4529
    %vm4536 = vmor %vm4534, %vm4535
    %v4537 = vsel %vm4536, %v4529, %v4533
    %v4538 = vand.u32 2147483647, %v4498
    %vm4539 = vcmp.eq.f32.partialorder %v4538, 8.507059e+37
    %v4540 = vand.u32 %v4498, 2147483648
    %v4541 = vor.u32 1.1754944e-38, %v4540
    %v4542 = vsel %vm4539, %v4541, %v4537
    %v4543 = vmul.f32 1.0, %v4542
    %v4544 = vtanh.pop %v4484
    %v4545 = vmul.f32 %v4528, %v4210
    %v4546 = vmul.f32 %v4513, %v4544
    %v4547 = vadd.f32 %v4545, %v4546
    %v4548 = vtanh.pop %v4547
    %v4549 = vmul.f32 %v4543, %v4548
    %v4550 = vpack.c.bf16 %v4381, %v4381
    %v4551 = vpack.c.bf16 %v4549, %v4549
    %4552 = vmatpush.bf16.msra.mxu0 %v1641
    %4553 = vmatpush.bf16.msra.mxu0 %v1637
    %4554 = vmatpush.bf16.msra.mxu0 %v1633
    %4555 = vmatpush.bf16.msra.mxu0 %v1629
    %4556 = vmatpush.bf16.msra.mxu0 %v1625
    %4557 = vmatpush.bf16.msra.mxu0 %v1621
    %4558 = vmatpush.bf16.msra.mxu0 %v1617
    %4559 = vmatpush.bf16.msra.mxu0 %v1613
    %4560 = vmatmul.bf16.gmra.mxu0 %v4550
    %v4561 = vpop.f32.mrf.mxu0
    %v4562 = vadd.f32 %v1413, %v4561
    %v4563 = vpop.f32.mrf.mxu0
    %4564 = vdwg.mxu0
    %4565 = vmatpush.bf16.msra.mxu0 %v1673
    %4566 = vmatpush.bf16.msra.mxu0 %v1669
    %4567 = vmatpush.bf16.msra.mxu0 %v1665
    %4568 = vmatpush.bf16.msra.mxu0 %v1661
    %4569 = vmatpush.bf16.msra.mxu0 %v1657
    %4570 = vmatpush.bf16.msra.mxu0 %v1653
    %4571 = vmatpush.bf16.msra.mxu0 %v1649
    %4572 = vmatpush.bf16.msra.mxu0 %v1645
    %4573 = vmatmul.bf16.gmra.mxu0 %v4551
    %v4574 = vpop.f32.mrf.mxu0
    %v4575 = vadd.f32 %v4562, %v4574
    %v4576 = vpop.f32.mrf.mxu0
    %4577 = vdwg.mxu0
    %4578 = vmatpush.bf16.msra.mxu0 %v1642
    %4579 = vmatpush.bf16.msra.mxu0 %v1638
    %4580 = vmatpush.bf16.msra.mxu0 %v1634
    %4581 = vmatpush.bf16.msra.mxu0 %v1630
    %4582 = vmatpush.bf16.msra.mxu0 %v1626
    %4583 = vmatpush.bf16.msra.mxu0 %v1622
    %4584 = vmatpush.bf16.msra.mxu0 %v1618
    %4585 = vmatpush.bf16.msra.mxu0 %v1614
    %4586 = vmatmul.bf16.gmra.mxu0 %v4550
    %v4587 = vpop.f32.mrf.mxu0
    %v4588 = vadd.f32 %v1414, %v4587
    %v4589 = vpop.f32.mrf.mxu0
    %4590 = vdwg.mxu0
    %4591 = vmatpush.bf16.msra.mxu0 %v1674
    %4592 = vmatpush.bf16.msra.mxu0 %v1670
    %4593 = vmatpush.bf16.msra.mxu0 %v1666
    %4594 = vmatpush.bf16.msra.mxu0 %v1662
    %4595 = vmatpush.bf16.msra.mxu0 %v1658
    %4596 = vmatpush.bf16.msra.mxu0 %v1654
    %4597 = vmatpush.bf16.msra.mxu0 %v1650
    %4598 = vmatpush.bf16.msra.mxu0 %v1646
    %4599 = vmatmul.bf16.gmra.mxu0 %v4551
    %v4600 = vpop.f32.mrf.mxu0
    %v4601 = vadd.f32 %v4588, %v4600
    %v4602 = vpop.f32.mrf.mxu0
    %4603 = vdwg.mxu0
    %4604 = vmatpush.bf16.msra.mxu0 %v1643
    %4605 = vmatpush.bf16.msra.mxu0 %v1639
    %4606 = vmatpush.bf16.msra.mxu0 %v1635
    %4607 = vmatpush.bf16.msra.mxu0 %v1631
    %4608 = vmatpush.bf16.msra.mxu0 %v1627
    %4609 = vmatpush.bf16.msra.mxu0 %v1623
    %4610 = vmatpush.bf16.msra.mxu0 %v1619
    %4611 = vmatpush.bf16.msra.mxu0 %v1615
    %4612 = vmatmul.bf16.gmra.mxu0 %v4550
    %v4613 = vpop.f32.mrf.mxu0
    %v4614 = vadd.f32 %v1415, %v4613
    %v4615 = vpop.f32.mrf.mxu0
    %4616 = vdwg.mxu0
    %4617 = vmatpush.bf16.msra.mxu0 %v1675
    %4618 = vmatpush.bf16.msra.mxu0 %v1671
    %4619 = vmatpush.bf16.msra.mxu0 %v1667
    %4620 = vmatpush.bf16.msra.mxu0 %v1663
    %4621 = vmatpush.bf16.msra.mxu0 %v1659
    %4622 = vmatpush.bf16.msra.mxu0 %v1655
    %4623 = vmatpush.bf16.msra.mxu0 %v1651
    %4624 = vmatpush.bf16.msra.mxu0 %v1647
    %4625 = vmatmul.bf16.gmra.mxu0 %v4551
    %v4626 = vpop.f32.mrf.mxu0
    %v4627 = vadd.f32 %v4614, %v4626
    %v4628 = vpop.f32.mrf.mxu0
    %4629 = vdwg.mxu0
    %4630 = vmatpush.bf16.msra.mxu0 %v1644
    %4631 = vmatpush.bf16.msra.mxu0 %v1640
    %4632 = vmatpush.bf16.msra.mxu0 %v1636
    %4633 = vmatpush.bf16.msra.mxu0 %v1632
    %4634 = vmatpush.bf16.msra.mxu0 %v1628
    %4635 = vmatpush.bf16.msra.mxu0 %v1624
    %4636 = vmatpush.bf16.msra.mxu0 %v1620
    %4637 = vmatpush.bf16.msra.mxu0 %v1616
    %4638 = vmatmul.bf16.gmra.mxu0 %v4550
    %v4639 = vpop.f32.mrf.mxu0
    %v4640 = vadd.f32 %v1416, %v4639
    %v4641 = vpop.f32.mrf.mxu0
    %4642 = vdwg.mxu0
    %4643 = vmatpush.bf16.msra.mxu0 %v1676
    %4644 = vmatpush.bf16.msra.mxu0 %v1672
    %4645 = vmatpush.bf16.msra.mxu0 %v1668
    %4646 = vmatpush.bf16.msra.mxu0 %v1664
    %4647 = vmatpush.bf16.msra.mxu0 %v1660
    %4648 = vmatpush.bf16.msra.mxu0 %v1656
    %4649 = vmatpush.bf16.msra.mxu0 %v1652
    %4650 = vmatpush.bf16.msra.mxu0 %v1648
    %4651 = vmatmul.bf16.gmra.mxu0 %v4551
    %v4652 = vpop.f32.mrf.mxu0
    %v4653 = vadd.f32 %v4640, %v4652
    %v4654 = vpop.f32.mrf.mxu0
    %4655 = vdwg.mxu0
    %v4656 = vxor.u32 %v4575, 2147483648
    %v4657 = vxor.u32 %v4601, 2147483648
    %v4658 = vxor.u32 %v4627, 2147483648
    %v4659 = vmul.f32 %v4656, 1.442695
    %v4660 = vpow.pop %v4659
    %v4661 = vmul.f32 %v4657, 1.442695
    %v4662 = vpow.pop %v4661
    %v4663 = vmul.f32 %v4658, 1.442695
    %v4664 = vpow.pop %v4663
    %v4665 = vadd.f32 %v4660, 1.0
    %v4666 = vadd.f32 %v4662, 1.0
    %v4667 = vadd.f32 %v4664, 1.0
    %v4668 = vrcp.pop %v4665
    %v4669 = vmul.f32 %v4665, %v4668
    %v4670 = vsub.f32 1.0, %v4669
    %v4671 = vmul.f32 %v4668, %v4670
    %v4672 = vadd.f32 %v4668, %v4671
    %vm4673 = vweird.f32 %v4665
    %vm4674 = vweird.f32 %v4668
    %vm4675 = vmor %vm4673, %vm4674
    %v4676 = vsel %vm4675, %v4668, %v4672
    %v4677 = vand.u32 2147483647, %v4665
    %vm4678 = vcmp.eq.f32.partialorder %v4677, 8.507059e+37
    %v4679 = vand.u32 %v4665, 2147483648
    %v4680 = vor.u32 1.1754944e-38, %v4679
    %v4681 = vsel %vm4678, %v4680, %v4676
    %v4682 = vmul.f32 1.0, %v4681
    %v4683 = vrcp.pop %v4666
    %v4684 = vmul.f32 %v4666, %v4683
    %v4685 = vsub.f32 1.0, %v4684
    %v4686 = vmul.f32 %v4683, %v4685
    %v4687 = vadd.f32 %v4683, %v4686
    %vm4688 = vweird.f32 %v4666
    %vm4689 = vweird.f32 %v4683
    %vm4690 = vmor %vm4688, %vm4689
    %v4691 = vsel %vm4690, %v4683, %v4687
    %v4692 = vand.u32 2147483647, %v4666
    %vm4693 = vcmp.eq.f32.partialorder %v4692, 8.507059e+37
    %v4694 = vand.u32 %v4666, 2147483648
    %v4695 = vor.u32 1.1754944e-38, %v4694
    %v4696 = vsel %vm4693, %v4695, %v4691
    %v4697 = vmul.f32 1.0, %v4696
    %v4698 = vrcp.pop %v4667
    %v4699 = vmul.f32 %v4667, %v4698
    %v4700 = vsub.f32 1.0, %v4699
    %v4701 = vmul.f32 %v4698, %v4700
    %v4702 = vadd.f32 %v4698, %v4701
    %vm4703 = vweird.f32 %v4667
    %vm4704 = vweird.f32 %v4698
    %vm4705 = vmor %vm4703, %vm4704
    %v4706 = vsel %vm4705, %v4698, %v4702
    %v4707 = vand.u32 2147483647, %v4667
    %vm4708 = vcmp.eq.f32.partialorder %v4707, 8.507059e+37
    %v4709 = vand.u32 %v4667, 2147483648
    %v4710 = vor.u32 1.1754944e-38, %v4709
    %v4711 = vsel %vm4708, %v4710, %v4706
    %v4712 = vmul.f32 1.0, %v4711
    %v4713 = vtanh.pop %v4653
    %v4714 = vmul.f32 %v4697, %v4547
    %v4715 = vmul.f32 %v4682, %v4713
    %v4716 = vadd.f32 %v4714, %v4715
    %v4717 = vtanh.pop %v4716
    %v4718 = vmul.f32 %v4712, %v4717
    %4719 = vst [vmem:[#allocation2] sm:$0xff] %v3876
    %4720 = vst [vmem:[#allocation4] sm:$0xff] %v3874
    %s4721 = scalar_lea.vmem [#allocation2], 8
    %4722 = vst [vmem:[%s4721] sm:$0xff] %v4381
    %s4723 = scalar_lea.vmem [#allocation4], 8
    %4724 = vst [vmem:[%s4723] sm:$0xff] %v4379
    %s4725 = scalar_lea.vmem [#allocation2], 16
    %4726 = vst [vmem:[%s4725] sm:$0xff] %v4718
    %s4727 = scalar_lea.vmem [#allocation4], 16
    %4728 = vst [vmem:[%s4727] sm:$0xff] %v4716
    %v4729 = vpack.c.bf16 %v4718, %v4718
    %v4730 = vld [vmem:[%s8] sm:$0xf]
    %v4731 = vld [vmem:[%s8 + $0x4] sm:$0xf]
    %v4732 = vld [vmem:[%s8 + $0x8] sm:$0xf]
    %v4733 = vld [vmem:[%s8 + $0xc] sm:$0xf]
    %v4734 = vld [vmem:[%s8 + $0x10] sm:$0xf]
    %v4735 = vld [vmem:[%s8 + $0x14] sm:$0xf]
    %v4736 = vld [vmem:[%s8 + $0x18] sm:$0xf]
    %v4737 = vld [vmem:[%s8 + $0x1c] sm:$0xf]
    %v4738 = vld [vmem:[%s8 + $0x20] sm:$0xf]
    %v4739 = vld [vmem:[%s8 + $0x24] sm:$0xf]
    %v4740 = vld [vmem:[%s8 + $0x28] sm:$0xf]
    %v4741 = vld [vmem:[%s8 + $0x2c] sm:$0xf]
    %v4742 = vld [vmem:[%s8 + $0x30] sm:$0xf]
    %v4743 = vld [vmem:[%s8 + $0x34] sm:$0xf]
    %v4744 = vld [vmem:[%s8 + $0x38] sm:$0xf]
    %v4745 = vld [vmem:[%s8 + $0x3c] sm:$0xf]
    %v4746 = vld [vmem:[%s9] sm:$0x1]
    %v4748 = vperm.slane %v4746, 0
    %v4766 = vunpack.c.l.b16 %v4730
    %v4767 = vunpack.c.l.b16 %v4731
    %v4768 = vunpack.c.l.b16 %v4732
    %v4769 = vunpack.c.l.b16 %v4733
    %v4770 = vunpack.c.l.b16 %v4734
    %v4771 = vunpack.c.l.b16 %v4735
    %v4772 = vunpack.c.l.b16 %v4736
    %v4773 = vunpack.c.l.b16 %v4737
    %v4774 = vunpack.c.l.b16 %v4738
    %v4775 = vunpack.c.l.b16 %v4739
    %v4776 = vunpack.c.l.b16 %v4740
    %v4777 = vunpack.c.l.b16 %v4741
    %v4778 = vunpack.c.l.b16 %v4742
    %v4779 = vunpack.c.l.b16 %v4743
    %v4780 = vunpack.c.l.b16 %v4744
    %v4781 = vunpack.c.l.b16 %v4745
    %v4782 = vpack.c.b16 %v4767, %v4766
    %v4783 = vpack.c.b16 %v4769, %v4768
    %v4784 = vpack.c.b16 %v4771, %v4770
    %v4785 = vpack.c.b16 %v4773, %v4772
    %v4786 = vpack.c.b16 %v4775, %v4774
    %v4787 = vpack.c.b16 %v4777, %v4776
    %v4788 = vpack.c.b16 %v4779, %v4778
    %v4789 = vpack.c.b16 %v4781, %v4780
    %4798 = vmatpush.bf16.msra.mxu0 %v4789
    %4799 = vmatpush.bf16.msra.mxu0 %v4788
    %4800 = vmatpush.bf16.msra.mxu0 %v4787
    %4801 = vmatpush.bf16.msra.mxu0 %v4786
    %4802 = vmatpush.bf16.msra.mxu0 %v4785
    %4803 = vmatpush.bf16.msra.mxu0 %v4784
    %4804 = vmatpush.bf16.msra.mxu0 %v4783
    %4805 = vmatpush.bf16.msra.mxu0 %v4782
    %4806 = vmatmul.bf16.gmra.mxu0 %v4729
    %v4807 = vpop.f32.mrf.mxu0
    %v4808 = vadd.f32 %v4748, %v4807
    %v4809 = vpop.f32.mrf.mxu0
    %4810 = vdwg.mxu0
    %4811 = vst [vmem:[%s10] sm:$0xff] %v4808
    // Predicated region
    $region42: #{sentiment_lstm_forward.1} parent=1 // pred_check
      _
    $region43: #{sentiment_lstm_forward.1} parent=1 // pred_check_branch
      %4813 = sbr.rel (0) target = $region45
    $region44: #{sentiment_lstm_forward.1} parent=1 // pred_region
      _
    $region45: #{sentiment_lstm_forward.1} parent=1 // pred_fallthru
      _
    // Predicated region
    $region46: #{sentiment_lstm_forward.1} parent=1 // pred_check
      _
    $region47: #{sentiment_lstm_forward.1} parent=1 // pred_check_branch
      %4815 = sbr.rel (0) target = $region49
    $region48: #{sentiment_lstm_forward.1} parent=1 // pred_region
      %4817 = vsyncadd [#allocation3], 0
      %s4818 = sshll.u32 [#allocation2], 4
      %s4819 = int_to_ptr.vmem [resolvable:$true] %s4818
      %s4820 = sshll.u32 %s11, 4
      %s4821 = int_to_ptr.hbm [resolvable:$true] %s4820
      %4826 = dma.vmem_to_hbm [thread:$0]  %s4819, 384, %s4821, [#allocation3], 128, 128, 8
    $region49: #{sentiment_lstm_forward.1} parent=1 // pred_fallthru
      _
    // Predicated region
    $region50: #{sentiment_lstm_forward.1} parent=1 // pred_check
      _
    $region51: #{sentiment_lstm_forward.1} parent=1 // pred_check_branch
      %4828 = sbr.rel (0) target = $region53
    $region52: #{sentiment_lstm_forward.1} parent=1 // pred_region
      %4830 = vsyncadd [#allocation5], 0
      %s4831 = sshll.u32 [#allocation4], 4
      %s4832 = int_to_ptr.vmem [resolvable:$true] %s4831
      %s4833 = sshll.u32 %s12, 4
      %s4834 = int_to_ptr.hbm [resolvable:$true] %s4833
      %4839 = dma.vmem_to_hbm [thread:$0]  %s4832, 384, %s4834, [#allocation5], 128, 128, 8
    $region53: #{sentiment_lstm_forward.1} parent=1 // pred_fallthru
      _
    // Predicated region
    $region54: #{sentiment_lstm_forward.1} parent=1 // pred_check
      _
    $region55: #{sentiment_lstm_forward.1} parent=1 // pred_check_branch
      %4841 = sbr.rel (0) target = $region57
    $region56: #{sentiment_lstm_forward.1} parent=1 // pred_region
      _
    $region57: #{sentiment_lstm_forward.1} parent=1 // pred_fallthru
      _
    // Predicated region
    $region58: #{sentiment_lstm_forward.1} parent=1 // pred_check
      _
    $region59: #{sentiment_lstm_forward.1} parent=1 // pred_check_branch
      %4843 = sbr.rel (0) target = $region61
    $region60: #{sentiment_lstm_forward.1} parent=1 // pred_region
      %4845 = dma.done [#allocation3], 384
    $region61: #{sentiment_lstm_forward.1} parent=1 // pred_fallthru
      _
    // Predicated region
    $region62: #{sentiment_lstm_forward.1} parent=1 // pred_check
      _
    $region63: #{sentiment_lstm_forward.1} parent=1 // pred_check_branch
      %4847 = sbr.rel (0) target = $region65
    $region64: #{sentiment_lstm_forward.1} parent=1 // pred_region
      %4849 = dma.done [#allocation5], 384
    $region65: #{sentiment_lstm_forward.1} parent=1 // pred_fallthru
      _
    %4850 = vsyncpa [#allocation3], 1
    %4851 = vsyncpa [#allocation5], 1

</llo_original>
